<compile_context>
chip_gen: v6e
topology: v6e:2x2x1
jax: 0.10.0
libtpu: 0.0.40
codegen_flags: <defaults>
</compile_context>

<pallas_src>
import math

import jax
import jax.numpy as jnp
import numpy as np
from jax.experimental import pallas as pl
from jax.experimental.pallas import tpu as pltpu

NEG = -1e30  # additive bias on padded key columns


# ----------------------------- math helpers ----------------------------------------

def _ln_core(x, eps=1e-5):
    """LayerNorm WITHOUT affine (gamma/beta folded into the following matmul)."""
    mu = jnp.mean(x, axis=-1, keepdims=True)
    xc = x - mu
    var = jnp.mean(xc * xc, axis=-1, keepdims=True)
    return xc * jax.lax.rsqrt(var + eps)


def _layernorm(x, g, b, eps=1e-5):
    return _ln_core(x, eps) * g + b


def _erf_poly(x):
    # Abramowitz & Stegun 7.1.26 polynomial (|err| < 1.5e-7).
    a1, a2, a3, a4, a5 = 0.254829592, -0.284496736, 1.421413741, -1.453152027, 1.061405429
    p = 0.3275911
    sgn = jnp.where(x >= 0.0, 1.0, -1.0)
    ax = jnp.abs(x)
    t = 1.0 / (1.0 + p * ax)
    poly = ((((a5 * t + a4) * t + a3) * t + a2) * t + a1) * t
    return sgn * (1.0 - poly * jnp.exp(-ax * ax))


def _gelu_kernel(x):
    # TODO(synk): torch erf-GELU approximated by the A&S polynomial (~1.5e-7 abs err).
    return 0.5 * x * (1.0 + _erf_poly(x * (1.0 / math.sqrt(2.0))))


def _gelu_exact(x):
    return 0.5 * x * (1.0 + jax.scipy.special.erf(x / math.sqrt(2.0)))


# ----------------------------------- parameters -------------------------------------

def init_params(key, *, n_layers, d_model, n_head, n_action, d_hidden, pred_len,
                n_registers):
    D, Hh, NL = d_model, d_hidden, n_layers
    S = pred_len + 1 + n_registers
    keys = iter(jax.random.split(key, 32))

    def nrm(shape, scale=0.05):
        return (scale * jax.random.normal(next(keys), shape)).astype(jnp.float32)

    ones = lambda *s: jnp.ones(s, jnp.float32)
    zeros = lambda *s: jnp.zeros(s, jnp.float32)

    return {
        # PatchEmbedding: Linear(n_action -> d_model) + LayerNorm
        "pe_w": nrm((n_action, D)), "pe_b": nrm((1, D)),
        "pe_g": ones(1, D), "pe_be": zeros(1, D),
        # CLS / register tokens and positional encoding (nn.Parameter ~ N(0,1))
        "cls_tok": nrm((1, D), 1.0), "reg_tok": nrm((n_registers, D), 1.0),
        "pos": nrm((S, D), 1.0),
        # per-layer attention: fused in-proj (q|k|v along output dim) + out-proj.
        "wqkv": nrm((NL, D, 3 * D)), "bqkv": nrm((NL, 1, 3 * D)),
        "wo": nrm((NL, D, D)), "ob": nrm((NL, 1, D)),
        "n1g": jnp.ones((NL, 1, D), jnp.float32), "n1b": jnp.zeros((NL, 1, D), jnp.float32),
        # per-layer feed-forward (Linear -> GELU -> Linear)
        "fw1": nrm((NL, D, Hh)), "fb1": nrm((NL, 1, Hh)),
        "fw2": nrm((NL, Hh, D)), "fb2": nrm((NL, 1, D)),
        "n2g": jnp.ones((NL, 1, D), jnp.float32), "n2b": jnp.zeros((NL, 1, D), jnp.float32),
        # final LayerNorm on CLS + RegressionHead
        "lng": ones(1, D), "lnb": zeros(1, D),
        "rw1": nrm((D, Hh)), "rb1": nrm((1, Hh)),
        "rw2": nrm((Hh, pred_len * n_action)), "rb2": nrm((1, pred_len * n_action)),
    }


# ---------------------------- host-side operand packing -----------------------------

def _pack_rows(items, width):
    """Stack 2D arrays into one (rows, width) f32 slab; each item 8-row aligned."""
    offs, blocks, row = {}, [], 0
    for name, arr in items:
        a = np.asarray(arr, np.float32)
        if a.ndim == 1:
            a = a.reshape(1, -1)
        r, c = a.shape
        assert c <= width, (name, c, width)
        rp = ((r + 7) // 8) * 8
        blk = np.zeros((rp, width), np.float32)
        blk[:r, :c] = a
        offs[name] = (row, r, c)
        blocks.append(blk)
        row += rp
    return np.concatenate(blocks, axis=0), offs


# ------------------------------------ kernel ----------------------------------------

def _make_kernel(BB, T, L, D, NH, NL, S, SP, m_off, l_off):
    TL = T * L

    def kernel(x_ref, misc_ref, layers_ref, out_ref):
        f32 = jnp.float32

        def mget(name):
            off, r, c = m_off[name]
            return misc_ref[off:off + r, 0:c]

        # ---- PatchEmbedding on all BB*T action rows at once ------------------------
        xa = x_ref[...]                                                    # (BB*T, L)
        emb = jnp.dot(xa, mget("pe_w"), preferred_element_type=f32) + mget("pe_b")
        emb = _ln_core(emb) * mget("pe_g") + mget("pe_be")
        emb = emb + mget("posact")                                         # + pos enc.

        # ---- per-batch token layout: [actions(T) | cls | registers | pad] ----------
        tail = mget("tail")                                                # (SP-T, D)
        pieces = []
        for b in range(BB):
            pieces.append(emb[b * T:(b + 1) * T, :])
            pieces.append(tail)
        seq = jnp.concatenate(pieces, axis=0)                              # (BB*SP, D)

        mask_v = mget("mask_v")        # (NH*SP, D)   0/1 head selector
        seg_ones = mget("seg_ones")    # (NH*SP, NH*SP) block-diag ones (segment sums)
        key_bias = mget("key_bias")    # (1, NH*SP)   -1e30 on padded key columns

        # ---- pre-norm encoder layers (dropout = eval-mode identity) -----------------
        for i in range(NL):
            def lget(name, _i=i):
                off, r, c = l_off[name]
                return layers_ref[_i, off:off + r, 0:c]

            # n1 affine + 1/sqrt(HD) scale are folded into wqkv/bqkv host-side.
            y = _ln_core(seq)
            qkv = jnp.dot(y, lget("wqkv"), preferred_element_type=f32) + lget("bqkv")
            q = qkv[:, 0:D]
            k = qkv[:, D:2 * D]
            v = qkv[:, 2 * D:3 * D]

            ctx_rows = []
            for b in range(BB):
                qb = q[b * SP:(b + 1) * SP, :]
                kb = k[b * SP:(b + 1) * SP, :]
                vb = v[b * SP:(b + 1) * SP, :]
                # block-diagonal per-head layout along the lane axis
                kt = jnp.concatenate([kb] * NH, axis=0) * mask_v           # (NH*SP, D)
                s = jnp.einsum("qd,ed->qe", qb, kt,
                               preferred_element_type=f32) + key_bias      # (SP, NH*SP)
                # global per-row max is a valid shift for every head segment
                # (keeps exp in range; see review correctness note).
                s = s - jnp.max(s, axis=-1, keepdims=True)
                p = jnp.exp(s)
                den = jnp.dot(p, seg_ones, preferred_element_type=f32)     # segment sums
                p = p * pl.reciprocal(den + 1e-30, approx=True)
                vt = jnp.concatenate([vb] * NH, axis=0) * mask_v           # (NH*SP, D)
                ctx_rows.append(jnp.dot(p, vt, preferred_element_type=f32))
            ctx = jnp.concatenate(ctx_rows, axis=0)                        # (BB*SP, D)
            seq = seq + jnp.dot(ctx, lget("wo"), preferred_element_type=f32) + lget("ob")

            # n2 affine folded into fw1/fb1 host-side.
            y = _ln_core(seq)
            f = jnp.dot(y, lget("fw1"), preferred_element_type=f32) + lget("fb1")
            f = _gelu_kernel(f)
            seq = seq + jnp.dot(f, lget("fw2"), preferred_element_type=f32) + lget("fb2")

        # ---- final LayerNorm on CLS rows + RegressionHead ---------------------------
        cls_rows = jnp.dot(mget("sel_cls"), seq, preferred_element_type=f32)  # (BB, D)
        clsn = _ln_core(cls_rows) * mget("lng") + mget("lnb")
        r = jnp.dot(clsn, mget("rw1"), preferred_element_type=f32) + mget("rb1")
        r = jnp.where(r >= 0.0, r, 0.01 * r)                               # LeakyReLU(0.01)
        r = jnp.dot(r, mget("rw2"), preferred_element_type=f32) + mget("rb2")  # (BB, TL)

        # ---- 'xy' epilogue: cumsum on lanes {0,1}, per-step L2-normalize the rest ----
        xy = jnp.dot(r, mget("mcum"), preferred_element_type=f32)
        ss = jnp.dot(r * r, mget("grest"), preferred_element_type=f32)
        inv = jnp.minimum(jax.lax.rsqrt(jnp.maximum(ss, 1e-30)), 1e12)     # ~1/max(norm,1e-12)
        traj = xy + (r * mget("rmask")) * inv                              # (BB, TL)

        # single lane-dense store: [cls | trajectory]
        out_ref[...] = jnp.concatenate([clsn, traj], axis=-1)              # (BB, D+TL)

    return kernel


# ------------------------------------ wrapper ----------------------------------------

def transformer_forward(params, x, cfg):
    B, T, L = map(int, x.shape)
    D = cfg["d_model"]; NH = cfg["n_head"]; NL = cfg["n_layers"]; NREG = cfg["n_registers"]
    HD = D // NH
    S = T + 1 + NREG
    SP = ((S + 7) // 8) * 8            # padded sequence length (13 -> 16)
    TL = T * L
    # Fold the whole (small) batch into one grid step; the model is overhead-bound.
    # (On v7x with larger B, set BB = B // 2 so the batch shards across both TCs.)
    BB = B
    scale = 1.0 / math.sqrt(HD)

    p = {k: np.asarray(v, np.float32) for k, v in params.items()}

    # ---- one-time host-side weight folding ------------------------------------------
    # fold pre-attention LayerNorm affine + attention scale into fused QKV projection
    wqkv = p["n1g"].reshape(NL, D, 1) * p["wqkv"]
    bqkv = p["bqkv"] + np.einsum("lxd,lde->lxe", p["n1b"], p["wqkv"])
    wqkv[:, :, :D] *= scale
    bqkv[:, :, :D] *= scale
    # fold pre-FFN LayerNorm affine into the first FFN matmul
    fw1 = p["n2g"].reshape(NL, D, 1) * p["fw1"]
    fb1 = p["fb1"] + np.einsum("lxd,ldh->lxh", p["n2b"], p["fw1"])

    # ---- constant tables -------------------------------------------------------------
    posact = np.tile(p["pos"][1:1 + T], (BB, 1))                    # pos for action rows
    tail = np.zeros((SP - T, D), np.float32)                        # [cls | regs | pad]
    tail[0] = p["cls_tok"][0] + p["pos"][0]
    tail[1:1 + NREG] = p["reg_tok"] + p["pos"][1 + T:1 + T + NREG]

    mask_v = np.zeros((NH * SP, D), np.float32)                     # head selector
    for h in range(NH):
        mask_v[h * SP:(h + 1) * SP, h * HD:(h + 1) * HD] = 1.0
    seg_ones = np.kron(np.eye(NH, dtype=np.float32),
                       np.ones((SP, SP), np.float32))               # segment-sum matrix
    key_bias = np.zeros((1, NH * SP), np.float32)
    for h in range(NH):
        key_bias[0, h * SP + S:(h + 1) * SP] = NEG                  # mask padded keys
    sel_cls = np.zeros((BB, BB * SP), np.float32)                   # CLS row selector
    for b in range(BB):
        sel_cls[b, b * SP + T] = 1.0

    lane = np.arange(TL)
    t_i, l_i = lane // L, lane % L
    mcum = ((l_i[:, None] == l_i[None, :]) & (l_i[None, :] < 2)
            & (t_i[:, None] <= t_i[None, :])).astype(np.float32)    # time cumsum selector
    grest = ((l_i[:, None] >= 2) & (l_i[None, :] >= 2)
             & (t_i[:, None] == t_i[None, :])).astype(np.float32)   # per-step sum-of-squares
    rmask = (l_i >= 2).astype(np.float32)[None, :]

    # ---- pack everything into two slabs ----------------------------------------------
    WM = max(64, NH * SP, cfg["d_hidden"])
    misc, m_off = _pack_rows([
        ("pe_w", p["pe_w"]), ("pe_b", p["pe_b"]), ("pe_g", p["pe_g"]), ("pe_be", p["pe_be"]),
        ("posact", posact), ("tail", tail),
        ("mask_v", mask_v), ("seg_ones", seg_ones), ("key_bias", key_bias),
        ("sel_cls", sel_cls),
        ("lng", p["lng"]), ("lnb", p["lnb"]),
        ("rw1", p["rw1"]), ("rb1", p["rb1"]), ("rw2", p["rw2"]), ("rb2", p["rb2"]),
        ("mcum", mcum), ("grest", grest), ("rmask", rmask),
    ], WM)

    WL = 3 * D
    layer_stack, l_off = [], None
    for i in range(NL):
        slab, l_off = _pack_rows([
            ("wqkv", wqkv[i]), ("bqkv", bqkv[i]),
            ("wo", p["wo"][i]), ("ob", p["ob"][i]),
            ("fw1", fw1[i]), ("fb1", fb1[i]),
            ("fw2", p["fw2"][i]), ("fb2", p["fb2"][i]),
        ], WL)
        layer_stack.append(slab)
    layers = np.stack(layer_stack, axis=0)                          # (NL, RL, 3D)

    # ---- pallas call -------------------------------------------------------------------
    kernel = _make_kernel(BB, T, L, D, NH, NL, S, SP, m_off, l_off)
    x2d = x.reshape(B * T, L)
    out = pl.pallas_call(
        kernel,
        grid=(B // BB,),
        in_specs=[
            pl.BlockSpec((BB * T, L), lambda c: (c, 0)),
            pl.BlockSpec(misc.shape, lambda c: (0, 0)),
            pl.BlockSpec(layers.shape, lambda c: (0, 0, 0)),
        ],
        out_specs=pl.BlockSpec((BB, D + TL), lambda c: (c, 0)),
        out_shape=jax.ShapeDtypeStruct((B, D + TL), jnp.float32),
        compiler_params=pltpu.CompilerParams(dimension_semantics=("parallel",)),
    )(x2d, jnp.asarray(misc), jnp.asarray(layers))

    return out[:, :D], out[:, D:].reshape(B, T, L)


# ------------------------------ pure-JAX reference -----------------------------------

def ref_forward(params, x, cfg):
    B, T, L = x.shape
    D = cfg["d_model"]; NH = cfg["n_head"]; NL = cfg["n_layers"]; NREG = cfg["n_registers"]
    HD = D // NH
    scale = 1.0 / math.sqrt(HD)
    hi = jax.lax.Precision.HIGHEST
    p = params

    h = jnp.einsum("btl,ld->btd", x, p["pe_w"], precision=hi) + p["pe_b"]
    h = _layernorm(h, p["pe_g"], p["pe_be"])
    cls_b = jnp.broadcast_to(p["cls_tok"], (B, 1, D))
    reg_b = jnp.broadcast_to(p["reg_tok"], (B, NREG, D))
    seq = jnp.concatenate([cls_b, h, reg_b], axis=1) + p["pos"]
    S = seq.shape[1]

    for i in range(NL):
        y = _layernorm(seq, p["n1g"][i], p["n1b"][i])
        qkv = jnp.einsum("bsd,de->bse", y, p["wqkv"][i], precision=hi) + p["bqkv"][i]
        q = qkv[..., 0:D].reshape(B, S, NH, HD)
        k = qkv[..., D:2 * D].reshape(B, S, NH, HD)
        v = qkv[..., 2 * D:3 * D].reshape(B, S, NH, HD)
        s = jnp.einsum("bqhe,bkhe->bhqk", q, k, precision=hi) * scale
        w = jax.nn.softmax(s, axis=-1)
        o = jnp.einsum("bhqk,bkhe->bqhe", w, v, precision=hi).reshape(B, S, D)
        seq = seq + jnp.einsum("bsd,de->bse", o, p["wo"][i], precision=hi) + p["ob"][i]

        y = _layernorm(seq, p["n2g"][i], p["n2b"][i])
        f = jnp.einsum("bsd,dh->bsh", y, p["fw1"][i], precision=hi) + p["fb1"][i]
        f = _gelu_exact(f)
        f = jnp.einsum("bsh,hd->bsd", f, p["fw2"][i], precision=hi) + p["fb2"][i]
        seq = seq + f

    clsn = _layernorm(seq[:, 0, :], p["lng"], p["lnb"])
    r = jnp.dot(clsn, p["rw1"], precision=hi) + p["rb1"]
    r = jnp.where(r >= 0.0, r, 0.01 * r)
    r = jnp.dot(r, p["rw2"], precision=hi) + p["rb2"]
    out = r.reshape(B, T, L)
    xy = jnp.cumsum(out[:, :, :2], axis=1)
    if L > 2:
        rest = out[:, :, 2:]
        nrm_v = jnp.sqrt(jnp.sum(rest * rest, axis=-1, keepdims=True))
        rest = rest / jnp.maximum(nrm_v, 1e-12)
        out = jnp.concatenate([xy, rest], axis=-1)
    else:
        out = xy
    return clsn, out


# ------------------------------------- main ------------------------------------------

if __name__ == "__main__":
    cfg = dict(n_layers=2, d_model=32, n_head=4, n_action=4, d_hidden=64,
               pred_len=8, n_registers=4)
    key = jax.random.PRNGKey(0)
    kp, kx = jax.random.split(key)
    params = init_params(kp, **cfg)

    B = 2
    x = jax.random.normal(kx, (B, cfg["pred_len"], cfg["n_action"]), dtype=jnp.float32)

    cls_out, traj_out = transformer_forward(params, x, cfg)
    jax.block_until_ready((cls_out, traj_out))

    cls_ref, traj_ref = ref_forward(params, x, cfg)
    np.testing.assert_allclose(np.asarray(cls_out), np.asarray(cls_ref), rtol=5e-3, atol=5e-3)
    np.testing.assert_allclose(np.asarray(traj_out), np.asarray(traj_ref), rtol=5e-3, atol=5e-3)
    assert cls_out.shape == (B, cfg["d_model"])
    assert traj_out.shape == (B, cfg["pred_len"], cfg["n_action"])
    print("KERNEL_OK")
</pallas_src>

<mosaic_0001>
module attributes {stable_mosaic.version = 11 : i64} {
  func.func @kernel(%arg0: i32, %arg1: memref<16x4xf32, #tpu.memory_space<vmem>>, %arg2: memref<400x64xf32, #tpu.memory_space<vmem>>, %arg3: memref<2x192x96xf32, #tpu.memory_space<vmem>>, %arg4: memref<2x64xf32, #tpu.memory_space<vmem>>) attributes {dimension_semantics = [#tpu.dimension_semantics<parallel>], iteration_bounds = array<i64: 1>, scalar_prefetch = 0 : i64, scratch_operands = 0 : i64, tpu.core_type = #tpu.core_type<tc>, window_params = [{transform_indices = @transform_0, window_bounds = array<i64: 16, 4>}, {pipeline_mode = #tpu.pipeline_mode<synchronous>, transform_indices = @transform_1, window_bounds = array<i64: 400, 64>}, {pipeline_mode = #tpu.pipeline_mode<synchronous>, transform_indices = @transform_2, window_bounds = array<i64: 2, 192, 96>}, {transform_indices = @transform_3, window_bounds = array<i64: 2, 64>}]} {
    %c0 = arith.constant 0 : index
    %c0_0 = arith.constant 0 : index
    %0 = vector.load %arg1[%c0, %c0_0] : memref<16x4xf32, #tpu.memory_space<vmem>>, vector<16x4xf32>
    %c0_1 = arith.constant 0 : index
    %c0_2 = arith.constant 0 : index
    %1 = vector.load %arg2[%c0_1, %c0_2] : memref<400x64xf32, #tpu.memory_space<vmem>>, vector<4x32xf32>
    %cst = arith.constant dense<0.000000e+00> : vector<16x32xf32>
    %2 = tpu.matmul %0, %1, %cst {dimension_numbers = #tpu.dot_dimension_numbers<[1], [0], [0], [1], [0, 0, 1, 1], [], []>} : vector<16x4xf32>, vector<4x32xf32>, vector<16x32xf32> -> vector<16x32xf32>
    %c8 = arith.constant 8 : index
    %c0_3 = arith.constant 0 : index
    %3 = vector.load %arg2[%c8, %c0_3] : memref<400x64xf32, #tpu.memory_space<vmem>>, vector<1x32xf32>
    %4 = vector.broadcast %3 : vector<1x32xf32> to vector<16x32xf32>
    %5 = arith.addf %2, %4 : vector<16x32xf32>
    %cst_4 = arith.constant dense<0.000000e+00> : vector<16xf32>
    %6 = vector.multi_reduction <add>, %5, %cst_4 [1] : vector<16x32xf32> to vector<16xf32>
    %7 = vector.shape_cast %6 : vector<16xf32> to vector<16x1xf32>
    %cst_5 = arith.constant 3.200000e+01 : f32
    %8 = vector.broadcast %cst_5 : f32 to vector<16x1xf32>
    %9 = arith.divf %7, %8 : vector<16x1xf32>
    %10 = vector.broadcast %9 : vector<16x1xf32> to vector<16x32xf32>
    %11 = arith.subf %5, %10 : vector<16x32xf32>
    %12 = arith.mulf %11, %11 : vector<16x32xf32>
    %cst_6 = arith.constant dense<0.000000e+00> : vector<16xf32>
    %13 = vector.multi_reduction <add>, %12, %cst_6 [1] : vector<16x32xf32> to vector<16xf32>
    %14 = vector.shape_cast %13 : vector<16xf32> to vector<16x1xf32>
    %cst_7 = arith.constant 3.200000e+01 : f32
    %15 = vector.broadcast %cst_7 : f32 to vector<16x1xf32>
    %16 = arith.divf %14, %15 : vector<16x1xf32>
    %cst_8 = arith.constant 9.99999974E-6 : f32
    %17 = vector.broadcast %cst_8 : f32 to vector<16x1xf32>
    %18 = arith.addf %16, %17 : vector<16x1xf32>
    %19 = math.rsqrt %18 : vector<16x1xf32>
    %20 = vector.broadcast %19 : vector<16x1xf32> to vector<16x32xf32>
    %21 = arith.mulf %11, %20 : vector<16x32xf32>
    %c16 = arith.constant 16 : index
    %c0_9 = arith.constant 0 : index
    %22 = vector.load %arg2[%c16, %c0_9] : memref<400x64xf32, #tpu.memory_space<vmem>>, vector<1x32xf32>
    %23 = vector.broadcast %22 : vector<1x32xf32> to vector<16x32xf32>
    %24 = arith.mulf %21, %23 : vector<16x32xf32>
    %c24 = arith.constant 24 : index
    %c0_10 = arith.constant 0 : index
    %25 = vector.load %arg2[%c24, %c0_10] : memref<400x64xf32, #tpu.memory_space<vmem>>, vector<1x32xf32>
    %26 = vector.broadcast %25 : vector<1x32xf32> to vector<16x32xf32>
    %27 = arith.addf %24, %26 : vector<16x32xf32>
    %c32 = arith.constant 32 : index
    %c0_11 = arith.constant 0 : index
    %28 = vector.load %arg2[%c32, %c0_11] : memref<400x64xf32, #tpu.memory_space<vmem>>, vector<16x32xf32>
    %29 = arith.addf %27, %28 : vector<16x32xf32>
    %c48 = arith.constant 48 : index
    %c0_12 = arith.constant 0 : index
    %30 = vector.load %arg2[%c48, %c0_12] : memref<400x64xf32, #tpu.memory_space<vmem>>, vector<8x32xf32>
    %31 = vector.extract_strided_slice %29 {offsets = [0, 0], sizes = [8, 32], strides = [1, 1]} : vector<16x32xf32> to vector<8x32xf32>
    %32 = vector.extract_strided_slice %29 {offsets = [8, 0], sizes = [8, 32], strides = [1, 1]} : vector<16x32xf32> to vector<8x32xf32>
    %33 = tpu.concatenate %31, %30, %32, %30 in 0 : vector<8x32xf32>, vector<8x32xf32>, vector<8x32xf32>, vector<8x32xf32> -> vector<32x32xf32>
    %c56 = arith.constant 56 : index
    %c0_13 = arith.constant 0 : index
    %34 = vector.load %arg2[%c56, %c0_13] : memref<400x64xf32, #tpu.memory_space<vmem>>, vector<64x32xf32>
    %c120 = arith.constant 120 : index
    %c0_14 = arith.constant 0 : index
    %35 = vector.load %arg2[%c120, %c0_14] : memref<400x64xf32, #tpu.memory_space<vmem>>, vector<64x64xf32>
    %c184 = arith.constant 184 : index
    %c0_15 = arith.constant 0 : index
    %36 = vector.load %arg2[%c184, %c0_15] : memref<400x64xf32, #tpu.memory_space<vmem>>, vector<1x64xf32>
    %cst_16 = arith.constant dense<0.000000e+00> : vector<32xf32>
    %37 = vector.multi_reduction <add>, %33, %cst_16 [1] : vector<32x32xf32> to vector<32xf32>
    %38 = vector.shape_cast %37 : vector<32xf32> to vector<32x1xf32>
    %cst_17 = arith.constant 3.200000e+01 : f32
    %39 = vector.broadcast %cst_17 : f32 to vector<32x1xf32>
    %40 = arith.divf %38, %39 : vector<32x1xf32>
    %41 = vector.broadcast %40 : vector<32x1xf32> to vector<32x32xf32>
    %42 = arith.subf %33, %41 : vector<32x32xf32>
    %43 = arith.mulf %42, %42 : vector<32x32xf32>
    %cst_18 = arith.constant dense<0.000000e+00> : vector<32xf32>
    %44 = vector.multi_reduction <add>, %43, %cst_18 [1] : vector<32x32xf32> to vector<32xf32>
    %45 = vector.shape_cast %44 : vector<32xf32> to vector<32x1xf32>
    %cst_19 = arith.constant 3.200000e+01 : f32
    %46 = vector.broadcast %cst_19 : f32 to vector<32x1xf32>
    %47 = arith.divf %45, %46 : vector<32x1xf32>
    %cst_20 = arith.constant 9.99999974E-6 : f32
    %48 = vector.broadcast %cst_20 : f32 to vector<32x1xf32>
    %49 = arith.addf %47, %48 : vector<32x1xf32>
    %50 = math.rsqrt %49 : vector<32x1xf32>
    %51 = vector.broadcast %50 : vector<32x1xf32> to vector<32x32xf32>
    %52 = arith.mulf %42, %51 : vector<32x32xf32>
    %c0_21 = arith.constant 0 : index
    %c0_22 = arith.constant 0 : index
    %c0_23 = arith.constant 0 : index
    %53 = vector.load %arg3[%c0_21, %c0_22, %c0_23] : memref<2x192x96xf32, #tpu.memory_space<vmem>>, vector<1x32x96xf32>
    %54 = vector.shape_cast %53 : vector<1x32x96xf32> to vector<32x96xf32>
    %cst_24 = arith.constant dense<0.000000e+00> : vector<32x96xf32>
    %55 = tpu.matmul %52, %54, %cst_24 {dimension_numbers = #tpu.dot_dimension_numbers<[1], [0], [0], [1], [0, 0, 1, 1], [], []>} : vector<32x32xf32>, vector<32x96xf32>, vector<32x96xf32> -> vector<32x96xf32>
    %c0_25 = arith.constant 0 : index
    %c32_26 = arith.constant 32 : index
    %c0_27 = arith.constant 0 : index
    %56 = vector.load %arg3[%c0_25, %c32_26, %c0_27] : memref<2x192x96xf32, #tpu.memory_space<vmem>>, vector<1x1x96xf32>
    %57 = vector.shape_cast %56 : vector<1x1x96xf32> to vector<1x96xf32>
    %58 = vector.broadcast %57 : vector<1x96xf32> to vector<32x96xf32>
    %59 = arith.addf %55, %58 : vector<32x96xf32>
    %60 = vector.extract_strided_slice %59 {offsets = [0, 0], sizes = [32, 32], strides = [1, 1]} : vector<32x96xf32> to vector<32x32xf32>
    %61 = vector.extract_strided_slice %59 {offsets = [0, 32], sizes = [32, 32], strides = [1, 1]} : vector<32x96xf32> to vector<32x32xf32>
    %62 = vector.extract_strided_slice %59 {offsets = [0, 64], sizes = [32, 32], strides = [1, 1]} : vector<32x96xf32> to vector<32x32xf32>
    %63 = vector.extract_strided_slice %60 {offsets = [0, 0], sizes = [16, 32], strides = [1, 1]} : vector<32x32xf32> to vector<16x32xf32>
    %64 = vector.extract_strided_slice %61 {offsets = [0, 0], sizes = [16, 32], strides = [1, 1]} : vector<32x32xf32> to vector<16x32xf32>
    %65 = vector.extract_strided_slice %62 {offsets = [0, 0], sizes = [16, 32], strides = [1, 1]} : vector<32x32xf32> to vector<16x32xf32>
    %66 = tpu.concatenate %64, %64, %64, %64 in 0 : vector<16x32xf32>, vector<16x32xf32>, vector<16x32xf32>, vector<16x32xf32> -> vector<64x32xf32>
    %67 = arith.mulf %66, %34 : vector<64x32xf32>
    "tpu.trace_start"() <{level = 10 : i32, message = "qd,ed->qe"}> : () -> ()
    %cst_28 = arith.constant dense<0.000000e+00> : vector<16x64xf32>
    %68 = tpu.matmul %63, %67, %cst_28 {dimension_numbers = #tpu.dot_dimension_numbers<[1], [1], [0], [0], [0, 0, 1, 0], [], []>} : vector<16x32xf32>, vector<64x32xf32>, vector<16x64xf32> -> vector<16x64xf32>
    "tpu.trace_stop"() : () -> ()
    %69 = vector.broadcast %36 : vector<1x64xf32> to vector<16x64xf32>
    %70 = arith.addf %68, %69 : vector<16x64xf32>
    %cst_29 = arith.constant dense<0xFF800000> : vector<16xf32>
    %71 = vector.multi_reduction <maximumf>, %70, %cst_29 [1] : vector<16x64xf32> to vector<16xf32>
    %72 = vector.shape_cast %71 : vector<16xf32> to vector<16x1xf32>
    %73 = vector.broadcast %72 : vector<16x1xf32> to vector<16x64xf32>
    %74 = arith.subf %70, %73 : vector<16x64xf32>
    %75 = math.exp %74 : vector<16x64xf32>
    %cst_30 = arith.constant dense<0.000000e+00> : vector<16x64xf32>
    %76 = tpu.matmul %75, %35, %cst_30 {dimension_numbers = #tpu.dot_dimension_numbers<[1], [0], [0], [1], [0, 0, 1, 1], [], []>} : vector<16x64xf32>, vector<64x64xf32>, vector<16x64xf32> -> vector<16x64xf32>
    %cst_31 = arith.constant 1.000000e-30 : f32
    %77 = vector.broadcast %cst_31 : f32 to vector<16x64xf32>
    %78 = arith.addf %76, %77 : vector<16x64xf32>
    %79 = tpu.reciprocal %78 {approx = true} : vector<16x64xf32> -> vector<16x64xf32>
    %80 = arith.mulf %75, %79 : vector<16x64xf32>
    %81 = tpu.concatenate %65, %65, %65, %65 in 0 : vector<16x32xf32>, vector<16x32xf32>, vector<16x32xf32>, vector<16x32xf32> -> vector<64x32xf32>
    %82 = arith.mulf %81, %34 : vector<64x32xf32>
    %cst_32 = arith.constant dense<0.000000e+00> : vector<16x32xf32>
    %83 = tpu.matmul %80, %82, %cst_32 {dimension_numbers = #tpu.dot_dimension_numbers<[1], [0], [0], [1], [0, 0, 1, 1], [], []>} : vector<16x64xf32>, vector<64x32xf32>, vector<16x32xf32> -> vector<16x32xf32>
    %84 = vector.extract_strided_slice %60 {offsets = [16, 0], sizes = [16, 32], strides = [1, 1]} : vector<32x32xf32> to vector<16x32xf32>
    %85 = vector.extract_strided_slice %61 {offsets = [16, 0], sizes = [16, 32], strides = [1, 1]} : vector<32x32xf32> to vector<16x32xf32>
    %86 = vector.extract_strided_slice %62 {offsets = [16, 0], sizes = [16, 32], strides = [1, 1]} : vector<32x32xf32> to vector<16x32xf32>
    %87 = tpu.concatenate %85, %85, %85, %85 in 0 : vector<16x32xf32>, vector<16x32xf32>, vector<16x32xf32>, vector<16x32xf32> -> vector<64x32xf32>
    %88 = arith.mulf %87, %34 : vector<64x32xf32>
    "tpu.trace_start"() <{level = 10 : i32, message = "qd,ed->qe"}> : () -> ()
    %cst_33 = arith.constant dense<0.000000e+00> : vector<16x64xf32>
    %89 = tpu.matmul %84, %88, %cst_33 {dimension_numbers = #tpu.dot_dimension_numbers<[1], [1], [0], [0], [0, 0, 1, 0], [], []>} : vector<16x32xf32>, vector<64x32xf32>, vector<16x64xf32> -> vector<16x64xf32>
    "tpu.trace_stop"() : () -> ()
    %90 = vector.broadcast %36 : vector<1x64xf32> to vector<16x64xf32>
    %91 = arith.addf %89, %90 : vector<16x64xf32>
    %cst_34 = arith.constant dense<0xFF800000> : vector<16xf32>
    %92 = vector.multi_reduction <maximumf>, %91, %cst_34 [1] : vector<16x64xf32> to vector<16xf32>
    %93 = vector.shape_cast %92 : vector<16xf32> to vector<16x1xf32>
    %94 = vector.broadcast %93 : vector<16x1xf32> to vector<16x64xf32>
    %95 = arith.subf %91, %94 : vector<16x64xf32>
    %96 = math.exp %95 : vector<16x64xf32>
    %cst_35 = arith.constant dense<0.000000e+00> : vector<16x64xf32>
    %97 = tpu.matmul %96, %35, %cst_35 {dimension_numbers = #tpu.dot_dimension_numbers<[1], [0], [0], [1], [0, 0, 1, 1], [], []>} : vector<16x64xf32>, vector<64x64xf32>, vector<16x64xf32> -> vector<16x64xf32>
    %cst_36 = arith.constant 1.000000e-30 : f32
    %98 = vector.broadcast %cst_36 : f32 to vector<16x64xf32>
    %99 = arith.addf %97, %98 : vector<16x64xf32>
    %100 = tpu.reciprocal %99 {approx = true} : vector<16x64xf32> -> vector<16x64xf32>
    %101 = arith.mulf %96, %100 : vector<16x64xf32>
    %102 = tpu.concatenate %86, %86, %86, %86 in 0 : vector<16x32xf32>, vector<16x32xf32>, vector<16x32xf32>, vector<16x32xf32> -> vector<64x32xf32>
    %103 = arith.mulf %102, %34 : vector<64x32xf32>
    %cst_37 = arith.constant dense<0.000000e+00> : vector<16x32xf32>
    %104 = tpu.matmul %101, %103, %cst_37 {dimension_numbers = #tpu.dot_dimension_numbers<[1], [0], [0], [1], [0, 0, 1, 1], [], []>} : vector<16x64xf32>, vector<64x32xf32>, vector<16x32xf32> -> vector<16x32xf32>
    %105 = tpu.concatenate %83, %104 in 0 : vector<16x32xf32>, vector<16x32xf32> -> vector<32x32xf32>
    %c0_38 = arith.constant 0 : index
    %c40 = arith.constant 40 : index
    %c0_39 = arith.constant 0 : index
    %106 = vector.load %arg3[%c0_38, %c40, %c0_39] : memref<2x192x96xf32, #tpu.memory_space<vmem>>, vector<1x32x32xf32>
    %107 = vector.shape_cast %106 : vector<1x32x32xf32> to vector<32x32xf32>
    %cst_40 = arith.constant dense<0.000000e+00> : vector<32x32xf32>
    %108 = tpu.matmul %105, %107, %cst_40 {dimension_numbers = #tpu.dot_dimension_numbers<[1], [0], [0], [1], [0, 0, 1, 1], [], []>} : vector<32x32xf32>, vector<32x32xf32>, vector<32x32xf32> -> vector<32x32xf32>
    %109 = arith.addf %33, %108 : vector<32x32xf32>
    %c0_41 = arith.constant 0 : index
    %c72 = arith.constant 72 : index
    %c0_42 = arith.constant 0 : index
    %110 = vector.load %arg3[%c0_41, %c72, %c0_42] : memref<2x192x96xf32, #tpu.memory_space<vmem>>, vector<1x1x32xf32>
    %111 = vector.shape_cast %110 : vector<1x1x32xf32> to vector<1x32xf32>
    %112 = vector.broadcast %111 : vector<1x32xf32> to vector<32x32xf32>
    %113 = arith.addf %109, %112 : vector<32x32xf32>
    %cst_43 = arith.constant dense<0.000000e+00> : vector<32xf32>
    %114 = vector.multi_reduction <add>, %113, %cst_43 [1] : vector<32x32xf32> to vector<32xf32>
    %115 = vector.shape_cast %114 : vector<32xf32> to vector<32x1xf32>
    %cst_44 = arith.constant 3.200000e+01 : f32
    %116 = vector.broadcast %cst_44 : f32 to vector<32x1xf32>
    %117 = arith.divf %115, %116 : vector<32x1xf32>
    %118 = vector.broadcast %117 : vector<32x1xf32> to vector<32x32xf32>
    %119 = arith.subf %113, %118 : vector<32x32xf32>
    %120 = arith.mulf %119, %119 : vector<32x32xf32>
    %cst_45 = arith.constant dense<0.000000e+00> : vector<32xf32>
    %121 = vector.multi_reduction <add>, %120, %cst_45 [1] : vector<32x32xf32> to vector<32xf32>
    %122 = vector.shape_cast %121 : vector<32xf32> to vector<32x1xf32>
    %cst_46 = arith.constant 3.200000e+01 : f32
    %123 = vector.broadcast %cst_46 : f32 to vector<32x1xf32>
    %124 = arith.divf %122, %123 : vector<32x1xf32>
    %cst_47 = arith.constant 9.99999974E-6 : f32
    %125 = vector.broadcast %cst_47 : f32 to vector<32x1xf32>
    %126 = arith.addf %124, %125 : vector<32x1xf32>
    %127 = math.rsqrt %126 : vector<32x1xf32>
    %128 = vector.broadcast %127 : vector<32x1xf32> to vector<32x32xf32>
    %129 = arith.mulf %119, %128 : vector<32x32xf32>
    %c0_48 = arith.constant 0 : index
    %c80 = arith.constant 80 : index
    %c0_49 = arith.constant 0 : index
    %130 = vector.load %arg3[%c0_48, %c80, %c0_49] : memref<2x192x96xf32, #tpu.memory_space<vmem>>, vector<1x32x64xf32>
    %131 = vector.shape_cast %130 : vector<1x32x64xf32> to vector<32x64xf32>
    %cst_50 = arith.constant dense<0.000000e+00> : vector<32x64xf32>
    %132 = tpu.matmul %129, %131, %cst_50 {dimension_numbers = #tpu.dot_dimension_numbers<[1], [0], [0], [1], [0, 0, 1, 1], [], []>} : vector<32x32xf32>, vector<32x64xf32>, vector<32x64xf32> -> vector<32x64xf32>
    %c0_51 = arith.constant 0 : index
    %c112 = arith.constant 112 : index
    %c0_52 = arith.constant 0 : index
    %133 = vector.load %arg3[%c0_51, %c112, %c0_52] : memref<2x192x96xf32, #tpu.memory_space<vmem>>, vector<1x1x64xf32>
    %134 = vector.shape_cast %133 : vector<1x1x64xf32> to vector<1x64xf32>
    %135 = vector.broadcast %134 : vector<1x64xf32> to vector<32x64xf32>
    %136 = arith.addf %132, %135 : vector<32x64xf32>
    %cst_53 = arith.constant 5.000000e-01 : f32
    %137 = vector.broadcast %cst_53 : f32 to vector<32x64xf32>
    %138 = arith.mulf %137, %136 : vector<32x64xf32>
    %cst_54 = arith.constant 0.707106769 : f32
    %139 = vector.broadcast %cst_54 : f32 to vector<32x64xf32>
    %140 = arith.mulf %136, %139 : vector<32x64xf32>
    %cst_55 = arith.constant 0.000000e+00 : f32
    %141 = vector.broadcast %cst_55 : f32 to vector<32x64xf32>
    %142 = arith.cmpf oge, %140, %141 : vector<32x64xf32>
    %cst_56 = arith.constant 1.000000e+00 : f32
    %cst_57 = arith.constant -1.000000e+00 : f32
    %143 = vector.broadcast %cst_56 : f32 to vector<32x64xf32>
    %144 = vector.broadcast %cst_57 : f32 to vector<32x64xf32>
    %145 = arith.select %142, %143, %144 : vector<32x64xi1>, vector<32x64xf32>
    %146 = math.absf %140 : vector<32x64xf32>
    %cst_58 = arith.constant 0.327591091 : f32
    %147 = vector.broadcast %cst_58 : f32 to vector<32x64xf32>
    %148 = arith.mulf %147, %146 : vector<32x64xf32>
    %cst_59 = arith.constant 1.000000e+00 : f32
    %149 = vector.broadcast %cst_59 : f32 to vector<32x64xf32>
    %150 = arith.addf %149, %148 : vector<32x64xf32>
    %cst_60 = arith.constant 1.000000e+00 : f32
    %151 = vector.broadcast %cst_60 : f32 to vector<32x64xf32>
    %152 = arith.divf %151, %150 : vector<32x64xf32>
    %cst_61 = arith.constant 1.06140542 : f32
    %153 = vector.broadcast %cst_61 : f32 to vector<32x64xf32>
    %154 = arith.mulf %153, %152 : vector<32x64xf32>
    %cst_62 = arith.constant -1.45315206 : f32
    %155 = vector.broadcast %cst_62 : f32 to vector<32x64xf32>
    %156 = arith.addf %154, %155 : vector<32x64xf32>
    %157 = arith.mulf %156, %152 : vector<32x64xf32>
    %cst_63 = arith.constant 1.42141378 : f32
    %158 = vector.broadcast %cst_63 : f32 to vector<32x64xf32>
    %159 = arith.addf %157, %158 : vector<32x64xf32>
    %160 = arith.mulf %159, %152 : vector<32x64xf32>
    %cst_64 = arith.constant -0.284496725 : f32
    %161 = vector.broadcast %cst_64 : f32 to vector<32x64xf32>
    %162 = arith.addf %160, %161 : vector<32x64xf32>
    %163 = arith.mulf %162, %152 : vector<32x64xf32>
    %cst_65 = arith.constant 0.254829586 : f32
    %164 = vector.broadcast %cst_65 : f32 to vector<32x64xf32>
    %165 = arith.addf %163, %164 : vector<32x64xf32>
    %166 = arith.mulf %165, %152 : vector<32x64xf32>
    %cst_66 = arith.constant 0.000000e+00 : f32
    %167 = vector.broadcast %cst_66 : f32 to vector<32x64xf32>
    %168 = arith.subf %167, %146 : vector<32x64xf32>
    %169 = arith.mulf %168, %146 : vector<32x64xf32>
    %170 = math.exp %169 : vector<32x64xf32>
    %171 = arith.mulf %166, %170 : vector<32x64xf32>
    %cst_67 = arith.constant 1.000000e+00 : f32
    %172 = vector.broadcast %cst_67 : f32 to vector<32x64xf32>
    %173 = arith.subf %172, %171 : vector<32x64xf32>
    %174 = arith.mulf %145, %173 : vector<32x64xf32>
    %cst_68 = arith.constant 1.000000e+00 : f32
    %175 = vector.broadcast %cst_68 : f32 to vector<32x64xf32>
    %176 = arith.addf %175, %174 : vector<32x64xf32>
    %177 = arith.mulf %138, %176 : vector<32x64xf32>
    %c0_69 = arith.constant 0 : index
    %c120_70 = arith.constant 120 : index
    %c0_71 = arith.constant 0 : index
    %178 = vector.load %arg3[%c0_69, %c120_70, %c0_71] : memref<2x192x96xf32, #tpu.memory_space<vmem>>, vector<1x64x32xf32>
    %179 = vector.shape_cast %178 : vector<1x64x32xf32> to vector<64x32xf32>
    %cst_72 = arith.constant dense<0.000000e+00> : vector<32x32xf32>
    %180 = tpu.matmul %177, %179, %cst_72 {dimension_numbers = #tpu.dot_dimension_numbers<[1], [0], [0], [1], [0, 0, 1, 1], [], []>} : vector<32x64xf32>, vector<64x32xf32>, vector<32x32xf32> -> vector<32x32xf32>
    %181 = arith.addf %113, %180 : vector<32x32xf32>
    %c0_73 = arith.constant 0 : index
    %c184_74 = arith.constant 184 : index
    %c0_75 = arith.constant 0 : index
    %182 = vector.load %arg3[%c0_73, %c184_74, %c0_75] : memref<2x192x96xf32, #tpu.memory_space<vmem>>, vector<1x1x32xf32>
    %183 = vector.shape_cast %182 : vector<1x1x32xf32> to vector<1x32xf32>
    %184 = vector.broadcast %183 : vector<1x32xf32> to vector<32x32xf32>
    %185 = arith.addf %181, %184 : vector<32x32xf32>
    %cst_76 = arith.constant dense<0.000000e+00> : vector<32xf32>
    %186 = vector.multi_reduction <add>, %185, %cst_76 [1] : vector<32x32xf32> to vector<32xf32>
    %187 = vector.shape_cast %186 : vector<32xf32> to vector<32x1xf32>
    %cst_77 = arith.constant 3.200000e+01 : f32
    %188 = vector.broadcast %cst_77 : f32 to vector<32x1xf32>
    %189 = arith.divf %187, %188 : vector<32x1xf32>
    %190 = vector.broadcast %189 : vector<32x1xf32> to vector<32x32xf32>
    %191 = arith.subf %185, %190 : vector<32x32xf32>
    %192 = arith.mulf %191, %191 : vector<32x32xf32>
    %cst_78 = arith.constant dense<0.000000e+00> : vector<32xf32>
    %193 = vector.multi_reduction <add>, %192, %cst_78 [1] : vector<32x32xf32> to vector<32xf32>
    %194 = vector.shape_cast %193 : vector<32xf32> to vector<32x1xf32>
    %cst_79 = arith.constant 3.200000e+01 : f32
    %195 = vector.broadcast %cst_79 : f32 to vector<32x1xf32>
    %196 = arith.divf %194, %195 : vector<32x1xf32>
    %cst_80 = arith.constant 9.99999974E-6 : f32
    %197 = vector.broadcast %cst_80 : f32 to vector<32x1xf32>
    %198 = arith.addf %196, %197 : vector<32x1xf32>
    %199 = math.rsqrt %198 : vector<32x1xf32>
    %200 = vector.broadcast %199 : vector<32x1xf32> to vector<32x32xf32>
    %201 = arith.mulf %191, %200 : vector<32x32xf32>
    %c1 = arith.constant 1 : index
    %c0_81 = arith.constant 0 : index
    %c0_82 = arith.constant 0 : index
    %202 = vector.load %arg3[%c1, %c0_81, %c0_82] : memref<2x192x96xf32, #tpu.memory_space<vmem>>, vector<1x32x96xf32>
    %203 = vector.shape_cast %202 : vector<1x32x96xf32> to vector<32x96xf32>
    %cst_83 = arith.constant dense<0.000000e+00> : vector<32x96xf32>
    %204 = tpu.matmul %201, %203, %cst_83 {dimension_numbers = #tpu.dot_dimension_numbers<[1], [0], [0], [1], [0, 0, 1, 1], [], []>} : vector<32x32xf32>, vector<32x96xf32>, vector<32x96xf32> -> vector<32x96xf32>
    %c1_84 = arith.constant 1 : index
    %c32_85 = arith.constant 32 : index
    %c0_86 = arith.constant 0 : index
    %205 = vector.load %arg3[%c1_84, %c32_85, %c0_86] : memref<2x192x96xf32, #tpu.memory_space<vmem>>, vector<1x1x96xf32>
    %206 = vector.shape_cast %205 : vector<1x1x96xf32> to vector<1x96xf32>
    %207 = vector.broadcast %206 : vector<1x96xf32> to vector<32x96xf32>
    %208 = arith.addf %204, %207 : vector<32x96xf32>
    %209 = vector.extract_strided_slice %208 {offsets = [0, 0], sizes = [32, 32], strides = [1, 1]} : vector<32x96xf32> to vector<32x32xf32>
    %210 = vector.extract_strided_slice %208 {offsets = [0, 32], sizes = [32, 32], strides = [1, 1]} : vector<32x96xf32> to vector<32x32xf32>
    %211 = vector.extract_strided_slice %208 {offsets = [0, 64], sizes = [32, 32], strides = [1, 1]} : vector<32x96xf32> to vector<32x32xf32>
    %212 = vector.extract_strided_slice %209 {offsets = [0, 0], sizes = [16, 32], strides = [1, 1]} : vector<32x32xf32> to vector<16x32xf32>
    %213 = vector.extract_strided_slice %210 {offsets = [0, 0], sizes = [16, 32], strides = [1, 1]} : vector<32x32xf32> to vector<16x32xf32>
    %214 = vector.extract_strided_slice %211 {offsets = [0, 0], sizes = [16, 32], strides = [1, 1]} : vector<32x32xf32> to vector<16x32xf32>
    %215 = tpu.concatenate %213, %213, %213, %213 in 0 : vector<16x32xf32>, vector<16x32xf32>, vector<16x32xf32>, vector<16x32xf32> -> vector<64x32xf32>
    %216 = arith.mulf %215, %34 : vector<64x32xf32>
    "tpu.trace_start"() <{level = 10 : i32, message = "qd,ed->qe"}> : () -> ()
    %cst_87 = arith.constant dense<0.000000e+00> : vector<16x64xf32>
    %217 = tpu.matmul %212, %216, %cst_87 {dimension_numbers = #tpu.dot_dimension_numbers<[1], [1], [0], [0], [0, 0, 1, 0], [], []>} : vector<16x32xf32>, vector<64x32xf32>, vector<16x64xf32> -> vector<16x64xf32>
    "tpu.trace_stop"() : () -> ()
    %218 = vector.broadcast %36 : vector<1x64xf32> to vector<16x64xf32>
    %219 = arith.addf %217, %218 : vector<16x64xf32>
    %cst_88 = arith.constant dense<0xFF800000> : vector<16xf32>
    %220 = vector.multi_reduction <maximumf>, %219, %cst_88 [1] : vector<16x64xf32> to vector<16xf32>
    %221 = vector.shape_cast %220 : vector<16xf32> to vector<16x1xf32>
    %222 = vector.broadcast %221 : vector<16x1xf32> to vector<16x64xf32>
    %223 = arith.subf %219, %222 : vector<16x64xf32>
    %224 = math.exp %223 : vector<16x64xf32>
    %cst_89 = arith.constant dense<0.000000e+00> : vector<16x64xf32>
    %225 = tpu.matmul %224, %35, %cst_89 {dimension_numbers = #tpu.dot_dimension_numbers<[1], [0], [0], [1], [0, 0, 1, 1], [], []>} : vector<16x64xf32>, vector<64x64xf32>, vector<16x64xf32> -> vector<16x64xf32>
    %cst_90 = arith.constant 1.000000e-30 : f32
    %226 = vector.broadcast %cst_90 : f32 to vector<16x64xf32>
    %227 = arith.addf %225, %226 : vector<16x64xf32>
    %228 = tpu.reciprocal %227 {approx = true} : vector<16x64xf32> -> vector<16x64xf32>
    %229 = arith.mulf %224, %228 : vector<16x64xf32>
    %230 = tpu.concatenate %214, %214, %214, %214 in 0 : vector<16x32xf32>, vector<16x32xf32>, vector<16x32xf32>, vector<16x32xf32> -> vector<64x32xf32>
    %231 = arith.mulf %230, %34 : vector<64x32xf32>
    %cst_91 = arith.constant dense<0.000000e+00> : vector<16x32xf32>
    %232 = tpu.matmul %229, %231, %cst_91 {dimension_numbers = #tpu.dot_dimension_numbers<[1], [0], [0], [1], [0, 0, 1, 1], [], []>} : vector<16x64xf32>, vector<64x32xf32>, vector<16x32xf32> -> vector<16x32xf32>
    %233 = vector.extract_strided_slice %209 {offsets = [16, 0], sizes = [16, 32], strides = [1, 1]} : vector<32x32xf32> to vector<16x32xf32>
    %234 = vector.extract_strided_slice %210 {offsets = [16, 0], sizes = [16, 32], strides = [1, 1]} : vector<32x32xf32> to vector<16x32xf32>
    %235 = vector.extract_strided_slice %211 {offsets = [16, 0], sizes = [16, 32], strides = [1, 1]} : vector<32x32xf32> to vector<16x32xf32>
    %236 = tpu.concatenate %234, %234, %234, %234 in 0 : vector<16x32xf32>, vector<16x32xf32>, vector<16x32xf32>, vector<16x32xf32> -> vector<64x32xf32>
    %237 = arith.mulf %236, %34 : vector<64x32xf32>
    "tpu.trace_start"() <{level = 10 : i32, message = "qd,ed->qe"}> : () -> ()
    %cst_92 = arith.constant dense<0.000000e+00> : vector<16x64xf32>
    %238 = tpu.matmul %233, %237, %cst_92 {dimension_numbers = #tpu.dot_dimension_numbers<[1], [1], [0], [0], [0, 0, 1, 0], [], []>} : vector<16x32xf32>, vector<64x32xf32>, vector<16x64xf32> -> vector<16x64xf32>
    "tpu.trace_stop"() : () -> ()
    %239 = vector.broadcast %36 : vector<1x64xf32> to vector<16x64xf32>
    %240 = arith.addf %238, %239 : vector<16x64xf32>
    %cst_93 = arith.constant dense<0xFF800000> : vector<16xf32>
    %241 = vector.multi_reduction <maximumf>, %240, %cst_93 [1] : vector<16x64xf32> to vector<16xf32>
    %242 = vector.shape_cast %241 : vector<16xf32> to vector<16x1xf32>
    %243 = vector.broadcast %242 : vector<16x1xf32> to vector<16x64xf32>
    %244 = arith.subf %240, %243 : vector<16x64xf32>
    %245 = math.exp %244 : vector<16x64xf32>
    %cst_94 = arith.constant dense<0.000000e+00> : vector<16x64xf32>
    %246 = tpu.matmul %245, %35, %cst_94 {dimension_numbers = #tpu.dot_dimension_numbers<[1], [0], [0], [1], [0, 0, 1, 1], [], []>} : vector<16x64xf32>, vector<64x64xf32>, vector<16x64xf32> -> vector<16x64xf32>
    %cst_95 = arith.constant 1.000000e-30 : f32
    %247 = vector.broadcast %cst_95 : f32 to vector<16x64xf32>
    %248 = arith.addf %246, %247 : vector<16x64xf32>
    %249 = tpu.reciprocal %248 {approx = true} : vector<16x64xf32> -> vector<16x64xf32>
    %250 = arith.mulf %245, %249 : vector<16x64xf32>
    %251 = tpu.concatenate %235, %235, %235, %235 in 0 : vector<16x32xf32>, vector<16x32xf32>, vector<16x32xf32>, vector<16x32xf32> -> vector<64x32xf32>
    %252 = arith.mulf %251, %34 : vector<64x32xf32>
    %cst_96 = arith.constant dense<0.000000e+00> : vector<16x32xf32>
    %253 = tpu.matmul %250, %252, %cst_96 {dimension_numbers = #tpu.dot_dimension_numbers<[1], [0], [0], [1], [0, 0, 1, 1], [], []>} : vector<16x64xf32>, vector<64x32xf32>, vector<16x32xf32> -> vector<16x32xf32>
    %254 = tpu.concatenate %232, %253 in 0 : vector<16x32xf32>, vector<16x32xf32> -> vector<32x32xf32>
    %c1_97 = arith.constant 1 : index
    %c40_98 = arith.constant 40 : index
    %c0_99 = arith.constant 0 : index
    %255 = vector.load %arg3[%c1_97, %c40_98, %c0_99] : memref<2x192x96xf32, #tpu.memory_space<vmem>>, vector<1x32x32xf32>
    %256 = vector.shape_cast %255 : vector<1x32x32xf32> to vector<32x32xf32>
    %cst_100 = arith.constant dense<0.000000e+00> : vector<32x32xf32>
    %257 = tpu.matmul %254, %256, %cst_100 {dimension_numbers = #tpu.dot_dimension_numbers<[1], [0], [0], [1], [0, 0, 1, 1], [], []>} : vector<32x32xf32>, vector<32x32xf32>, vector<32x32xf32> -> vector<32x32xf32>
    %258 = arith.addf %185, %257 : vector<32x32xf32>
    %c1_101 = arith.constant 1 : index
    %c72_102 = arith.constant 72 : index
    %c0_103 = arith.constant 0 : index
    %259 = vector.load %arg3[%c1_101, %c72_102, %c0_103] : memref<2x192x96xf32, #tpu.memory_space<vmem>>, vector<1x1x32xf32>
    %260 = vector.shape_cast %259 : vector<1x1x32xf32> to vector<1x32xf32>
    %261 = vector.broadcast %260 : vector<1x32xf32> to vector<32x32xf32>
    %262 = arith.addf %258, %261 : vector<32x32xf32>
    %cst_104 = arith.constant dense<0.000000e+00> : vector<32xf32>
    %263 = vector.multi_reduction <add>, %262, %cst_104 [1] : vector<32x32xf32> to vector<32xf32>
    %264 = vector.shape_cast %263 : vector<32xf32> to vector<32x1xf32>
    %cst_105 = arith.constant 3.200000e+01 : f32
    %265 = vector.broadcast %cst_105 : f32 to vector<32x1xf32>
    %266 = arith.divf %264, %265 : vector<32x1xf32>
    %267 = vector.broadcast %266 : vector<32x1xf32> to vector<32x32xf32>
    %268 = arith.subf %262, %267 : vector<32x32xf32>
    %269 = arith.mulf %268, %268 : vector<32x32xf32>
    %cst_106 = arith.constant dense<0.000000e+00> : vector<32xf32>
    %270 = vector.multi_reduction <add>, %269, %cst_106 [1] : vector<32x32xf32> to vector<32xf32>
    %271 = vector.shape_cast %270 : vector<32xf32> to vector<32x1xf32>
    %cst_107 = arith.constant 3.200000e+01 : f32
    %272 = vector.broadcast %cst_107 : f32 to vector<32x1xf32>
    %273 = arith.divf %271, %272 : vector<32x1xf32>
    %cst_108 = arith.constant 9.99999974E-6 : f32
    %274 = vector.broadcast %cst_108 : f32 to vector<32x1xf32>
    %275 = arith.addf %273, %274 : vector<32x1xf32>
    %276 = math.rsqrt %275 : vector<32x1xf32>
    %277 = vector.broadcast %276 : vector<32x1xf32> to vector<32x32xf32>
    %278 = arith.mulf %268, %277 : vector<32x32xf32>
    %c1_109 = arith.constant 1 : index
    %c80_110 = arith.constant 80 : index
    %c0_111 = arith.constant 0 : index
    %279 = vector.load %arg3[%c1_109, %c80_110, %c0_111] : memref<2x192x96xf32, #tpu.memory_space<vmem>>, vector<1x32x64xf32>
    %280 = vector.shape_cast %279 : vector<1x32x64xf32> to vector<32x64xf32>
    %cst_112 = arith.constant dense<0.000000e+00> : vector<32x64xf32>
    %281 = tpu.matmul %278, %280, %cst_112 {dimension_numbers = #tpu.dot_dimension_numbers<[1], [0], [0], [1], [0, 0, 1, 1], [], []>} : vector<32x32xf32>, vector<32x64xf32>, vector<32x64xf32> -> vector<32x64xf32>
    %c1_113 = arith.constant 1 : index
    %c112_114 = arith.constant 112 : index
    %c0_115 = arith.constant 0 : index
    %282 = vector.load %arg3[%c1_113, %c112_114, %c0_115] : memref<2x192x96xf32, #tpu.memory_space<vmem>>, vector<1x1x64xf32>
    %283 = vector.shape_cast %282 : vector<1x1x64xf32> to vector<1x64xf32>
    %284 = vector.broadcast %283 : vector<1x64xf32> to vector<32x64xf32>
    %285 = arith.addf %281, %284 : vector<32x64xf32>
    %cst_116 = arith.constant 5.000000e-01 : f32
    %286 = vector.broadcast %cst_116 : f32 to vector<32x64xf32>
    %287 = arith.mulf %286, %285 : vector<32x64xf32>
    %cst_117 = arith.constant 0.707106769 : f32
    %288 = vector.broadcast %cst_117 : f32 to vector<32x64xf32>
    %289 = arith.mulf %285, %288 : vector<32x64xf32>
    %cst_118 = arith.constant 0.000000e+00 : f32
    %290 = vector.broadcast %cst_118 : f32 to vector<32x64xf32>
    %291 = arith.cmpf oge, %289, %290 : vector<32x64xf32>
    %cst_119 = arith.constant 1.000000e+00 : f32
    %cst_120 = arith.constant -1.000000e+00 : f32
    %292 = vector.broadcast %cst_119 : f32 to vector<32x64xf32>
    %293 = vector.broadcast %cst_120 : f32 to vector<32x64xf32>
    %294 = arith.select %291, %292, %293 : vector<32x64xi1>, vector<32x64xf32>
    %295 = math.absf %289 : vector<32x64xf32>
    %cst_121 = arith.constant 0.327591091 : f32
    %296 = vector.broadcast %cst_121 : f32 to vector<32x64xf32>
    %297 = arith.mulf %296, %295 : vector<32x64xf32>
    %cst_122 = arith.constant 1.000000e+00 : f32
    %298 = vector.broadcast %cst_122 : f32 to vector<32x64xf32>
    %299 = arith.addf %298, %297 : vector<32x64xf32>
    %cst_123 = arith.constant 1.000000e+00 : f32
    %300 = vector.broadcast %cst_123 : f32 to vector<32x64xf32>
    %301 = arith.divf %300, %299 : vector<32x64xf32>
    %cst_124 = arith.constant 1.06140542 : f32
    %302 = vector.broadcast %cst_124 : f32 to vector<32x64xf32>
    %303 = arith.mulf %302, %301 : vector<32x64xf32>
    %cst_125 = arith.constant -1.45315206 : f32
    %304 = vector.broadcast %cst_125 : f32 to vector<32x64xf32>
    %305 = arith.addf %303, %304 : vector<32x64xf32>
    %306 = arith.mulf %305, %301 : vector<32x64xf32>
    %cst_126 = arith.constant 1.42141378 : f32
    %307 = vector.broadcast %cst_126 : f32 to vector<32x64xf32>
    %308 = arith.addf %306, %307 : vector<32x64xf32>
    %309 = arith.mulf %308, %301 : vector<32x64xf32>
    %cst_127 = arith.constant -0.284496725 : f32
    %310 = vector.broadcast %cst_127 : f32 to vector<32x64xf32>
    %311 = arith.addf %309, %310 : vector<32x64xf32>
    %312 = arith.mulf %311, %301 : vector<32x64xf32>
    %cst_128 = arith.constant 0.254829586 : f32
    %313 = vector.broadcast %cst_128 : f32 to vector<32x64xf32>
    %314 = arith.addf %312, %313 : vector<32x64xf32>
    %315 = arith.mulf %314, %301 : vector<32x64xf32>
    %cst_129 = arith.constant 0.000000e+00 : f32
    %316 = vector.broadcast %cst_129 : f32 to vector<32x64xf32>
    %317 = arith.subf %316, %295 : vector<32x64xf32>
    %318 = arith.mulf %317, %295 : vector<32x64xf32>
    %319 = math.exp %318 : vector<32x64xf32>
    %320 = arith.mulf %315, %319 : vector<32x64xf32>
    %cst_130 = arith.constant 1.000000e+00 : f32
    %321 = vector.broadcast %cst_130 : f32 to vector<32x64xf32>
    %322 = arith.subf %321, %320 : vector<32x64xf32>
    %323 = arith.mulf %294, %322 : vector<32x64xf32>
    %cst_131 = arith.constant 1.000000e+00 : f32
    %324 = vector.broadcast %cst_131 : f32 to vector<32x64xf32>
    %325 = arith.addf %324, %323 : vector<32x64xf32>
    %326 = arith.mulf %287, %325 : vector<32x64xf32>
    %c1_132 = arith.constant 1 : index
    %c120_133 = arith.constant 120 : index
    %c0_134 = arith.constant 0 : index
    %327 = vector.load %arg3[%c1_132, %c120_133, %c0_134] : memref<2x192x96xf32, #tpu.memory_space<vmem>>, vector<1x64x32xf32>
    %328 = vector.shape_cast %327 : vector<1x64x32xf32> to vector<64x32xf32>
    %cst_135 = arith.constant dense<0.000000e+00> : vector<32x32xf32>
    %329 = tpu.matmul %326, %328, %cst_135 {dimension_numbers = #tpu.dot_dimension_numbers<[1], [0], [0], [1], [0, 0, 1, 1], [], []>} : vector<32x64xf32>, vector<64x32xf32>, vector<32x32xf32> -> vector<32x32xf32>
    %330 = arith.addf %262, %329 : vector<32x32xf32>
    %c1_136 = arith.constant 1 : index
    %c184_137 = arith.constant 184 : index
    %c0_138 = arith.constant 0 : index
    %331 = vector.load %arg3[%c1_136, %c184_137, %c0_138] : memref<2x192x96xf32, #tpu.memory_space<vmem>>, vector<1x1x32xf32>
    %332 = vector.shape_cast %331 : vector<1x1x32xf32> to vector<1x32xf32>
    %333 = vector.broadcast %332 : vector<1x32xf32> to vector<32x32xf32>
    %334 = arith.addf %330, %333 : vector<32x32xf32>
    %c192 = arith.constant 192 : index
    %c0_139 = arith.constant 0 : index
    %335 = vector.load %arg2[%c192, %c0_139] : memref<400x64xf32, #tpu.memory_space<vmem>>, vector<2x32xf32>
    %cst_140 = arith.constant dense<0.000000e+00> : vector<2x32xf32>
    %336 = tpu.matmul %335, %334, %cst_140 {dimension_numbers = #tpu.dot_dimension_numbers<[1], [0], [0], [1], [0, 0, 1, 1], [], []>} : vector<2x32xf32>, vector<32x32xf32>, vector<2x32xf32> -> vector<2x32xf32>
    %cst_141 = arith.constant dense<0.000000e+00> : vector<2xf32>
    %337 = vector.multi_reduction <add>, %336, %cst_141 [1] : vector<2x32xf32> to vector<2xf32>
    %338 = vector.shape_cast %337 : vector<2xf32> to vector<2x1xf32>
    %cst_142 = arith.constant 3.200000e+01 : f32
    %339 = vector.broadcast %cst_142 : f32 to vector<2x1xf32>
    %340 = arith.divf %338, %339 : vector<2x1xf32>
    %341 = vector.broadcast %340 : vector<2x1xf32> to vector<2x32xf32>
    %342 = arith.subf %336, %341 : vector<2x32xf32>
    %343 = arith.mulf %342, %342 : vector<2x32xf32>
    %cst_143 = arith.constant dense<0.000000e+00> : vector<2xf32>
    %344 = vector.multi_reduction <add>, %343, %cst_143 [1] : vector<2x32xf32> to vector<2xf32>
    %345 = vector.shape_cast %344 : vector<2xf32> to vector<2x1xf32>
    %cst_144 = arith.constant 3.200000e+01 : f32
    %346 = vector.broadcast %cst_144 : f32 to vector<2x1xf32>
    %347 = arith.divf %345, %346 : vector<2x1xf32>
    %cst_145 = arith.constant 9.99999974E-6 : f32
    %348 = vector.broadcast %cst_145 : f32 to vector<2x1xf32>
    %349 = arith.addf %347, %348 : vector<2x1xf32>
    %350 = math.rsqrt %349 : vector<2x1xf32>
    %351 = vector.broadcast %350 : vector<2x1xf32> to vector<2x32xf32>
    %352 = arith.mulf %342, %351 : vector<2x32xf32>
    %c200 = arith.constant 200 : index
    %c0_146 = arith.constant 0 : index
    %353 = vector.load %arg2[%c200, %c0_146] : memref<400x64xf32, #tpu.memory_space<vmem>>, vector<1x32xf32>
    %354 = vector.broadcast %353 : vector<1x32xf32> to vector<2x32xf32>
    %355 = arith.mulf %352, %354 : vector<2x32xf32>
    %c208 = arith.constant 208 : index
    %c0_147 = arith.constant 0 : index
    %356 = vector.load %arg2[%c208, %c0_147] : memref<400x64xf32, #tpu.memory_space<vmem>>, vector<1x32xf32>
    %357 = vector.broadcast %356 : vector<1x32xf32> to vector<2x32xf32>
    %358 = arith.addf %355, %357 : vector<2x32xf32>
    %c216 = arith.constant 216 : index
    %c0_148 = arith.constant 0 : index
    %359 = vector.load %arg2[%c216, %c0_148] : memref<400x64xf32, #tpu.memory_space<vmem>>, vector<32x64xf32>
    %cst_149 = arith.constant dense<0.000000e+00> : vector<2x64xf32>
    %360 = tpu.matmul %358, %359, %cst_149 {dimension_numbers = #tpu.dot_dimension_numbers<[1], [0], [0], [1], [0, 0, 1, 1], [], []>} : vector<2x32xf32>, vector<32x64xf32>, vector<2x64xf32> -> vector<2x64xf32>
    %c248 = arith.constant 248 : index
    %c0_150 = arith.constant 0 : index
    %361 = vector.load %arg2[%c248, %c0_150] : memref<400x64xf32, #tpu.memory_space<vmem>>, vector<1x64xf32>
    %362 = vector.broadcast %361 : vector<1x64xf32> to vector<2x64xf32>
    %363 = arith.addf %360, %362 : vector<2x64xf32>
    %cst_151 = arith.constant 0.000000e+00 : f32
    %364 = vector.broadcast %cst_151 : f32 to vector<2x64xf32>
    %365 = arith.cmpf oge, %363, %364 : vector<2x64xf32>
    %cst_152 = arith.constant 0.00999999977 : f32
    %366 = vector.broadcast %cst_152 : f32 to vector<2x64xf32>
    %367 = arith.mulf %366, %363 : vector<2x64xf32>
    %368 = arith.select %365, %363, %367 : vector<2x64xi1>, vector<2x64xf32>
    %c256 = arith.constant 256 : index
    %c0_153 = arith.constant 0 : index
    %369 = vector.load %arg2[%c256, %c0_153] : memref<400x64xf32, #tpu.memory_space<vmem>>, vector<64x32xf32>
    %cst_154 = arith.constant dense<0.000000e+00> : vector<2x32xf32>
    %370 = tpu.matmul %368, %369, %cst_154 {dimension_numbers = #tpu.dot_dimension_numbers<[1], [0], [0], [1], [0, 0, 1, 1], [], []>} : vector<2x64xf32>, vector<64x32xf32>, vector<2x32xf32> -> vector<2x32xf32>
    %c320 = arith.constant 320 : index
    %c0_155 = arith.constant 0 : index
    %371 = vector.load %arg2[%c320, %c0_155] : memref<400x64xf32, #tpu.memory_space<vmem>>, vector<1x32xf32>
    %372 = vector.broadcast %371 : vector<1x32xf32> to vector<2x32xf32>
    %373 = arith.addf %370, %372 : vector<2x32xf32>
    %c328 = arith.constant 328 : index
    %c0_156 = arith.constant 0 : index
    %374 = vector.load %arg2[%c328, %c0_156] : memref<400x64xf32, #tpu.memory_space<vmem>>, vector<32x32xf32>
    %cst_157 = arith.constant dense<0.000000e+00> : vector<2x32xf32>
    %375 = tpu.matmul %373, %374, %cst_157 {dimension_numbers = #tpu.dot_dimension_numbers<[1], [0], [0], [1], [0, 0, 1, 1], [], []>} : vector<2x32xf32>, vector<32x32xf32>, vector<2x32xf32> -> vector<2x32xf32>
    %376 = arith.mulf %373, %373 : vector<2x32xf32>
    %c360 = arith.constant 360 : index
    %c0_158 = arith.constant 0 : index
    %377 = vector.load %arg2[%c360, %c0_158] : memref<400x64xf32, #tpu.memory_space<vmem>>, vector<32x32xf32>
    %cst_159 = arith.constant dense<0.000000e+00> : vector<2x32xf32>
    %378 = tpu.matmul %376, %377, %cst_159 {dimension_numbers = #tpu.dot_dimension_numbers<[1], [0], [0], [1], [0, 0, 1, 1], [], []>} : vector<2x32xf32>, vector<32x32xf32>, vector<2x32xf32> -> vector<2x32xf32>
    %cst_160 = arith.constant 1.000000e-30 : f32
    %379 = vector.broadcast %cst_160 : f32 to vector<2x32xf32>
    %380 = arith.maximumf %378, %379 : vector<2x32xf32>
    %381 = math.rsqrt %380 : vector<2x32xf32>
    %cst_161 = arith.constant 9.99999995E+11 : f32
    %382 = vector.broadcast %cst_161 : f32 to vector<2x32xf32>
    %383 = arith.minimumf %381, %382 : vector<2x32xf32>
    %c392 = arith.constant 392 : index
    %c0_162 = arith.constant 0 : index
    %384 = vector.load %arg2[%c392, %c0_162] : memref<400x64xf32, #tpu.memory_space<vmem>>, vector<1x32xf32>
    %385 = vector.broadcast %384 : vector<1x32xf32> to vector<2x32xf32>
    %386 = arith.mulf %373, %385 : vector<2x32xf32>
    %387 = arith.mulf %386, %383 : vector<2x32xf32>
    %388 = arith.addf %375, %387 : vector<2x32xf32>
    %389 = tpu.concatenate %358, %388 in 1 : vector<2x32xf32>, vector<2x32xf32> -> vector<2x64xf32>
    %c0_163 = arith.constant 0 : index
    %c0_164 = arith.constant 0 : index
    %390 = vector.load %arg4[%c0_163, %c0_164] : memref<2x64xf32, #tpu.memory_space<vmem>>, vector<2x64xf32>
    tpu.vector_store %arg4[%c0_163, %c0_164], %389 {strides = array<i32>} : memref<2x64xf32, #tpu.memory_space<vmem>>, vector<2x64xf32>,
    return
  }
  func.func @transform_0(%arg0: i32) -> (i32, i32) {
    %c0_i32 = arith.constant 0 : i32
    %c0_i32_0 = arith.constant 0 : i32
    return %arg0, %c0_i32 : i32, i32
  }
  func.func @transform_1(%arg0: i32) -> (i32, i32) {
    %c0_i32 = arith.constant 0 : i32
    %c0_i32_0 = arith.constant 0 : i32
    %c0_i32_1 = arith.constant 0 : i32
    return %c0_i32, %c0_i32_0 : i32, i32
  }
  func.func @transform_2(%arg0: i32) -> (i32, i32, i32) {
    %c0_i32 = arith.constant 0 : i32
    %c0_i32_0 = arith.constant 0 : i32
    %c0_i32_1 = arith.constant 0 : i32
    %c0_i32_2 = arith.constant 0 : i32
    return %c0_i32, %c0_i32_0, %c0_i32_1 : i32, i32, i32
  }
  func.func @transform_3(%arg0: i32) -> (i32, i32) {
    %c0_i32 = arith.constant 0 : i32
    %c0_i32_0 = arith.constant 0 : i32
    return %arg0, %c0_i32 : i32, i32
  }
}

</mosaic_0001>

<llo_original>
// kernel: tpu_custom_call.1
$region0: #{tpu_custom_call.1}
  #allocation0 [shape = 'u32[]', space=smem, size = 0x4, offset = 0x4, fixed_abs, tag = 'smem constant byte address 0x4 - core index']
  #allocation1 [shape = 'u32[144,128]{1,0:T(1,128)}', space=vmem, size = 0x12000, scoped, tag = 'internal scratch']
  %s0 = inlined_call_operand.vmem [shape: f32[16,4], index: 0, kind: input, shape index: {}]
  %s1 = inlined_call_operand.vmem [shape: f32[400,64], index: 1, kind: input, shape index: {}]
  %s2 = inlined_call_operand.vmem [shape: f32[2,192,96], index: 2, kind: input, shape index: {}]
  %s3 = inlined_call_operand.hbm [shape: f32[2,64], index: 3, kind: output, shape index: {}]
  %s4 = sld [smem:[#allocation0]]
  $region22: #{tpu_custom_call.1} parent=0
    _
  %s6 = ssub.s32 1, %s4
  %s7 = scalar_select 0, %s6, %s4
  $region1: #{tpu_custom_call.1} parent=0
    #allocation2 [shape = 'u8[1024]{0}', space=vmem, size = 0x400, scoped, tag = 'output window, operand 0, single buffered']
    #allocation3 [shape = 's32[1]{0}', space=sflag, size = 0x4, scoped, tag = 'scoped memory for tpu_custom_call.1']
    %8 = vsyncpa [#allocation3], 0
    // Predicated region
    $region2: #{tpu_custom_call.1} parent=1 // pred_check
      _
    $region3: #{tpu_custom_call.1} parent=1 // pred_check_branch
      %10 = sbr.rel (0) target = $region5
    $region4: #{tpu_custom_call.1} parent=1 // pred_region
      _
    $region5: #{tpu_custom_call.1} parent=1 // pred_fallthru
      _
    // Predicated region
    $region6: #{tpu_custom_call.1} parent=1 // pred_check
      _
    $region7: #{tpu_custom_call.1} parent=1 // pred_check_branch
      %12 = sbr.rel (0) target = $region9
    $region8: #{tpu_custom_call.1} parent=1 // pred_region
      _
    $region9: #{tpu_custom_call.1} parent=1 // pred_fallthru
      _
    // Predicated region
    $region10: #{tpu_custom_call.1} parent=1 // pred_check
      _
    $region11: #{tpu_custom_call.1} parent=1 // pred_check_branch
      %14 = sbr.rel (0) target = $region13
    $region12: #{tpu_custom_call.1} parent=1 // pred_region
      _
    $region13: #{tpu_custom_call.1} parent=1 // pred_fallthru
      _
    %v15 = vld [vmem:[%s0] sm:$0xff]
    %v16 = vld [vmem:[%s0 + $0x8] sm:$0xff]
    %v17 = vld [vmem:[%s1] sm:$0xf]
    %v18 = vld [vmem:[%s1 + $0x8] sm:$0x1]
    %v19 = vlaneseq
    %v20 = vshrl.u32 %v19, 7
    %v21 = vsub.s32 0, %v20
    %v22 = vrot.slane %v18, %v21
    %vm23 = vcmask 31744
    %v25 = vsel %vm23, %v15, 0
    %v28 = vsel %vm23, %v16, 0
    %vm30 = vcmask 1043456
    %v32 = vsel %vm30, %v17, 0
    %34 = vmatprep.subr.mxu0 0.0
    %35 = vmatpush1.msra.mxu0 0.0
    %36 = vmatprep.subr.mxu0 0.0
    %37 = vmatpush1.msra.mxu0 0.0
    %38 = vmatprep.subr.mxu0 0.0
    %39 = vmatpush1.msra.mxu0 0.0
    %40 = vmatprep.subr.mxu0 0.0
    %41 = vmatpush1.msra.mxu0 0.0
    %42 = vmatprep.subr.mxu0 0.0
    %43 = vmatpush1.msra.mxu0 0.0
    %44 = vmatprep.subr.mxu0 0.0
    %45 = vmatpush1.msra.mxu0 0.0
    %46 = vmatprep.subr.mxu0 0.0
    %47 = vmatpush1.msra.mxu0 0.0
    %48 = vmatprep.subr.mxu0 0.0
    %49 = vmatpush1.msra.mxu0 0.0
    %50 = vmatprep.subr.mxu0 0.0
    %51 = vmatpush1.msra.mxu0 0.0
    %52 = vmatprep.subr.mxu0 0.0
    %53 = vmatpush1.msra.mxu0 0.0
    %54 = vmatprep.subr.mxu0 0.0
    %55 = vmatpush1.msra.mxu0 0.0
    %56 = vmatprep.subr.mxu0 0.0
    %57 = vmatpush1.msra.mxu0 0.0
    %58 = vmatprep.subr.mxu0 0.0
    %59 = vmatpush1.msra.mxu0 0.0
    %60 = vmatprep.subr.mxu0 0.0
    %61 = vmatpush1.msra.mxu0 0.0
    %62 = vmatprep.subr.mxu0 0.0
    %63 = vmatpush1.msra.mxu0 0.0
    %64 = vmatprep.subr.mxu0 0.0
    %65 = vmatpush1.msra.mxu0 %v32
    %66 = vmatprep.subr.mxu0 0.0
    %67 = vmatpush2.msra.mxu0 0.0
    %68 = vmatprep.subr.mxu0 0.0
    %69 = vmatpush2.msra.mxu0 0.0
    %70 = vmatprep.subr.mxu0 0.0
    %71 = vmatpush2.msra.mxu0 0.0
    %72 = vmatprep.subr.mxu0 0.0
    %73 = vmatpush2.msra.mxu0 0.0
    %74 = vmatprep.subr.mxu0 0.0
    %75 = vmatpush2.msra.mxu0 0.0
    %76 = vmatprep.subr.mxu0 0.0
    %77 = vmatpush2.msra.mxu0 0.0
    %78 = vmatprep.subr.mxu0 0.0
    %79 = vmatpush2.msra.mxu0 0.0
    %80 = vmatprep.subr.mxu0 0.0
    %81 = vmatpush2.msra.mxu0 0.0
    %82 = vmatprep.subr.mxu0 0.0
    %83 = vmatpush2.msra.mxu0 0.0
    %84 = vmatprep.subr.mxu0 0.0
    %85 = vmatpush2.msra.mxu0 0.0
    %86 = vmatprep.subr.mxu0 0.0
    %87 = vmatpush2.msra.mxu0 0.0
    %88 = vmatprep.subr.mxu0 0.0
    %89 = vmatpush2.msra.mxu0 0.0
    %90 = vmatprep.subr.mxu0 0.0
    %91 = vmatpush2.msra.mxu0 0.0
    %92 = vmatprep.subr.mxu0 0.0
    %93 = vmatpush2.msra.mxu0 0.0
    %94 = vmatprep.subr.mxu0 0.0
    %95 = vmatpush2.msra.mxu0 0.0
    %96 = vmatprep.subr.mxu0 0.0
    %97 = vmatpush2.msra.mxu0 0.0
    %98 = vmatprep.mubr.f32.mxu0 0.0
    %99 = vmatmul.mubr.f32.gmra.mxu0 %v25
    %v100 = vpop.f32.mrf.mxu0
    %v101 = vadd.f32 %v22, %v100
    %v102 = vpop.f32.mrf.mxu0
    %103 = vmatprep.mubr.f32.mxu0 0.0
    %104 = vmatmul.mubr.f32.gmra.mxu0 %v28
    %v105 = vpop.f32.mrf.mxu0
    %v106 = vadd.f32 %v22, %v105
    %v107 = vpop.f32.mrf.mxu0
    %108 = vdwg.mxu0
    %vm109 = vcmask 261120
    %v110 = vsel %vm109, %v101, 0.0
    %111 = vadd.xlane.f32.xlu0 %v110
    %v112 = vpop.xlane.xlu0 %111
    %v113 = vsel %vm109, %v106, 0.0
    %114 = vadd.xlane.f32.xlu0 %v113
    %v115 = vpop.xlane.xlu0 %114
    %v116 = vrcp.pop 32.0
    %v117 = vmul.f32 %v112, %v116
    %v118 = vmul.f32 %v115, %v116
    %v119 = vsub.f32 %v101, %v117
    %v120 = vsub.f32 %v106, %v118
    %v121 = vmul.f32 %v119, %v119
    %v122 = vmul.f32 %v120, %v120
    %v123 = vsel %vm109, %v121, 0.0
    %124 = vadd.xlane.f32.xlu0 %v123
    %v125 = vpop.xlane.xlu0 %124
    %v126 = vsel %vm109, %v122, 0.0
    %127 = vadd.xlane.f32.xlu0 %v126
    %v128 = vpop.xlane.xlu0 %127
    %v129 = vmul.f32 %v125, %v116
    %v130 = vmul.f32 %v128, %v116
    %v131 = vadd.f32 %v129, 1e-05
    %v132 = vadd.f32 %v130, 1e-05
    %v133 = vrsqrt.pop %v131
    %v134 = vrsqrt.pop %v132
    %v135 = vmul.f32 %v119, %v133
    %v136 = vmul.f32 %v120, %v134
    %v137 = vld [vmem:[%s1 + $0x10] sm:$0x1]
    %v138 = vlaneseq
    %v139 = vshrl.u32 %v138, 7
    %v140 = vsub.s32 0, %v139
    %v141 = vrot.slane %v137, %v140
    %v142 = vmul.f32 %v135, %v141
    %v143 = vmul.f32 %v136, %v141
    %v144 = vld [vmem:[%s1 + $0x18] sm:$0x1]
    %v145 = vlaneseq
    %v146 = vshrl.u32 %v145, 7
    %v147 = vsub.s32 0, %v146
    %v148 = vrot.slane %v144, %v147
    %v149 = vadd.f32 %v142, %v148
    %v150 = vadd.f32 %v143, %v148
    %v151 = vld [vmem:[%s1 + $0x20] sm:$0xff]
    %v152 = vld [vmem:[%s1 + $0x28] sm:$0xff]
    %v153 = vadd.f32 %v149, %v151
    %v154 = vadd.f32 %v150, %v152
    %v155 = vld [vmem:[%s1 + $0x30] sm:$0xff]
    %v156 = vld [vmem:[%s1 + $0x38] sm:$0xff]
    %v157 = vld [vmem:[%s1 + $0x40] sm:$0xff]
    %v158 = vld [vmem:[%s1 + $0x48] sm:$0xff]
    %v159 = vld [vmem:[%s1 + $0x50] sm:$0xff]
    %v160 = vld [vmem:[%s1 + $0x58] sm:$0xff]
    %v161 = vld [vmem:[%s1 + $0x60] sm:$0xff]
    %v162 = vld [vmem:[%s1 + $0x68] sm:$0xff]
    %v163 = vld [vmem:[%s1 + $0x70] sm:$0xff]
    %v164 = vld [vmem:[%s1 + $0x78] sm:$0xff]
    %v165 = vld [vmem:[%s1 + $0x80] sm:$0xff]
    %v166 = vld [vmem:[%s1 + $0x88] sm:$0xff]
    %v167 = vld [vmem:[%s1 + $0x90] sm:$0xff]
    %v168 = vld [vmem:[%s1 + $0x98] sm:$0xff]
    %v169 = vld [vmem:[%s1 + $0xa0] sm:$0xff]
    %v170 = vld [vmem:[%s1 + $0xa8] sm:$0xff]
    %v171 = vld [vmem:[%s1 + $0xb0] sm:$0xff]
    %v172 = vld [vmem:[%s1 + $0xb8] sm:$0x1]
    %v173 = vsel %vm109, %v153, 0.0
    %174 = vadd.xlane.f32.xlu0 %v173
    %v175 = vpop.xlane.xlu0 %174
    %v176 = vsel %vm109, %v155, 0.0
    %177 = vadd.xlane.f32.xlu0 %v176
    %v178 = vpop.xlane.xlu0 %177
    %v179 = vsel %vm109, %v154, 0.0
    %180 = vadd.xlane.f32.xlu0 %v179
    %v181 = vpop.xlane.xlu0 %180
    %v182 = vmul.f32 %v175, %v116
    %v183 = vmul.f32 %v178, %v116
    %v184 = vmul.f32 %v181, %v116
    %v185 = vsub.f32 %v153, %v182
    %v186 = vsub.f32 %v155, %v183
    %v187 = vsub.f32 %v154, %v184
    %v188 = vmul.f32 %v185, %v185
    %v189 = vmul.f32 %v186, %v186
    %v190 = vmul.f32 %v187, %v187
    %v191 = vsel %vm109, %v188, 0.0
    %192 = vadd.xlane.f32.xlu0 %v191
    %v193 = vpop.xlane.xlu0 %192
    %v194 = vsel %vm109, %v189, 0.0
    %195 = vadd.xlane.f32.xlu0 %v194
    %v196 = vpop.xlane.xlu0 %195
    %v197 = vsel %vm109, %v190, 0.0
    %198 = vadd.xlane.f32.xlu0 %v197
    %v199 = vpop.xlane.xlu0 %198
    %v200 = vmul.f32 %v193, %v116
    %v201 = vmul.f32 %v196, %v116
    %v202 = vmul.f32 %v199, %v116
    %v203 = vadd.f32 %v200, 1e-05
    %v204 = vadd.f32 %v201, 1e-05
    %v205 = vadd.f32 %v202, 1e-05
    %v206 = vrsqrt.pop %v203
    %v207 = vrsqrt.pop %v204
    %v208 = vrsqrt.pop %v205
    %v209 = vmul.f32 %v185, %v206
    %v210 = vmul.f32 %v186, %v207
    %v211 = vmul.f32 %v187, %v208
    %v212 = vld [vmem:[%s2] sm:$0xff]
    %v213 = vld [vmem:[%s2 + $0x8] sm:$0xff]
    %v214 = vld [vmem:[%s2 + $0x10] sm:$0xff]
    %v215 = vld [vmem:[%s2 + $0x18] sm:$0xff]
    %v216 = vld [vmem:[%s2 + $0x20] sm:$0x1]
    %v217 = vlaneseq
    %v218 = vshrl.u32 %v217, 7
    %v219 = vsub.s32 0, %v218
    %v220 = vrot.slane %v216, %v219
    %v222 = vsel %vm109, %v209, 0
    %v225 = vsel %vm109, %v210, 0
    %v228 = vsel %vm109, %v211, 0
    %230 = vmatprep.subr.mxu0 0.0
    %231 = vmatpush1.msra.mxu0 0.0
    %232 = vmatprep.subr.mxu0 0.0
    %233 = vmatpush1.msra.mxu0 0.0
    %234 = vmatprep.subr.mxu0 0.0
    %235 = vmatpush1.msra.mxu0 0.0
    %236 = vmatprep.subr.mxu0 0.0
    %237 = vmatpush1.msra.mxu0 0.0
    %238 = vmatprep.subr.mxu0 0.0
    %239 = vmatpush1.msra.mxu0 0.0
    %240 = vmatprep.subr.mxu0 0.0
    %241 = vmatpush1.msra.mxu0 0.0
    %242 = vmatprep.subr.mxu0 0.0
    %243 = vmatpush1.msra.mxu0 0.0
    %244 = vmatprep.subr.mxu0 0.0
    %245 = vmatpush1.msra.mxu0 0.0
    %246 = vmatprep.subr.mxu0 0.0
    %247 = vmatpush1.msra.mxu0 0.0
    %248 = vmatprep.subr.mxu0 0.0
    %249 = vmatpush1.msra.mxu0 0.0
    %250 = vmatprep.subr.mxu0 0.0
    %251 = vmatpush1.msra.mxu0 0.0
    %252 = vmatprep.subr.mxu0 0.0
    %253 = vmatpush1.msra.mxu0 0.0
    %254 = vmatprep.subr.mxu0 0.0
    %255 = vmatpush1.msra.mxu0 %v215
    %256 = vmatprep.subr.mxu0 0.0
    %257 = vmatpush1.msra.mxu0 %v214
    %258 = vmatprep.subr.mxu0 0.0
    %259 = vmatpush1.msra.mxu0 %v213
    %260 = vmatprep.subr.mxu0 0.0
    %261 = vmatpush1.msra.mxu0 %v212
    %262 = vmatprep.subr.mxu0 0.0
    %263 = vmatpush2.msra.mxu0 0.0
    %264 = vmatprep.subr.mxu0 0.0
    %265 = vmatpush2.msra.mxu0 0.0
    %266 = vmatprep.subr.mxu0 0.0
    %267 = vmatpush2.msra.mxu0 0.0
    %268 = vmatprep.subr.mxu0 0.0
    %269 = vmatpush2.msra.mxu0 0.0
    %270 = vmatprep.subr.mxu0 0.0
    %271 = vmatpush2.msra.mxu0 0.0
    %272 = vmatprep.subr.mxu0 0.0
    %273 = vmatpush2.msra.mxu0 0.0
    %274 = vmatprep.subr.mxu0 0.0
    %275 = vmatpush2.msra.mxu0 0.0
    %276 = vmatprep.subr.mxu0 0.0
    %277 = vmatpush2.msra.mxu0 0.0
    %278 = vmatprep.subr.mxu0 0.0
    %279 = vmatpush2.msra.mxu0 0.0
    %280 = vmatprep.subr.mxu0 0.0
    %281 = vmatpush2.msra.mxu0 0.0
    %282 = vmatprep.subr.mxu0 0.0
    %283 = vmatpush2.msra.mxu0 0.0
    %284 = vmatprep.subr.mxu0 0.0
    %285 = vmatpush2.msra.mxu0 0.0
    %286 = vmatprep.subr.mxu0 0.0
    %287 = vmatpush2.msra.mxu0 0.0
    %288 = vmatprep.subr.mxu0 0.0
    %289 = vmatpush2.msra.mxu0 0.0
    %290 = vmatprep.subr.mxu0 0.0
    %291 = vmatpush2.msra.mxu0 0.0
    %292 = vmatprep.subr.mxu0 0.0
    %293 = vmatpush2.msra.mxu0 0.0
    %294 = vmatprep.mubr.f32.mxu0 0.0
    %295 = vmatmul.mubr.f32.gmra.mxu0 %v222
    %v296 = vpop.f32.mrf.mxu0
    %v297 = vadd.f32 %v220, %v296
    %v298 = vpop.f32.mrf.mxu0
    %299 = vmatprep.mubr.f32.mxu0 0.0
    %300 = vmatmul.mubr.f32.gmra.mxu0 %v225
    %v301 = vpop.f32.mrf.mxu0
    %v302 = vadd.f32 %v220, %v301
    %v303 = vpop.f32.mrf.mxu0
    %304 = vmatprep.mubr.f32.mxu0 0.0
    %305 = vmatmul.mubr.f32.gmra.mxu0 %v228
    %v306 = vpop.f32.mrf.mxu0
    %v307 = vadd.f32 %v220, %v306
    %v308 = vpop.f32.mrf.mxu0
    %309 = vmatprep.mubr.f32.mxu0 0.0
    %310 = vmatmul.mubr.f32.gmra.mxu0 %v225
    %v311 = vpop.f32.mrf.mxu0
    %v312 = vadd.f32 %v220, %v311
    %v313 = vpop.f32.mrf.mxu0
    %314 = vdwg.mxu0
    %323 = vrot.lane.b32.xlu0 %v156, 32
    %v324 = vpop.permute.xlu0 %323
    %325 = vrot.lane.b32.xlu0 %v157, 32
    %v326 = vpop.permute.xlu0 %325
    %327 = vrot.lane.b32.xlu0 %v158, 32
    %v328 = vpop.permute.xlu0 %327
    %329 = vrot.lane.b32.xlu0 %v159, 32
    %v330 = vpop.permute.xlu0 %329
    %331 = vrot.lane.b32.xlu0 %v160, 32
    %v332 = vpop.permute.xlu0 %331
    %333 = vrot.lane.b32.xlu0 %v161, 32
    %v334 = vpop.permute.xlu0 %333
    %335 = vrot.lane.b32.xlu0 %v162, 32
    %v336 = vpop.permute.xlu0 %335
    %337 = vrot.lane.b32.xlu0 %v163, 32
    %v338 = vpop.permute.xlu0 %337
    %v347 = vmul.f32 %v297, %v324
    %v348 = vmul.f32 %v302, %v326
    %v349 = vmul.f32 %v297, %v328
    %v350 = vmul.f32 %v302, %v330
    %v351 = vmul.f32 %v297, %v332
    %v352 = vmul.f32 %v302, %v334
    %v353 = vmul.f32 %v297, %v336
    %v354 = vmul.f32 %v302, %v338
    %v355 = vlaneseq
    %v356 = vshrl.u32 %v355, 7
    %v357 = vsub.s32 0, %v356
    %v358 = vrot.slane %v172, %v357
    %367 = vrot.lane.b32.xlu0 %v347, 96
    %v368 = vpop.permute.xlu0 %367
    %369 = vrot.lane.b32.xlu0 %v348, 96
    %v370 = vpop.permute.xlu0 %369
    %371 = vrot.lane.b32.xlu0 %v349, 96
    %v372 = vpop.permute.xlu0 %371
    %373 = vrot.lane.b32.xlu0 %v350, 96
    %v374 = vpop.permute.xlu0 %373
    %375 = vrot.lane.b32.xlu0 %v351, 96
    %v376 = vpop.permute.xlu0 %375
    %377 = vrot.lane.b32.xlu0 %v352, 96
    %v378 = vpop.permute.xlu0 %377
    %379 = vrot.lane.b32.xlu0 %v353, 96
    %v380 = vpop.permute.xlu0 %379
    %381 = vrot.lane.b32.xlu0 %v354, 96
    %v382 = vpop.permute.xlu0 %381
    %v384 = vsel %vm109, %v297, 0
    %v387 = vsel %vm109, %v302, 0
    %v389 = vsel %vm109, %v368, 0
    %v391 = vsel %vm109, %v370, 0
    %v393 = vsel %vm109, %v372, 0
    %v395 = vsel %vm109, %v374, 0
    %v397 = vsel %vm109, %v376, 0
    %v399 = vsel %vm109, %v378, 0
    %v401 = vsel %vm109, %v380, 0
    %v403 = vsel %vm109, %v382, 0
    %405 = vmatprep.subr.mxu0 0.0
    %406 = vmatpush1.xpose.msra.mxu0 0.0
    %407 = vmatprep.subr.mxu0 0.0
    %408 = vmatpush1.xpose.msra.mxu0 0.0
    %409 = vmatprep.subr.mxu0 0.0
    %410 = vmatpush1.xpose.msra.mxu0 0.0
    %411 = vmatprep.subr.mxu0 0.0
    %412 = vmatpush1.xpose.msra.mxu0 0.0
    %413 = vmatprep.subr.mxu0 0.0
    %414 = vmatpush1.xpose.msra.mxu0 0.0
    %415 = vmatprep.subr.mxu0 0.0
    %416 = vmatpush1.xpose.msra.mxu0 0.0
    %417 = vmatprep.subr.mxu0 0.0
    %418 = vmatpush1.xpose.msra.mxu0 0.0
    %419 = vmatprep.subr.mxu0 0.0
    %420 = vmatpush1.xpose.msra.mxu0 0.0
    %421 = vmatprep.subr.mxu0 0.0
    %422 = vmatpush1.xpose.msra.mxu0 %v403
    %423 = vmatprep.subr.mxu0 0.0
    %424 = vmatpush1.xpose.msra.mxu0 %v401
    %425 = vmatprep.subr.mxu0 0.0
    %426 = vmatpush1.xpose.msra.mxu0 %v399
    %427 = vmatprep.subr.mxu0 0.0
    %428 = vmatpush1.xpose.msra.mxu0 %v397
    %429 = vmatprep.subr.mxu0 0.0
    %430 = vmatpush1.xpose.msra.mxu0 %v395
    %431 = vmatprep.subr.mxu0 0.0
    %432 = vmatpush1.xpose.msra.mxu0 %v393
    %433 = vmatprep.subr.mxu0 0.0
    %434 = vmatpush1.xpose.msra.mxu0 %v391
    %435 = vmatprep.subr.mxu0 0.0
    %436 = vmatpush1.xpose.msra.mxu0 %v389
    %437 = vmatprep.subr.mxu0 0.0
    %438 = vmatpush2.xpose.msra.mxu0 0.0
    %439 = vmatprep.subr.mxu0 0.0
    %440 = vmatpush2.xpose.msra.mxu0 0.0
    %441 = vmatprep.subr.mxu0 0.0
    %442 = vmatpush2.xpose.msra.mxu0 0.0
    %443 = vmatprep.subr.mxu0 0.0
    %444 = vmatpush2.xpose.msra.mxu0 0.0
    %445 = vmatprep.subr.mxu0 0.0
    %446 = vmatpush2.xpose.msra.mxu0 0.0
    %447 = vmatprep.subr.mxu0 0.0
    %448 = vmatpush2.xpose.msra.mxu0 0.0
    %449 = vmatprep.subr.mxu0 0.0
    %450 = vmatpush2.xpose.msra.mxu0 0.0
    %451 = vmatprep.subr.mxu0 0.0
    %452 = vmatpush2.xpose.msra.mxu0 0.0
    %453 = vmatprep.subr.mxu0 0.0
    %454 = vmatpush2.xpose.msra.mxu0 0.0
    %455 = vmatprep.subr.mxu0 0.0
    %456 = vmatpush2.xpose.msra.mxu0 0.0
    %457 = vmatprep.subr.mxu0 0.0
    %458 = vmatpush2.xpose.msra.mxu0 0.0
    %459 = vmatprep.subr.mxu0 0.0
    %460 = vmatpush2.xpose.msra.mxu0 0.0
    %461 = vmatprep.subr.mxu0 0.0
    %462 = vmatpush2.xpose.msra.mxu0 0.0
    %463 = vmatprep.subr.mxu0 0.0
    %464 = vmatpush2.xpose.msra.mxu0 0.0
    %465 = vmatprep.subr.mxu0 0.0
    %466 = vmatpush2.xpose.msra.mxu0 0.0
    %467 = vmatprep.subr.mxu0 0.0
    %468 = vmatpush2.xpose.msra.mxu0 0.0
    %469 = vmatprep.mubr.f32.mxu0 0.0
    %470 = vmatmul.mubr.f32.gmra.mxu0 %v384
    %v471 = vpop.f32.mrf.mxu0
    %v472 = vadd.f32 %v358, %v471
    %v473 = vpop.f32.mrf.mxu0
    %474 = vmatprep.mubr.f32.mxu0 0.0
    %475 = vmatmul.mubr.f32.gmra.mxu0 %v387
    %v476 = vpop.f32.mrf.mxu0
    %v477 = vadd.f32 %v358, %v476
    %v478 = vpop.f32.mrf.mxu0
    %479 = vdwg.mxu0
    %vm480 = vcmask 523264
    %v481 = vsel %vm480, %v472, -inf
    %482 = vmax.xlane.f32.xlu0 %v481
    %v483 = vpop.xlane.xlu0 %482
    %v484 = vsel %vm480, %v477, -inf
    %485 = vmax.xlane.f32.xlu0 %v484
    %v486 = vpop.xlane.xlu0 %485
    %v487 = vsub.f32 %v472, %v483
    %v488 = vsub.f32 %v477, %v486
    %v489 = vmul.f32 %v487, 1.442695
    %v490 = vpow.pop %v489
    %v491 = vmul.f32 %v488, 1.442695
    %v492 = vpow.pop %v491
    %v494 = vsel %vm480, %v490, 0
    %v497 = vsel %vm480, %v492, 0
    %499 = vmatprep.subr.mxu0 0.0
    %500 = vmatpush1.msra.mxu0 0.0
    %501 = vmatprep.subr.mxu0 0.0
    %502 = vmatpush1.msra.mxu0 0.0
    %503 = vmatprep.subr.mxu0 0.0
    %504 = vmatpush1.msra.mxu0 0.0
    %505 = vmatprep.subr.mxu0 0.0
    %506 = vmatpush1.msra.mxu0 0.0
    %507 = vmatprep.subr.mxu0 0.0
    %508 = vmatpush1.msra.mxu0 0.0
    %509 = vmatprep.subr.mxu0 0.0
    %510 = vmatpush1.msra.mxu0 0.0
    %511 = vmatprep.subr.mxu0 0.0
    %512 = vmatpush1.msra.mxu0 0.0
    %513 = vmatprep.subr.mxu0 0.0
    %514 = vmatpush1.msra.mxu0 0.0
    %515 = vmatprep.subr.mxu0 0.0
    %516 = vmatpush1.msra.mxu0 %v171
    %517 = vmatprep.subr.mxu0 0.0
    %518 = vmatpush1.msra.mxu0 %v170
    %519 = vmatprep.subr.mxu0 0.0
    %520 = vmatpush1.msra.mxu0 %v169
    %521 = vmatprep.subr.mxu0 0.0
    %522 = vmatpush1.msra.mxu0 %v168
    %523 = vmatprep.subr.mxu0 0.0
    %524 = vmatpush1.msra.mxu0 %v167
    %525 = vmatprep.subr.mxu0 0.0
    %526 = vmatpush1.msra.mxu0 %v166
    %527 = vmatprep.subr.mxu0 0.0
    %528 = vmatpush1.msra.mxu0 %v165
    %529 = vmatprep.subr.mxu0 0.0
    %530 = vmatpush1.msra.mxu0 %v164
    %531 = vmatprep.subr.mxu0 0.0
    %532 = vmatpush2.msra.mxu0 0.0
    %533 = vmatprep.subr.mxu0 0.0
    %534 = vmatpush2.msra.mxu0 0.0
    %535 = vmatprep.subr.mxu0 0.0
    %536 = vmatpush2.msra.mxu0 0.0
    %537 = vmatprep.subr.mxu0 0.0
    %538 = vmatpush2.msra.mxu0 0.0
    %539 = vmatprep.subr.mxu0 0.0
    %540 = vmatpush2.msra.mxu0 0.0
    %541 = vmatprep.subr.mxu0 0.0
    %542 = vmatpush2.msra.mxu0 0.0
    %543 = vmatprep.subr.mxu0 0.0
    %544 = vmatpush2.msra.mxu0 0.0
    %545 = vmatprep.subr.mxu0 0.0
    %546 = vmatpush2.msra.mxu0 0.0
    %547 = vmatprep.subr.mxu0 0.0
    %548 = vmatpush2.msra.mxu0 0.0
    %549 = vmatprep.subr.mxu0 0.0
    %550 = vmatpush2.msra.mxu0 0.0
    %551 = vmatprep.subr.mxu0 0.0
    %552 = vmatpush2.msra.mxu0 0.0
    %553 = vmatprep.subr.mxu0 0.0
    %554 = vmatpush2.msra.mxu0 0.0
    %555 = vmatprep.subr.mxu0 0.0
    %556 = vmatpush2.msra.mxu0 0.0
    %557 = vmatprep.subr.mxu0 0.0
    %558 = vmatpush2.msra.mxu0 0.0
    %559 = vmatprep.subr.mxu0 0.0
    %560 = vmatpush2.msra.mxu0 0.0
    %561 = vmatprep.subr.mxu0 0.0
    %562 = vmatpush2.msra.mxu0 0.0
    %563 = vmatprep.mubr.f32.mxu0 0.0
    %564 = vmatmul.mubr.f32.gmra.mxu0 %v494
    %v565 = vpop.f32.mrf.mxu0
    %v566 = vadd.f32 1e-30, %v565
    %v567 = vpop.f32.mrf.mxu0
    %568 = vmatprep.mubr.f32.mxu0 0.0
    %569 = vmatmul.mubr.f32.gmra.mxu0 %v497
    %v570 = vpop.f32.mrf.mxu0
    %v571 = vadd.f32 1e-30, %v570
    %v572 = vpop.f32.mrf.mxu0
    %573 = vdwg.mxu0
    %v574 = vrcp.pop %v566
    %v575 = vrcp.pop %v571
    %v576 = vmul.f32 %v490, %v574
    %v577 = vmul.f32 %v492, %v575
    %578 = vrot.lane.b32.xlu0 %v156, 64
    %v579 = vpop.permute.xlu0 %578
    %580 = vrot.lane.b32.xlu0 %v157, 64
    %v581 = vpop.permute.xlu0 %580
    %582 = vrot.lane.b32.xlu0 %v158, 64
    %v583 = vpop.permute.xlu0 %582
    %584 = vrot.lane.b32.xlu0 %v159, 64
    %v585 = vpop.permute.xlu0 %584
    %586 = vrot.lane.b32.xlu0 %v160, 64
    %v587 = vpop.permute.xlu0 %586
    %588 = vrot.lane.b32.xlu0 %v161, 64
    %v589 = vpop.permute.xlu0 %588
    %590 = vrot.lane.b32.xlu0 %v162, 64
    %v591 = vpop.permute.xlu0 %590
    %592 = vrot.lane.b32.xlu0 %v163, 64
    %v593 = vpop.permute.xlu0 %592
    %v602 = vmul.f32 %v297, %v579
    %v603 = vmul.f32 %v302, %v581
    %v604 = vmul.f32 %v297, %v583
    %v605 = vmul.f32 %v302, %v585
    %v606 = vmul.f32 %v297, %v587
    %v607 = vmul.f32 %v302, %v589
    %v608 = vmul.f32 %v297, %v591
    %v609 = vmul.f32 %v302, %v593
    %618 = vrot.lane.b32.xlu0 %v602, 64
    %v619 = vpop.permute.xlu0 %618
    %620 = vrot.lane.b32.xlu0 %v603, 64
    %v621 = vpop.permute.xlu0 %620
    %622 = vrot.lane.b32.xlu0 %v604, 64
    %v623 = vpop.permute.xlu0 %622
    %624 = vrot.lane.b32.xlu0 %v605, 64
    %v625 = vpop.permute.xlu0 %624
    %626 = vrot.lane.b32.xlu0 %v606, 64
    %v627 = vpop.permute.xlu0 %626
    %628 = vrot.lane.b32.xlu0 %v607, 64
    %v629 = vpop.permute.xlu0 %628
    %630 = vrot.lane.b32.xlu0 %v608, 64
    %v631 = vpop.permute.xlu0 %630
    %632 = vrot.lane.b32.xlu0 %v609, 64
    %v633 = vpop.permute.xlu0 %632
    %v643 = vsel %vm480, %v576, 0
    %v646 = vsel %vm480, %v577, 0
    %648 = vmatprep.subr.mxu0 0.0
    %649 = vmatpush1.msra.mxu0 0.0
    %650 = vmatprep.subr.mxu0 0.0
    %651 = vmatpush1.msra.mxu0 0.0
    %652 = vmatprep.subr.mxu0 0.0
    %653 = vmatpush1.msra.mxu0 0.0
    %654 = vmatprep.subr.mxu0 0.0
    %655 = vmatpush1.msra.mxu0 0.0
    %656 = vmatprep.subr.mxu0 0.0
    %657 = vmatpush1.msra.mxu0 0.0
    %658 = vmatprep.subr.mxu0 0.0
    %659 = vmatpush1.msra.mxu0 0.0
    %660 = vmatprep.subr.mxu0 0.0
    %661 = vmatpush1.msra.mxu0 0.0
    %662 = vmatprep.subr.mxu0 0.0
    %663 = vmatpush1.msra.mxu0 0.0
    %664 = vmatprep.subr.mxu0 0.0
    %665 = vmatpush1.msra.mxu0 %v633
    %666 = vmatprep.subr.mxu0 0.0
    %667 = vmatpush1.msra.mxu0 %v631
    %668 = vmatprep.subr.mxu0 0.0
    %669 = vmatpush1.msra.mxu0 %v629
    %670 = vmatprep.subr.mxu0 0.0
    %671 = vmatpush1.msra.mxu0 %v627
    %672 = vmatprep.subr.mxu0 0.0
    %673 = vmatpush1.msra.mxu0 %v625
    %674 = vmatprep.subr.mxu0 0.0
    %675 = vmatpush1.msra.mxu0 %v623
    %676 = vmatprep.subr.mxu0 0.0
    %677 = vmatpush1.msra.mxu0 %v621
    %678 = vmatprep.subr.mxu0 0.0
    %679 = vmatpush1.msra.mxu0 %v619
    %680 = vmatprep.subr.mxu0 0.0
    %681 = vmatpush2.msra.mxu0 0.0
    %682 = vmatprep.subr.mxu0 0.0
    %683 = vmatpush2.msra.mxu0 0.0
    %684 = vmatprep.subr.mxu0 0.0
    %685 = vmatpush2.msra.mxu0 0.0
    %686 = vmatprep.subr.mxu0 0.0
    %687 = vmatpush2.msra.mxu0 0.0
    %688 = vmatprep.subr.mxu0 0.0
    %689 = vmatpush2.msra.mxu0 0.0
    %690 = vmatprep.subr.mxu0 0.0
    %691 = vmatpush2.msra.mxu0 0.0
    %692 = vmatprep.subr.mxu0 0.0
    %693 = vmatpush2.msra.mxu0 0.0
    %694 = vmatprep.subr.mxu0 0.0
    %695 = vmatpush2.msra.mxu0 0.0
    %696 = vmatprep.subr.mxu0 0.0
    %697 = vmatpush2.msra.mxu0 0.0
    %698 = vmatprep.subr.mxu0 0.0
    %699 = vmatpush2.msra.mxu0 0.0
    %700 = vmatprep.subr.mxu0 0.0
    %701 = vmatpush2.msra.mxu0 0.0
    %702 = vmatprep.subr.mxu0 0.0
    %703 = vmatpush2.msra.mxu0 0.0
    %704 = vmatprep.subr.mxu0 0.0
    %705 = vmatpush2.msra.mxu0 0.0
    %706 = vmatprep.subr.mxu0 0.0
    %707 = vmatpush2.msra.mxu0 0.0
    %708 = vmatprep.subr.mxu0 0.0
    %709 = vmatpush2.msra.mxu0 0.0
    %710 = vmatprep.subr.mxu0 0.0
    %711 = vmatpush2.msra.mxu0 0.0
    %712 = vmatprep.mubr.f32.mxu0 0.0
    %713 = vmatmul.mubr.f32.gmra.mxu0 %v643
    %v714 = vpop.f32.mrf.mxu0
    %v715 = vadd.f32 0.0, %v714
    %v716 = vpop.f32.mrf.mxu0
    %717 = vmatprep.mubr.f32.mxu0 0.0
    %718 = vmatmul.mubr.f32.gmra.mxu0 %v646
    %v719 = vpop.f32.mrf.mxu0
    %v720 = vadd.f32 0.0, %v719
    %v721 = vpop.f32.mrf.mxu0
    %722 = vdwg.mxu0
    %v723 = vmul.f32 %v307, %v324
    %v724 = vmul.f32 %v312, %v326
    %v725 = vmul.f32 %v307, %v328
    %v726 = vmul.f32 %v312, %v330
    %v727 = vmul.f32 %v307, %v332
    %v728 = vmul.f32 %v312, %v334
    %v729 = vmul.f32 %v307, %v336
    %v730 = vmul.f32 %v312, %v338
    %739 = vrot.lane.b32.xlu0 %v723, 96
    %v740 = vpop.permute.xlu0 %739
    %741 = vrot.lane.b32.xlu0 %v724, 96
    %v742 = vpop.permute.xlu0 %741
    %743 = vrot.lane.b32.xlu0 %v725, 96
    %v744 = vpop.permute.xlu0 %743
    %745 = vrot.lane.b32.xlu0 %v726, 96
    %v746 = vpop.permute.xlu0 %745
    %747 = vrot.lane.b32.xlu0 %v727, 96
    %v748 = vpop.permute.xlu0 %747
    %749 = vrot.lane.b32.xlu0 %v728, 96
    %v750 = vpop.permute.xlu0 %749
    %751 = vrot.lane.b32.xlu0 %v729, 96
    %v752 = vpop.permute.xlu0 %751
    %753 = vrot.lane.b32.xlu0 %v730, 96
    %v754 = vpop.permute.xlu0 %753
    %v756 = vsel %vm109, %v307, 0
    %v759 = vsel %vm109, %v312, 0
    %v761 = vsel %vm109, %v740, 0
    %v763 = vsel %vm109, %v742, 0
    %v765 = vsel %vm109, %v744, 0
    %v767 = vsel %vm109, %v746, 0
    %v769 = vsel %vm109, %v748, 0
    %v771 = vsel %vm109, %v750, 0
    %v773 = vsel %vm109, %v752, 0
    %v775 = vsel %vm109, %v754, 0
    %777 = vmatprep.subr.mxu0 0.0
    %778 = vmatpush1.xpose.msra.mxu0 0.0
    %779 = vmatprep.subr.mxu0 0.0
    %780 = vmatpush1.xpose.msra.mxu0 0.0
    %781 = vmatprep.subr.mxu0 0.0
    %782 = vmatpush1.xpose.msra.mxu0 0.0
    %783 = vmatprep.subr.mxu0 0.0
    %784 = vmatpush1.xpose.msra.mxu0 0.0
    %785 = vmatprep.subr.mxu0 0.0
    %786 = vmatpush1.xpose.msra.mxu0 0.0
    %787 = vmatprep.subr.mxu0 0.0
    %788 = vmatpush1.xpose.msra.mxu0 0.0
    %789 = vmatprep.subr.mxu0 0.0
    %790 = vmatpush1.xpose.msra.mxu0 0.0
    %791 = vmatprep.subr.mxu0 0.0
    %792 = vmatpush1.xpose.msra.mxu0 0.0
    %793 = vmatprep.subr.mxu0 0.0
    %794 = vmatpush1.xpose.msra.mxu0 %v775
    %795 = vmatprep.subr.mxu0 0.0
    %796 = vmatpush1.xpose.msra.mxu0 %v773
    %797 = vmatprep.subr.mxu0 0.0
    %798 = vmatpush1.xpose.msra.mxu0 %v771
    %799 = vmatprep.subr.mxu0 0.0
    %800 = vmatpush1.xpose.msra.mxu0 %v769
    %801 = vmatprep.subr.mxu0 0.0
    %802 = vmatpush1.xpose.msra.mxu0 %v767
    %803 = vmatprep.subr.mxu0 0.0
    %804 = vmatpush1.xpose.msra.mxu0 %v765
    %805 = vmatprep.subr.mxu0 0.0
    %806 = vmatpush1.xpose.msra.mxu0 %v763
    %807 = vmatprep.subr.mxu0 0.0
    %808 = vmatpush1.xpose.msra.mxu0 %v761
    %809 = vmatprep.subr.mxu0 0.0
    %810 = vmatpush2.xpose.msra.mxu0 0.0
    %811 = vmatprep.subr.mxu0 0.0
    %812 = vmatpush2.xpose.msra.mxu0 0.0
    %813 = vmatprep.subr.mxu0 0.0
    %814 = vmatpush2.xpose.msra.mxu0 0.0
    %815 = vmatprep.subr.mxu0 0.0
    %816 = vmatpush2.xpose.msra.mxu0 0.0
    %817 = vmatprep.subr.mxu0 0.0
    %818 = vmatpush2.xpose.msra.mxu0 0.0
    %819 = vmatprep.subr.mxu0 0.0
    %820 = vmatpush2.xpose.msra.mxu0 0.0
    %821 = vmatprep.subr.mxu0 0.0
    %822 = vmatpush2.xpose.msra.mxu0 0.0
    %823 = vmatprep.subr.mxu0 0.0
    %824 = vmatpush2.xpose.msra.mxu0 0.0
    %825 = vmatprep.subr.mxu0 0.0
    %826 = vmatpush2.xpose.msra.mxu0 0.0
    %827 = vmatprep.subr.mxu0 0.0
    %828 = vmatpush2.xpose.msra.mxu0 0.0
    %829 = vmatprep.subr.mxu0 0.0
    %830 = vmatpush2.xpose.msra.mxu0 0.0
    %831 = vmatprep.subr.mxu0 0.0
    %832 = vmatpush2.xpose.msra.mxu0 0.0
    %833 = vmatprep.subr.mxu0 0.0
    %834 = vmatpush2.xpose.msra.mxu0 0.0
    %835 = vmatprep.subr.mxu0 0.0
    %836 = vmatpush2.xpose.msra.mxu0 0.0
    %837 = vmatprep.subr.mxu0 0.0
    %838 = vmatpush2.xpose.msra.mxu0 0.0
    %839 = vmatprep.subr.mxu0 0.0
    %840 = vmatpush2.xpose.msra.mxu0 0.0
    %841 = vmatprep.mubr.f32.mxu0 0.0
    %842 = vmatmul.mubr.f32.gmra.mxu0 %v756
    %v843 = vpop.f32.mrf.mxu0
    %v844 = vadd.f32 %v358, %v843
    %v845 = vpop.f32.mrf.mxu0
    %846 = vmatprep.mubr.f32.mxu0 0.0
    %847 = vmatmul.mubr.f32.gmra.mxu0 %v759
    %v848 = vpop.f32.mrf.mxu0
    %v849 = vadd.f32 %v358, %v848
    %v850 = vpop.f32.mrf.mxu0
    %851 = vdwg.mxu0
    %v852 = vsel %vm480, %v844, -inf
    %853 = vmax.xlane.f32.xlu0 %v852
    %v854 = vpop.xlane.xlu0 %853
    %v855 = vsel %vm480, %v849, -inf
    %856 = vmax.xlane.f32.xlu0 %v855
    %v857 = vpop.xlane.xlu0 %856
    %v858 = vsub.f32 %v844, %v854
    %v859 = vsub.f32 %v849, %v857
    %v860 = vmul.f32 %v858, 1.442695
    %v861 = vpow.pop %v860
    %v862 = vmul.f32 %v859, 1.442695
    %v863 = vpow.pop %v862
    %v865 = vsel %vm480, %v861, 0
    %v868 = vsel %vm480, %v863, 0
    %870 = vmatprep.subr.mxu0 0.0
    %871 = vmatpush1.msra.mxu0 0.0
    %872 = vmatprep.subr.mxu0 0.0
    %873 = vmatpush1.msra.mxu0 0.0
    %874 = vmatprep.subr.mxu0 0.0
    %875 = vmatpush1.msra.mxu0 0.0
    %876 = vmatprep.subr.mxu0 0.0
    %877 = vmatpush1.msra.mxu0 0.0
    %878 = vmatprep.subr.mxu0 0.0
    %879 = vmatpush1.msra.mxu0 0.0
    %880 = vmatprep.subr.mxu0 0.0
    %881 = vmatpush1.msra.mxu0 0.0
    %882 = vmatprep.subr.mxu0 0.0
    %883 = vmatpush1.msra.mxu0 0.0
    %884 = vmatprep.subr.mxu0 0.0
    %885 = vmatpush1.msra.mxu0 0.0
    %886 = vmatprep.subr.mxu0 0.0
    %887 = vmatpush1.msra.mxu0 %v171
    %888 = vmatprep.subr.mxu0 0.0
    %889 = vmatpush1.msra.mxu0 %v170
    %890 = vmatprep.subr.mxu0 0.0
    %891 = vmatpush1.msra.mxu0 %v169
    %892 = vmatprep.subr.mxu0 0.0
    %893 = vmatpush1.msra.mxu0 %v168
    %894 = vmatprep.subr.mxu0 0.0
    %895 = vmatpush1.msra.mxu0 %v167
    %896 = vmatprep.subr.mxu0 0.0
    %897 = vmatpush1.msra.mxu0 %v166
    %898 = vmatprep.subr.mxu0 0.0
    %899 = vmatpush1.msra.mxu0 %v165
    %900 = vmatprep.subr.mxu0 0.0
    %901 = vmatpush1.msra.mxu0 %v164
    %902 = vmatprep.subr.mxu0 0.0
    %903 = vmatpush2.msra.mxu0 0.0
    %904 = vmatprep.subr.mxu0 0.0
    %905 = vmatpush2.msra.mxu0 0.0
    %906 = vmatprep.subr.mxu0 0.0
    %907 = vmatpush2.msra.mxu0 0.0
    %908 = vmatprep.subr.mxu0 0.0
    %909 = vmatpush2.msra.mxu0 0.0
    %910 = vmatprep.subr.mxu0 0.0
    %911 = vmatpush2.msra.mxu0 0.0
    %912 = vmatprep.subr.mxu0 0.0
    %913 = vmatpush2.msra.mxu0 0.0
    %914 = vmatprep.subr.mxu0 0.0
    %915 = vmatpush2.msra.mxu0 0.0
    %916 = vmatprep.subr.mxu0 0.0
    %917 = vmatpush2.msra.mxu0 0.0
    %918 = vmatprep.subr.mxu0 0.0
    %919 = vmatpush2.msra.mxu0 0.0
    %920 = vmatprep.subr.mxu0 0.0
    %921 = vmatpush2.msra.mxu0 0.0
    %922 = vmatprep.subr.mxu0 0.0
    %923 = vmatpush2.msra.mxu0 0.0
    %924 = vmatprep.subr.mxu0 0.0
    %925 = vmatpush2.msra.mxu0 0.0
    %926 = vmatprep.subr.mxu0 0.0
    %927 = vmatpush2.msra.mxu0 0.0
    %928 = vmatprep.subr.mxu0 0.0
    %929 = vmatpush2.msra.mxu0 0.0
    %930 = vmatprep.subr.mxu0 0.0
    %931 = vmatpush2.msra.mxu0 0.0
    %932 = vmatprep.subr.mxu0 0.0
    %933 = vmatpush2.msra.mxu0 0.0
    %934 = vmatprep.mubr.f32.mxu0 0.0
    %935 = vmatmul.mubr.f32.gmra.mxu0 %v865
    %v936 = vpop.f32.mrf.mxu0
    %v937 = vadd.f32 1e-30, %v936
    %v938 = vpop.f32.mrf.mxu0
    %939 = vmatprep.mubr.f32.mxu0 0.0
    %940 = vmatmul.mubr.f32.gmra.mxu0 %v868
    %v941 = vpop.f32.mrf.mxu0
    %v942 = vadd.f32 1e-30, %v941
    %v943 = vpop.f32.mrf.mxu0
    %944 = vdwg.mxu0
    %v945 = vrcp.pop %v937
    %v946 = vrcp.pop %v942
    %v947 = vmul.f32 %v861, %v945
    %v948 = vmul.f32 %v863, %v946
    %v949 = vmul.f32 %v307, %v579
    %v950 = vmul.f32 %v312, %v581
    %v951 = vmul.f32 %v307, %v583
    %v952 = vmul.f32 %v312, %v585
    %v953 = vmul.f32 %v307, %v587
    %v954 = vmul.f32 %v312, %v589
    %v955 = vmul.f32 %v307, %v591
    %v956 = vmul.f32 %v312, %v593
    %965 = vrot.lane.b32.xlu0 %v949, 64
    %v966 = vpop.permute.xlu0 %965
    %967 = vrot.lane.b32.xlu0 %v950, 64
    %v968 = vpop.permute.xlu0 %967
    %969 = vrot.lane.b32.xlu0 %v951, 64
    %v970 = vpop.permute.xlu0 %969
    %971 = vrot.lane.b32.xlu0 %v952, 64
    %v972 = vpop.permute.xlu0 %971
    %973 = vrot.lane.b32.xlu0 %v953, 64
    %v974 = vpop.permute.xlu0 %973
    %975 = vrot.lane.b32.xlu0 %v954, 64
    %v976 = vpop.permute.xlu0 %975
    %977 = vrot.lane.b32.xlu0 %v955, 64
    %v978 = vpop.permute.xlu0 %977
    %979 = vrot.lane.b32.xlu0 %v956, 64
    %v980 = vpop.permute.xlu0 %979
    %v990 = vsel %vm480, %v947, 0
    %v993 = vsel %vm480, %v948, 0
    %995 = vmatprep.subr.mxu0 0.0
    %996 = vmatpush1.msra.mxu0 0.0
    %997 = vmatprep.subr.mxu0 0.0
    %998 = vmatpush1.msra.mxu0 0.0
    %999 = vmatprep.subr.mxu0 0.0
    %1000 = vmatpush1.msra.mxu0 0.0
    %1001 = vmatprep.subr.mxu0 0.0
    %1002 = vmatpush1.msra.mxu0 0.0
    %1003 = vmatprep.subr.mxu0 0.0
    %1004 = vmatpush1.msra.mxu0 0.0
    %1005 = vmatprep.subr.mxu0 0.0
    %1006 = vmatpush1.msra.mxu0 0.0
    %1007 = vmatprep.subr.mxu0 0.0
    %1008 = vmatpush1.msra.mxu0 0.0
    %1009 = vmatprep.subr.mxu0 0.0
    %1010 = vmatpush1.msra.mxu0 0.0
    %1011 = vmatprep.subr.mxu0 0.0
    %1012 = vmatpush1.msra.mxu0 %v980
    %1013 = vmatprep.subr.mxu0 0.0
    %1014 = vmatpush1.msra.mxu0 %v978
    %1015 = vmatprep.subr.mxu0 0.0
    %1016 = vmatpush1.msra.mxu0 %v976
    %1017 = vmatprep.subr.mxu0 0.0
    %1018 = vmatpush1.msra.mxu0 %v974
    %1019 = vmatprep.subr.mxu0 0.0
    %1020 = vmatpush1.msra.mxu0 %v972
    %1021 = vmatprep.subr.mxu0 0.0
    %1022 = vmatpush1.msra.mxu0 %v970
    %1023 = vmatprep.subr.mxu0 0.0
    %1024 = vmatpush1.msra.mxu0 %v968
    %1025 = vmatprep.subr.mxu0 0.0
    %1026 = vmatpush1.msra.mxu0 %v966
    %1027 = vmatprep.subr.mxu0 0.0
    %1028 = vmatpush2.msra.mxu0 0.0
    %1029 = vmatprep.subr.mxu0 0.0
    %1030 = vmatpush2.msra.mxu0 0.0
    %1031 = vmatprep.subr.mxu0 0.0
    %1032 = vmatpush2.msra.mxu0 0.0
    %1033 = vmatprep.subr.mxu0 0.0
    %1034 = vmatpush2.msra.mxu0 0.0
    %1035 = vmatprep.subr.mxu0 0.0
    %1036 = vmatpush2.msra.mxu0 0.0
    %1037 = vmatprep.subr.mxu0 0.0
    %1038 = vmatpush2.msra.mxu0 0.0
    %1039 = vmatprep.subr.mxu0 0.0
    %1040 = vmatpush2.msra.mxu0 0.0
    %1041 = vmatprep.subr.mxu0 0.0
    %1042 = vmatpush2.msra.mxu0 0.0
    %1043 = vmatprep.subr.mxu0 0.0
    %1044 = vmatpush2.msra.mxu0 0.0
    %1045 = vmatprep.subr.mxu0 0.0
    %1046 = vmatpush2.msra.mxu0 0.0
    %1047 = vmatprep.subr.mxu0 0.0
    %1048 = vmatpush2.msra.mxu0 0.0
    %1049 = vmatprep.subr.mxu0 0.0
    %1050 = vmatpush2.msra.mxu0 0.0
    %1051 = vmatprep.subr.mxu0 0.0
    %1052 = vmatpush2.msra.mxu0 0.0
    %1053 = vmatprep.subr.mxu0 0.0
    %1054 = vmatpush2.msra.mxu0 0.0
    %1055 = vmatprep.subr.mxu0 0.0
    %1056 = vmatpush2.msra.mxu0 0.0
    %1057 = vmatprep.subr.mxu0 0.0
    %1058 = vmatpush2.msra.mxu0 0.0
    %1059 = vmatprep.mubr.f32.mxu0 0.0
    %1060 = vmatmul.mubr.f32.gmra.mxu0 %v990
    %v1061 = vpop.f32.mrf.mxu0
    %v1062 = vadd.f32 0.0, %v1061
    %v1063 = vpop.f32.mrf.mxu0
    %1064 = vmatprep.mubr.f32.mxu0 0.0
    %1065 = vmatmul.mubr.f32.gmra.mxu0 %v993
    %v1066 = vpop.f32.mrf.mxu0
    %v1067 = vadd.f32 0.0, %v1066
    %v1068 = vpop.f32.mrf.mxu0
    %1069 = vdwg.mxu0
    %v1070 = vld [vmem:[%s2 + $0x28] sm:$0xff]
    %v1071 = vld [vmem:[%s2 + $0x30] sm:$0xff]
    %v1072 = vld [vmem:[%s2 + $0x38] sm:$0xff]
    %v1073 = vld [vmem:[%s2 + $0x40] sm:$0xff]
    %v1075 = vsel %vm109, %v715, 0
    %v1078 = vsel %vm109, %v720, 0
    %v1081 = vsel %vm109, %v1062, 0
    %v1084 = vsel %vm109, %v1067, 0
    %1086 = vmatprep.subr.mxu0 0.0
    %1087 = vmatpush1.msra.mxu0 0.0
    %1088 = vmatprep.subr.mxu0 0.0
    %1089 = vmatpush1.msra.mxu0 0.0
    %1090 = vmatprep.subr.mxu0 0.0
    %1091 = vmatpush1.msra.mxu0 0.0
    %1092 = vmatprep.subr.mxu0 0.0
    %1093 = vmatpush1.msra.mxu0 0.0
    %1094 = vmatprep.subr.mxu0 0.0
    %1095 = vmatpush1.msra.mxu0 0.0
    %1096 = vmatprep.subr.mxu0 0.0
    %1097 = vmatpush1.msra.mxu0 0.0
    %1098 = vmatprep.subr.mxu0 0.0
    %1099 = vmatpush1.msra.mxu0 0.0
    %1100 = vmatprep.subr.mxu0 0.0
    %1101 = vmatpush1.msra.mxu0 0.0
    %1102 = vmatprep.subr.mxu0 0.0
    %1103 = vmatpush1.msra.mxu0 0.0
    %1104 = vmatprep.subr.mxu0 0.0
    %1105 = vmatpush1.msra.mxu0 0.0
    %1106 = vmatprep.subr.mxu0 0.0
    %1107 = vmatpush1.msra.mxu0 0.0
    %1108 = vmatprep.subr.mxu0 0.0
    %1109 = vmatpush1.msra.mxu0 0.0
    %1110 = vmatprep.subr.mxu0 0.0
    %1111 = vmatpush1.msra.mxu0 %v1073
    %1112 = vmatprep.subr.mxu0 0.0
    %1113 = vmatpush1.msra.mxu0 %v1072
    %1114 = vmatprep.subr.mxu0 0.0
    %1115 = vmatpush1.msra.mxu0 %v1071
    %1116 = vmatprep.subr.mxu0 0.0
    %1117 = vmatpush1.msra.mxu0 %v1070
    %1118 = vmatprep.subr.mxu0 0.0
    %1119 = vmatpush2.msra.mxu0 0.0
    %1120 = vmatprep.subr.mxu0 0.0
    %1121 = vmatpush2.msra.mxu0 0.0
    %1122 = vmatprep.subr.mxu0 0.0
    %1123 = vmatpush2.msra.mxu0 0.0
    %1124 = vmatprep.subr.mxu0 0.0
    %1125 = vmatpush2.msra.mxu0 0.0
    %1126 = vmatprep.subr.mxu0 0.0
    %1127 = vmatpush2.msra.mxu0 0.0
    %1128 = vmatprep.subr.mxu0 0.0
    %1129 = vmatpush2.msra.mxu0 0.0
    %1130 = vmatprep.subr.mxu0 0.0
    %1131 = vmatpush2.msra.mxu0 0.0
    %1132 = vmatprep.subr.mxu0 0.0
    %1133 = vmatpush2.msra.mxu0 0.0
    %1134 = vmatprep.subr.mxu0 0.0
    %1135 = vmatpush2.msra.mxu0 0.0
    %1136 = vmatprep.subr.mxu0 0.0
    %1137 = vmatpush2.msra.mxu0 0.0
    %1138 = vmatprep.subr.mxu0 0.0
    %1139 = vmatpush2.msra.mxu0 0.0
    %1140 = vmatprep.subr.mxu0 0.0
    %1141 = vmatpush2.msra.mxu0 0.0
    %1142 = vmatprep.subr.mxu0 0.0
    %1143 = vmatpush2.msra.mxu0 0.0
    %1144 = vmatprep.subr.mxu0 0.0
    %1145 = vmatpush2.msra.mxu0 0.0
    %1146 = vmatprep.subr.mxu0 0.0
    %1147 = vmatpush2.msra.mxu0 0.0
    %1148 = vmatprep.subr.mxu0 0.0
    %1149 = vmatpush2.msra.mxu0 0.0
    %1150 = vmatprep.mubr.f32.mxu0 0.0
    %1151 = vmatmul.mubr.f32.gmra.mxu0 %v1075
    %v1152 = vpop.f32.mrf.mxu0
    %v1153 = vadd.f32 0.0, %v1152
    %v1154 = vpop.f32.mrf.mxu0
    %1155 = vmatprep.mubr.f32.mxu0 0.0
    %1156 = vmatmul.mubr.f32.gmra.mxu0 %v1078
    %v1157 = vpop.f32.mrf.mxu0
    %v1158 = vadd.f32 0.0, %v1157
    %v1159 = vpop.f32.mrf.mxu0
    %1160 = vmatprep.mubr.f32.mxu0 0.0
    %1161 = vmatmul.mubr.f32.gmra.mxu0 %v1081
    %v1162 = vpop.f32.mrf.mxu0
    %v1163 = vadd.f32 0.0, %v1162
    %v1164 = vpop.f32.mrf.mxu0
    %1165 = vmatprep.mubr.f32.mxu0 0.0
    %1166 = vmatmul.mubr.f32.gmra.mxu0 %v1084
    %v1167 = vpop.f32.mrf.mxu0
    %v1168 = vadd.f32 0.0, %v1167
    %v1169 = vpop.f32.mrf.mxu0
    %1170 = vdwg.mxu0
    %v1171 = vadd.f32 %v153, %v1153
    %v1172 = vadd.f32 %v155, %v1158
    %v1173 = vadd.f32 %v154, %v1163
    %v1174 = vadd.f32 %v155, %v1168
    %v1175 = vld [vmem:[%s2 + $0x48] sm:$0x1]
    %v1176 = vlaneseq
    %v1177 = vshrl.u32 %v1176, 7
    %v1178 = vsub.s32 0, %v1177
    %v1179 = vrot.slane %v1175, %v1178
    %v1180 = vadd.f32 %v1171, %v1179
    %v1181 = vadd.f32 %v1172, %v1179
    %v1182 = vadd.f32 %v1173, %v1179
    %v1183 = vadd.f32 %v1174, %v1179
    %v1184 = vsel %vm109, %v1180, 0.0
    %1185 = vadd.xlane.f32.xlu0 %v1184
    %v1186 = vpop.xlane.xlu0 %1185
    %v1187 = vsel %vm109, %v1181, 0.0
    %1188 = vadd.xlane.f32.xlu0 %v1187
    %v1189 = vpop.xlane.xlu0 %1188
    %v1190 = vsel %vm109, %v1182, 0.0
    %1191 = vadd.xlane.f32.xlu0 %v1190
    %v1192 = vpop.xlane.xlu0 %1191
    %v1193 = vsel %vm109, %v1183, 0.0
    %1194 = vadd.xlane.f32.xlu0 %v1193
    %v1195 = vpop.xlane.xlu0 %1194
    %v1196 = vmul.f32 %v1186, %v116
    %v1197 = vmul.f32 %v1189, %v116
    %v1198 = vmul.f32 %v1192, %v116
    %v1199 = vmul.f32 %v1195, %v116
    %v1200 = vsub.f32 %v1180, %v1196
    %v1201 = vsub.f32 %v1181, %v1197
    %v1202 = vsub.f32 %v1182, %v1198
    %v1203 = vsub.f32 %v1183, %v1199
    %v1204 = vmul.f32 %v1200, %v1200
    %v1205 = vmul.f32 %v1201, %v1201
    %v1206 = vmul.f32 %v1202, %v1202
    %v1207 = vmul.f32 %v1203, %v1203
    %v1208 = vsel %vm109, %v1204, 0.0
    %1209 = vadd.xlane.f32.xlu0 %v1208
    %v1210 = vpop.xlane.xlu0 %1209
    %v1211 = vsel %vm109, %v1205, 0.0
    %1212 = vadd.xlane.f32.xlu0 %v1211
    %v1213 = vpop.xlane.xlu0 %1212
    %v1214 = vsel %vm109, %v1206, 0.0
    %1215 = vadd.xlane.f32.xlu0 %v1214
    %v1216 = vpop.xlane.xlu0 %1215
    %v1217 = vsel %vm109, %v1207, 0.0
    %1218 = vadd.xlane.f32.xlu0 %v1217
    %v1219 = vpop.xlane.xlu0 %1218
    %v1220 = vmul.f32 %v1210, %v116
    %v1221 = vmul.f32 %v1213, %v116
    %v1222 = vmul.f32 %v1216, %v116
    %v1223 = vmul.f32 %v1219, %v116
    %v1224 = vadd.f32 %v1220, 1e-05
    %v1225 = vadd.f32 %v1221, 1e-05
    %v1226 = vadd.f32 %v1222, 1e-05
    %v1227 = vadd.f32 %v1223, 1e-05
    %v1228 = vrsqrt.pop %v1224
    %v1229 = vrsqrt.pop %v1225
    %v1230 = vrsqrt.pop %v1226
    %v1231 = vrsqrt.pop %v1227
    %v1232 = vmul.f32 %v1200, %v1228
    %v1233 = vmul.f32 %v1201, %v1229
    %v1234 = vmul.f32 %v1202, %v1230
    %v1235 = vmul.f32 %v1203, %v1231
    %v1236 = vld [vmem:[%s2 + $0x50] sm:$0xff]
    %v1237 = vld [vmem:[%s2 + $0x58] sm:$0xff]
    %v1238 = vld [vmem:[%s2 + $0x60] sm:$0xff]
    %v1239 = vld [vmem:[%s2 + $0x68] sm:$0xff]
    %v1240 = vld [vmem:[%s2 + $0x70] sm:$0x1]
    %v1241 = vlaneseq
    %v1242 = vshrl.u32 %v1241, 7
    %v1243 = vsub.s32 0, %v1242
    %v1244 = vrot.slane %v1240, %v1243
    %v1246 = vsel %vm109, %v1232, 0
    %v1249 = vsel %vm109, %v1233, 0
    %v1252 = vsel %vm109, %v1234, 0
    %v1255 = vsel %vm109, %v1235, 0
    %1257 = vmatprep.subr.mxu0 0.0
    %1258 = vmatpush1.msra.mxu0 0.0
    %1259 = vmatprep.subr.mxu0 0.0
    %1260 = vmatpush1.msra.mxu0 0.0
    %1261 = vmatprep.subr.mxu0 0.0
    %1262 = vmatpush1.msra.mxu0 0.0
    %1263 = vmatprep.subr.mxu0 0.0
    %1264 = vmatpush1.msra.mxu0 0.0
    %1265 = vmatprep.subr.mxu0 0.0
    %1266 = vmatpush1.msra.mxu0 0.0
    %1267 = vmatprep.subr.mxu0 0.0
    %1268 = vmatpush1.msra.mxu0 0.0
    %1269 = vmatprep.subr.mxu0 0.0
    %1270 = vmatpush1.msra.mxu0 0.0
    %1271 = vmatprep.subr.mxu0 0.0
    %1272 = vmatpush1.msra.mxu0 0.0
    %1273 = vmatprep.subr.mxu0 0.0
    %1274 = vmatpush1.msra.mxu0 0.0
    %1275 = vmatprep.subr.mxu0 0.0
    %1276 = vmatpush1.msra.mxu0 0.0
    %1277 = vmatprep.subr.mxu0 0.0
    %1278 = vmatpush1.msra.mxu0 0.0
    %1279 = vmatprep.subr.mxu0 0.0
    %1280 = vmatpush1.msra.mxu0 0.0
    %1281 = vmatprep.subr.mxu0 0.0
    %1282 = vmatpush1.msra.mxu0 %v1239
    %1283 = vmatprep.subr.mxu0 0.0
    %1284 = vmatpush1.msra.mxu0 %v1238
    %1285 = vmatprep.subr.mxu0 0.0
    %1286 = vmatpush1.msra.mxu0 %v1237
    %1287 = vmatprep.subr.mxu0 0.0
    %1288 = vmatpush1.msra.mxu0 %v1236
    %1289 = vmatprep.subr.mxu0 0.0
    %1290 = vmatpush2.msra.mxu0 0.0
    %1291 = vmatprep.subr.mxu0 0.0
    %1292 = vmatpush2.msra.mxu0 0.0
    %1293 = vmatprep.subr.mxu0 0.0
    %1294 = vmatpush2.msra.mxu0 0.0
    %1295 = vmatprep.subr.mxu0 0.0
    %1296 = vmatpush2.msra.mxu0 0.0
    %1297 = vmatprep.subr.mxu0 0.0
    %1298 = vmatpush2.msra.mxu0 0.0
    %1299 = vmatprep.subr.mxu0 0.0
    %1300 = vmatpush2.msra.mxu0 0.0
    %1301 = vmatprep.subr.mxu0 0.0
    %1302 = vmatpush2.msra.mxu0 0.0
    %1303 = vmatprep.subr.mxu0 0.0
    %1304 = vmatpush2.msra.mxu0 0.0
    %1305 = vmatprep.subr.mxu0 0.0
    %1306 = vmatpush2.msra.mxu0 0.0
    %1307 = vmatprep.subr.mxu0 0.0
    %1308 = vmatpush2.msra.mxu0 0.0
    %1309 = vmatprep.subr.mxu0 0.0
    %1310 = vmatpush2.msra.mxu0 0.0
    %1311 = vmatprep.subr.mxu0 0.0
    %1312 = vmatpush2.msra.mxu0 0.0
    %1313 = vmatprep.subr.mxu0 0.0
    %1314 = vmatpush2.msra.mxu0 0.0
    %1315 = vmatprep.subr.mxu0 0.0
    %1316 = vmatpush2.msra.mxu0 0.0
    %1317 = vmatprep.subr.mxu0 0.0
    %1318 = vmatpush2.msra.mxu0 0.0
    %1319 = vmatprep.subr.mxu0 0.0
    %1320 = vmatpush2.msra.mxu0 0.0
    %1321 = vmatprep.mubr.f32.mxu0 0.0
    %1322 = vmatmul.mubr.f32.gmra.mxu0 %v1246
    %v1323 = vpop.f32.mrf.mxu0
    %v1324 = vadd.f32 %v1244, %v1323
    %v1325 = vpop.f32.mrf.mxu0
    %1326 = vmatprep.mubr.f32.mxu0 0.0
    %1327 = vmatmul.mubr.f32.gmra.mxu0 %v1249
    %v1328 = vpop.f32.mrf.mxu0
    %v1329 = vadd.f32 %v1244, %v1328
    %v1330 = vpop.f32.mrf.mxu0
    %1331 = vmatprep.mubr.f32.mxu0 0.0
    %1332 = vmatmul.mubr.f32.gmra.mxu0 %v1252
    %v1333 = vpop.f32.mrf.mxu0
    %v1334 = vadd.f32 %v1244, %v1333
    %v1335 = vpop.f32.mrf.mxu0
    %1336 = vmatprep.mubr.f32.mxu0 0.0
    %1337 = vmatmul.mubr.f32.gmra.mxu0 %v1255
    %v1338 = vpop.f32.mrf.mxu0
    %v1339 = vadd.f32 %v1244, %v1338
    %v1340 = vpop.f32.mrf.mxu0
    %1341 = vdwg.mxu0
    %v1342 = vmul.f32 %v1324, 0.5
    %v1343 = vmul.f32 %v1329, 0.5
    %v1344 = vmul.f32 %v1334, 0.5
    %v1345 = vmul.f32 %v1339, 0.5
    %v1346 = vmul.f32 %v1324, 0.70710677
    %v1347 = vmul.f32 %v1329, 0.70710677
    %v1348 = vmul.f32 %v1334, 0.70710677
    %v1349 = vmul.f32 %v1339, 0.70710677
    %vm1350 = vcmp.ge.f32.partialorder %v1346, 0.0
    %vm1351 = vcmp.ge.f32.partialorder %v1347, 0.0
    %vm1352 = vcmp.ge.f32.partialorder %v1348, 0.0
    %vm1353 = vcmp.ge.f32.partialorder %v1349, 0.0
    %v1354 = vsel %vm1350, 1.0, -1.0
    %v1355 = vsel %vm1351, 1.0, -1.0
    %v1356 = vsel %vm1352, 1.0, -1.0
    %v1357 = vsel %vm1353, 1.0, -1.0
    %v1358 = vand.u32 2147483647, %v1346
    %v1359 = vand.u32 2147483647, %v1347
    %v1360 = vand.u32 2147483647, %v1348
    %v1361 = vand.u32 2147483647, %v1349
    %v1362 = vmul.f32 %v1358, 0.3275911
    %v1363 = vmul.f32 %v1359, 0.3275911
    %v1364 = vmul.f32 %v1360, 0.3275911
    %v1365 = vmul.f32 %v1361, 0.3275911
    %v1366 = vadd.f32 %v1362, 1.0
    %v1367 = vadd.f32 %v1363, 1.0
    %v1368 = vadd.f32 %v1364, 1.0
    %v1369 = vadd.f32 %v1365, 1.0
    %v1370 = vrcp.pop %v1366
    %v1371 = vmul.f32 1.0, %v1370
    %v1372 = vrcp.pop %v1367
    %v1373 = vmul.f32 1.0, %v1372
    %v1374 = vrcp.pop %v1368
    %v1375 = vmul.f32 1.0, %v1374
    %v1376 = vrcp.pop %v1369
    %v1377 = vmul.f32 1.0, %v1376
    %v1378 = vmul.f32 %v1371, 1.0614054
    %v1379 = vmul.f32 %v1373, 1.0614054
    %v1380 = vmul.f32 %v1375, 1.0614054
    %v1381 = vmul.f32 %v1377, 1.0614054
    %v1382 = vadd.f32 %v1378, -1.4531521
    %v1383 = vadd.f32 %v1379, -1.4531521
    %v1384 = vadd.f32 %v1380, -1.4531521
    %v1385 = vadd.f32 %v1381, -1.4531521
    %v1386 = vmul.f32 %v1382, %v1371
    %v1387 = vmul.f32 %v1383, %v1373
    %v1388 = vmul.f32 %v1384, %v1375
    %v1389 = vmul.f32 %v1385, %v1377
    %v1390 = vadd.f32 %v1386, 1.4214138
    %v1391 = vadd.f32 %v1387, 1.4214138
    %v1392 = vadd.f32 %v1388, 1.4214138
    %v1393 = vadd.f32 %v1389, 1.4214138
    %v1394 = vmul.f32 %v1390, %v1371
    %v1395 = vmul.f32 %v1391, %v1373
    %v1396 = vmul.f32 %v1392, %v1375
    %v1397 = vmul.f32 %v1393, %v1377
    %v1398 = vadd.f32 %v1394, -0.28449672
    %v1399 = vadd.f32 %v1395, -0.28449672
    %v1400 = vadd.f32 %v1396, -0.28449672
    %v1401 = vadd.f32 %v1397, -0.28449672
    %v1402 = vmul.f32 %v1398, %v1371
    %v1403 = vmul.f32 %v1399, %v1373
    %v1404 = vmul.f32 %v1400, %v1375
    %v1405 = vmul.f32 %v1401, %v1377
    %v1406 = vadd.f32 %v1402, 0.2548296
    %v1407 = vadd.f32 %v1403, 0.2548296
    %v1408 = vadd.f32 %v1404, 0.2548296
    %v1409 = vadd.f32 %v1405, 0.2548296
    %v1410 = vmul.f32 %v1406, %v1371
    %v1411 = vmul.f32 %v1407, %v1373
    %v1412 = vmul.f32 %v1408, %v1375
    %v1413 = vmul.f32 %v1409, %v1377
    %v1414 = vsub.f32 0.0, %v1358
    %v1415 = vsub.f32 0.0, %v1359
    %v1416 = vsub.f32 0.0, %v1360
    %v1417 = vsub.f32 0.0, %v1361
    %v1418 = vmul.f32 %v1414, %v1358
    %v1419 = vmul.f32 %v1415, %v1359
    %v1420 = vmul.f32 %v1416, %v1360
    %v1421 = vmul.f32 %v1417, %v1361
    %v1422 = vmul.f32 %v1418, 1.442695
    %v1423 = vpow.pop %v1422
    %v1424 = vmul.f32 %v1419, 1.442695
    %v1425 = vpow.pop %v1424
    %v1426 = vmul.f32 %v1420, 1.442695
    %v1427 = vpow.pop %v1426
    %v1428 = vmul.f32 %v1421, 1.442695
    %v1429 = vpow.pop %v1428
    %v1430 = vmul.f32 %v1410, %v1423
    %v1431 = vmul.f32 %v1411, %v1425
    %v1432 = vmul.f32 %v1412, %v1427
    %v1433 = vmul.f32 %v1413, %v1429
    %v1434 = vsub.f32 1.0, %v1430
    %v1435 = vsub.f32 1.0, %v1431
    %v1436 = vsub.f32 1.0, %v1432
    %v1437 = vsub.f32 1.0, %v1433
    %v1438 = vmul.f32 %v1354, %v1434
    %v1439 = vmul.f32 %v1355, %v1435
    %v1440 = vmul.f32 %v1356, %v1436
    %v1441 = vmul.f32 %v1357, %v1437
    %v1442 = vadd.f32 %v1438, 1.0
    %v1443 = vadd.f32 %v1439, 1.0
    %v1444 = vadd.f32 %v1440, 1.0
    %v1445 = vadd.f32 %v1441, 1.0
    %v1446 = vmul.f32 %v1342, %v1442
    %v1447 = vmul.f32 %v1343, %v1443
    %v1448 = vmul.f32 %v1344, %v1444
    %v1449 = vmul.f32 %v1345, %v1445
    %v1450 = vld [vmem:[%s2 + $0x78] sm:$0xff]
    %v1451 = vld [vmem:[%s2 + $0x80] sm:$0xff]
    %v1452 = vld [vmem:[%s2 + $0x88] sm:$0xff]
    %v1453 = vld [vmem:[%s2 + $0x90] sm:$0xff]
    %v1454 = vld [vmem:[%s2 + $0x98] sm:$0xff]
    %v1455 = vld [vmem:[%s2 + $0xa0] sm:$0xff]
    %v1456 = vld [vmem:[%s2 + $0xa8] sm:$0xff]
    %v1457 = vld [vmem:[%s2 + $0xb0] sm:$0xff]
    %v1459 = vsel %vm480, %v1446, 0
    %v1462 = vsel %vm480, %v1447, 0
    %v1465 = vsel %vm480, %v1448, 0
    %v1468 = vsel %vm480, %v1449, 0
    %1470 = vmatprep.subr.mxu0 0.0
    %1471 = vmatpush1.msra.mxu0 0.0
    %1472 = vmatprep.subr.mxu0 0.0
    %1473 = vmatpush1.msra.mxu0 0.0
    %1474 = vmatprep.subr.mxu0 0.0
    %1475 = vmatpush1.msra.mxu0 0.0
    %1476 = vmatprep.subr.mxu0 0.0
    %1477 = vmatpush1.msra.mxu0 0.0
    %1478 = vmatprep.subr.mxu0 0.0
    %1479 = vmatpush1.msra.mxu0 0.0
    %1480 = vmatprep.subr.mxu0 0.0
    %1481 = vmatpush1.msra.mxu0 0.0
    %1482 = vmatprep.subr.mxu0 0.0
    %1483 = vmatpush1.msra.mxu0 0.0
    %1484 = vmatprep.subr.mxu0 0.0
    %1485 = vmatpush1.msra.mxu0 0.0
    %1486 = vmatprep.subr.mxu0 0.0
    %1487 = vmatpush1.msra.mxu0 %v1457
    %1488 = vmatprep.subr.mxu0 0.0
    %1489 = vmatpush1.msra.mxu0 %v1456
    %1490 = vmatprep.subr.mxu0 0.0
    %1491 = vmatpush1.msra.mxu0 %v1455
    %1492 = vmatprep.subr.mxu0 0.0
    %1493 = vmatpush1.msra.mxu0 %v1454
    %1494 = vmatprep.subr.mxu0 0.0
    %1495 = vmatpush1.msra.mxu0 %v1453
    %1496 = vmatprep.subr.mxu0 0.0
    %1497 = vmatpush1.msra.mxu0 %v1452
    %1498 = vmatprep.subr.mxu0 0.0
    %1499 = vmatpush1.msra.mxu0 %v1451
    %1500 = vmatprep.subr.mxu0 0.0
    %1501 = vmatpush1.msra.mxu0 %v1450
    %1502 = vmatprep.subr.mxu0 0.0
    %1503 = vmatpush2.msra.mxu0 0.0
    %1504 = vmatprep.subr.mxu0 0.0
    %1505 = vmatpush2.msra.mxu0 0.0
    %1506 = vmatprep.subr.mxu0 0.0
    %1507 = vmatpush2.msra.mxu0 0.0
    %1508 = vmatprep.subr.mxu0 0.0
    %1509 = vmatpush2.msra.mxu0 0.0
    %1510 = vmatprep.subr.mxu0 0.0
    %1511 = vmatpush2.msra.mxu0 0.0
    %1512 = vmatprep.subr.mxu0 0.0
    %1513 = vmatpush2.msra.mxu0 0.0
    %1514 = vmatprep.subr.mxu0 0.0
    %1515 = vmatpush2.msra.mxu0 0.0
    %1516 = vmatprep.subr.mxu0 0.0
    %1517 = vmatpush2.msra.mxu0 0.0
    %1518 = vmatprep.subr.mxu0 0.0
    %1519 = vmatpush2.msra.mxu0 0.0
    %1520 = vmatprep.subr.mxu0 0.0
    %1521 = vmatpush2.msra.mxu0 0.0
    %1522 = vmatprep.subr.mxu0 0.0
    %1523 = vmatpush2.msra.mxu0 0.0
    %1524 = vmatprep.subr.mxu0 0.0
    %1525 = vmatpush2.msra.mxu0 0.0
    %1526 = vmatprep.subr.mxu0 0.0
    %1527 = vmatpush2.msra.mxu0 0.0
    %1528 = vmatprep.subr.mxu0 0.0
    %1529 = vmatpush2.msra.mxu0 0.0
    %1530 = vmatprep.subr.mxu0 0.0
    %1531 = vmatpush2.msra.mxu0 0.0
    %1532 = vmatprep.subr.mxu0 0.0
    %1533 = vmatpush2.msra.mxu0 0.0
    %1534 = vmatprep.mubr.f32.mxu0 0.0
    %1535 = vmatmul.mubr.f32.gmra.mxu0 %v1459
    %v1536 = vpop.f32.mrf.mxu0
    %v1537 = vadd.f32 0.0, %v1536
    %v1538 = vpop.f32.mrf.mxu0
    %1539 = vmatprep.mubr.f32.mxu0 0.0
    %1540 = vmatmul.mubr.f32.gmra.mxu0 %v1462
    %v1541 = vpop.f32.mrf.mxu0
    %v1542 = vadd.f32 0.0, %v1541
    %v1543 = vpop.f32.mrf.mxu0
    %1544 = vmatprep.mubr.f32.mxu0 0.0
    %1545 = vmatmul.mubr.f32.gmra.mxu0 %v1465
    %v1546 = vpop.f32.mrf.mxu0
    %v1547 = vadd.f32 0.0, %v1546
    %v1548 = vpop.f32.mrf.mxu0
    %1549 = vmatprep.mubr.f32.mxu0 0.0
    %1550 = vmatmul.mubr.f32.gmra.mxu0 %v1468
    %v1551 = vpop.f32.mrf.mxu0
    %v1552 = vadd.f32 0.0, %v1551
    %v1553 = vpop.f32.mrf.mxu0
    %1554 = vdwg.mxu0
    %v1555 = vadd.f32 %v1180, %v1537
    %v1556 = vadd.f32 %v1181, %v1542
    %v1557 = vadd.f32 %v1182, %v1547
    %v1558 = vadd.f32 %v1183, %v1552
    %v1559 = vld [vmem:[%s2 + $0xb8] sm:$0x1]
    %v1560 = vlaneseq
    %v1561 = vshrl.u32 %v1560, 7
    %v1562 = vsub.s32 0, %v1561
    %v1563 = vrot.slane %v1559, %v1562
    %v1564 = vadd.f32 %v1555, %v1563
    %v1565 = vadd.f32 %v1556, %v1563
    %v1566 = vadd.f32 %v1557, %v1563
    %v1567 = vadd.f32 %v1558, %v1563
    %v1568 = vsel %vm109, %v1564, 0.0
    %1569 = vadd.xlane.f32.xlu0 %v1568
    %v1570 = vpop.xlane.xlu0 %1569
    %v1571 = vsel %vm109, %v1565, 0.0
    %1572 = vadd.xlane.f32.xlu0 %v1571
    %v1573 = vpop.xlane.xlu0 %1572
    %v1574 = vsel %vm109, %v1566, 0.0
    %1575 = vadd.xlane.f32.xlu0 %v1574
    %v1576 = vpop.xlane.xlu0 %1575
    %v1577 = vsel %vm109, %v1567, 0.0
    %1578 = vadd.xlane.f32.xlu0 %v1577
    %v1579 = vpop.xlane.xlu0 %1578
    %v1580 = vmul.f32 %v1570, %v116
    %v1581 = vmul.f32 %v1573, %v116
    %v1582 = vmul.f32 %v1576, %v116
    %v1583 = vmul.f32 %v1579, %v116
    %v1584 = vsub.f32 %v1564, %v1580
    %v1585 = vsub.f32 %v1565, %v1581
    %v1586 = vsub.f32 %v1566, %v1582
    %v1587 = vsub.f32 %v1567, %v1583
    %v1588 = vmul.f32 %v1584, %v1584
    %v1589 = vmul.f32 %v1585, %v1585
    %v1590 = vmul.f32 %v1586, %v1586
    %v1591 = vmul.f32 %v1587, %v1587
    %v1592 = vsel %vm109, %v1588, 0.0
    %1593 = vadd.xlane.f32.xlu0 %v1592
    %v1594 = vpop.xlane.xlu0 %1593
    %v1595 = vsel %vm109, %v1589, 0.0
    %1596 = vadd.xlane.f32.xlu0 %v1595
    %v1597 = vpop.xlane.xlu0 %1596
    %v1598 = vsel %vm109, %v1590, 0.0
    %1599 = vadd.xlane.f32.xlu0 %v1598
    %v1600 = vpop.xlane.xlu0 %1599
    %v1601 = vsel %vm109, %v1591, 0.0
    %1602 = vadd.xlane.f32.xlu0 %v1601
    %v1603 = vpop.xlane.xlu0 %1602
    %v1604 = vmul.f32 %v1594, %v116
    %v1605 = vmul.f32 %v1597, %v116
    %v1606 = vmul.f32 %v1600, %v116
    %v1607 = vmul.f32 %v1603, %v116
    %v1608 = vadd.f32 %v1604, 1e-05
    %v1609 = vadd.f32 %v1605, 1e-05
    %v1610 = vadd.f32 %v1606, 1e-05
    %v1611 = vadd.f32 %v1607, 1e-05
    %v1612 = vrsqrt.pop %v1608
    %v1613 = vrsqrt.pop %v1609
    %v1614 = vrsqrt.pop %v1610
    %v1615 = vrsqrt.pop %v1611
    %v1616 = vmul.f32 %v1584, %v1612
    %v1617 = vmul.f32 %v1585, %v1613
    %v1618 = vmul.f32 %v1586, %v1614
    %v1619 = vmul.f32 %v1587, %v1615
    %s1620 = scalar_lea.vmem %s2, 192
    %v1621 = vld [vmem:[%s1620] sm:$0xff]
    %v1622 = vld [vmem:[%s1620 + $0x8] sm:$0xff]
    %v1623 = vld [vmem:[%s1620 + $0x10] sm:$0xff]
    %v1624 = vld [vmem:[%s1620 + $0x18] sm:$0xff]
    %v1625 = vld [vmem:[%s1620 + $0x20] sm:$0x1]
    %v1626 = vlaneseq
    %v1627 = vshrl.u32 %v1626, 7
    %v1628 = vsub.s32 0, %v1627
    %v1629 = vrot.slane %v1625, %v1628
    %v1631 = vsel %vm109, %v1616, 0
    %v1634 = vsel %vm109, %v1617, 0
    %v1637 = vsel %vm109, %v1618, 0
    %v1640 = vsel %vm109, %v1619, 0
    %1642 = vmatprep.subr.mxu0 0.0
    %1643 = vmatpush1.msra.mxu0 0.0
    %1644 = vmatprep.subr.mxu0 0.0
    %1645 = vmatpush1.msra.mxu0 0.0
    %1646 = vmatprep.subr.mxu0 0.0
    %1647 = vmatpush1.msra.mxu0 0.0
    %1648 = vmatprep.subr.mxu0 0.0
    %1649 = vmatpush1.msra.mxu0 0.0
    %1650 = vmatprep.subr.mxu0 0.0
    %1651 = vmatpush1.msra.mxu0 0.0
    %1652 = vmatprep.subr.mxu0 0.0
    %1653 = vmatpush1.msra.mxu0 0.0
    %1654 = vmatprep.subr.mxu0 0.0
    %1655 = vmatpush1.msra.mxu0 0.0
    %1656 = vmatprep.subr.mxu0 0.0
    %1657 = vmatpush1.msra.mxu0 0.0
    %1658 = vmatprep.subr.mxu0 0.0
    %1659 = vmatpush1.msra.mxu0 0.0
    %1660 = vmatprep.subr.mxu0 0.0
    %1661 = vmatpush1.msra.mxu0 0.0
    %1662 = vmatprep.subr.mxu0 0.0
    %1663 = vmatpush1.msra.mxu0 0.0
    %1664 = vmatprep.subr.mxu0 0.0
    %1665 = vmatpush1.msra.mxu0 0.0
    %1666 = vmatprep.subr.mxu0 0.0
    %1667 = vmatpush1.msra.mxu0 %v1624
    %1668 = vmatprep.subr.mxu0 0.0
    %1669 = vmatpush1.msra.mxu0 %v1623
    %1670 = vmatprep.subr.mxu0 0.0
    %1671 = vmatpush1.msra.mxu0 %v1622
    %1672 = vmatprep.subr.mxu0 0.0
    %1673 = vmatpush1.msra.mxu0 %v1621
    %1674 = vmatprep.subr.mxu0 0.0
    %1675 = vmatpush2.msra.mxu0 0.0
    %1676 = vmatprep.subr.mxu0 0.0
    %1677 = vmatpush2.msra.mxu0 0.0
    %1678 = vmatprep.subr.mxu0 0.0
    %1679 = vmatpush2.msra.mxu0 0.0
    %1680 = vmatprep.subr.mxu0 0.0
    %1681 = vmatpush2.msra.mxu0 0.0
    %1682 = vmatprep.subr.mxu0 0.0
    %1683 = vmatpush2.msra.mxu0 0.0
    %1684 = vmatprep.subr.mxu0 0.0
    %1685 = vmatpush2.msra.mxu0 0.0
    %1686 = vmatprep.subr.mxu0 0.0
    %1687 = vmatpush2.msra.mxu0 0.0
    %1688 = vmatprep.subr.mxu0 0.0
    %1689 = vmatpush2.msra.mxu0 0.0
    %1690 = vmatprep.subr.mxu0 0.0
    %1691 = vmatpush2.msra.mxu0 0.0
    %1692 = vmatprep.subr.mxu0 0.0
    %1693 = vmatpush2.msra.mxu0 0.0
    %1694 = vmatprep.subr.mxu0 0.0
    %1695 = vmatpush2.msra.mxu0 0.0
    %1696 = vmatprep.subr.mxu0 0.0
    %1697 = vmatpush2.msra.mxu0 0.0
    %1698 = vmatprep.subr.mxu0 0.0
    %1699 = vmatpush2.msra.mxu0 0.0
    %1700 = vmatprep.subr.mxu0 0.0
    %1701 = vmatpush2.msra.mxu0 0.0
    %1702 = vmatprep.subr.mxu0 0.0
    %1703 = vmatpush2.msra.mxu0 0.0
    %1704 = vmatprep.subr.mxu0 0.0
    %1705 = vmatpush2.msra.mxu0 0.0
    %1706 = vmatprep.mubr.f32.mxu0 0.0
    %1707 = vmatmul.mubr.f32.gmra.mxu0 %v1631
    %v1708 = vpop.f32.mrf.mxu0
    %v1709 = vadd.f32 %v1629, %v1708
    %v1710 = vpop.f32.mrf.mxu0
    %1711 = vmatprep.mubr.f32.mxu0 0.0
    %1712 = vmatmul.mubr.f32.gmra.mxu0 %v1634
    %v1713 = vpop.f32.mrf.mxu0
    %v1714 = vadd.f32 %v1629, %v1713
    %v1715 = vpop.f32.mrf.mxu0
    %1716 = vmatprep.mubr.f32.mxu0 0.0
    %1717 = vmatmul.mubr.f32.gmra.mxu0 %v1637
    %v1718 = vpop.f32.mrf.mxu0
    %v1719 = vadd.f32 %v1629, %v1718
    %v1720 = vpop.f32.mrf.mxu0
    %1721 = vmatprep.mubr.f32.mxu0 0.0
    %1722 = vmatmul.mubr.f32.gmra.mxu0 %v1640
    %v1723 = vpop.f32.mrf.mxu0
    %v1724 = vadd.f32 %v1629, %v1723
    %v1725 = vpop.f32.mrf.mxu0
    %1726 = vdwg.mxu0
    %v1727 = vmul.f32 %v1709, %v324
    %v1728 = vmul.f32 %v1714, %v326
    %v1729 = vmul.f32 %v1709, %v328
    %v1730 = vmul.f32 %v1714, %v330
    %v1731 = vmul.f32 %v1709, %v332
    %v1732 = vmul.f32 %v1714, %v334
    %v1733 = vmul.f32 %v1709, %v336
    %v1734 = vmul.f32 %v1714, %v338
    %1743 = vrot.lane.b32.xlu0 %v1727, 96
    %v1744 = vpop.permute.xlu0 %1743
    %1745 = vrot.lane.b32.xlu0 %v1728, 96
    %v1746 = vpop.permute.xlu0 %1745
    %1747 = vrot.lane.b32.xlu0 %v1729, 96
    %v1748 = vpop.permute.xlu0 %1747
    %1749 = vrot.lane.b32.xlu0 %v1730, 96
    %v1750 = vpop.permute.xlu0 %1749
    %1751 = vrot.lane.b32.xlu0 %v1731, 96
    %v1752 = vpop.permute.xlu0 %1751
    %1753 = vrot.lane.b32.xlu0 %v1732, 96
    %v1754 = vpop.permute.xlu0 %1753
    %1755 = vrot.lane.b32.xlu0 %v1733, 96
    %v1756 = vpop.permute.xlu0 %1755
    %1757 = vrot.lane.b32.xlu0 %v1734, 96
    %v1758 = vpop.permute.xlu0 %1757
    %v1760 = vsel %vm109, %v1709, 0
    %v1763 = vsel %vm109, %v1714, 0
    %v1765 = vsel %vm109, %v1744, 0
    %v1767 = vsel %vm109, %v1746, 0
    %v1769 = vsel %vm109, %v1748, 0
    %v1771 = vsel %vm109, %v1750, 0
    %v1773 = vsel %vm109, %v1752, 0
    %v1775 = vsel %vm109, %v1754, 0
    %v1777 = vsel %vm109, %v1756, 0
    %v1779 = vsel %vm109, %v1758, 0
    %1781 = vmatprep.subr.mxu0 0.0
    %1782 = vmatpush1.xpose.msra.mxu0 0.0
    %1783 = vmatprep.subr.mxu0 0.0
    %1784 = vmatpush1.xpose.msra.mxu0 0.0
    %1785 = vmatprep.subr.mxu0 0.0
    %1786 = vmatpush1.xpose.msra.mxu0 0.0
    %1787 = vmatprep.subr.mxu0 0.0
    %1788 = vmatpush1.xpose.msra.mxu0 0.0
    %1789 = vmatprep.subr.mxu0 0.0
    %1790 = vmatpush1.xpose.msra.mxu0 0.0
    %1791 = vmatprep.subr.mxu0 0.0
    %1792 = vmatpush1.xpose.msra.mxu0 0.0
    %1793 = vmatprep.subr.mxu0 0.0
    %1794 = vmatpush1.xpose.msra.mxu0 0.0
    %1795 = vmatprep.subr.mxu0 0.0
    %1796 = vmatpush1.xpose.msra.mxu0 0.0
    %1797 = vmatprep.subr.mxu0 0.0
    %1798 = vmatpush1.xpose.msra.mxu0 %v1779
    %1799 = vmatprep.subr.mxu0 0.0
    %1800 = vmatpush1.xpose.msra.mxu0 %v1777
    %1801 = vmatprep.subr.mxu0 0.0
    %1802 = vmatpush1.xpose.msra.mxu0 %v1775
    %1803 = vmatprep.subr.mxu0 0.0
    %1804 = vmatpush1.xpose.msra.mxu0 %v1773
    %1805 = vmatprep.subr.mxu0 0.0
    %1806 = vmatpush1.xpose.msra.mxu0 %v1771
    %1807 = vmatprep.subr.mxu0 0.0
    %1808 = vmatpush1.xpose.msra.mxu0 %v1769
    %1809 = vmatprep.subr.mxu0 0.0
    %1810 = vmatpush1.xpose.msra.mxu0 %v1767
    %1811 = vmatprep.subr.mxu0 0.0
    %1812 = vmatpush1.xpose.msra.mxu0 %v1765
    %1813 = vmatprep.subr.mxu0 0.0
    %1814 = vmatpush2.xpose.msra.mxu0 0.0
    %1815 = vmatprep.subr.mxu0 0.0
    %1816 = vmatpush2.xpose.msra.mxu0 0.0
    %1817 = vmatprep.subr.mxu0 0.0
    %1818 = vmatpush2.xpose.msra.mxu0 0.0
    %1819 = vmatprep.subr.mxu0 0.0
    %1820 = vmatpush2.xpose.msra.mxu0 0.0
    %1821 = vmatprep.subr.mxu0 0.0
    %1822 = vmatpush2.xpose.msra.mxu0 0.0
    %1823 = vmatprep.subr.mxu0 0.0
    %1824 = vmatpush2.xpose.msra.mxu0 0.0
    %1825 = vmatprep.subr.mxu0 0.0
    %1826 = vmatpush2.xpose.msra.mxu0 0.0
    %1827 = vmatprep.subr.mxu0 0.0
    %1828 = vmatpush2.xpose.msra.mxu0 0.0
    %1829 = vmatprep.subr.mxu0 0.0
    %1830 = vmatpush2.xpose.msra.mxu0 0.0
    %1831 = vmatprep.subr.mxu0 0.0
    %1832 = vmatpush2.xpose.msra.mxu0 0.0
    %1833 = vmatprep.subr.mxu0 0.0
    %1834 = vmatpush2.xpose.msra.mxu0 0.0
    %1835 = vmatprep.subr.mxu0 0.0
    %1836 = vmatpush2.xpose.msra.mxu0 0.0
    %1837 = vmatprep.subr.mxu0 0.0
    %1838 = vmatpush2.xpose.msra.mxu0 0.0
    %1839 = vmatprep.subr.mxu0 0.0
    %1840 = vmatpush2.xpose.msra.mxu0 0.0
    %1841 = vmatprep.subr.mxu0 0.0
    %1842 = vmatpush2.xpose.msra.mxu0 0.0
    %1843 = vmatprep.subr.mxu0 0.0
    %1844 = vmatpush2.xpose.msra.mxu0 0.0
    %1845 = vmatprep.mubr.f32.mxu0 0.0
    %1846 = vmatmul.mubr.f32.gmra.mxu0 %v1760
    %v1847 = vpop.f32.mrf.mxu0
    %v1848 = vadd.f32 %v358, %v1847
    %v1849 = vpop.f32.mrf.mxu0
    %1850 = vmatprep.mubr.f32.mxu0 0.0
    %1851 = vmatmul.mubr.f32.gmra.mxu0 %v1763
    %v1852 = vpop.f32.mrf.mxu0
    %v1853 = vadd.f32 %v358, %v1852
    %v1854 = vpop.f32.mrf.mxu0
    %1855 = vdwg.mxu0
    %v1856 = vsel %vm480, %v1848, -inf
    %1857 = vmax.xlane.f32.xlu0 %v1856
    %v1858 = vpop.xlane.xlu0 %1857
    %v1859 = vsel %vm480, %v1853, -inf
    %1860 = vmax.xlane.f32.xlu0 %v1859
    %v1861 = vpop.xlane.xlu0 %1860
    %v1862 = vsub.f32 %v1848, %v1858
    %v1863 = vsub.f32 %v1853, %v1861
    %v1864 = vmul.f32 %v1862, 1.442695
    %v1865 = vpow.pop %v1864
    %v1866 = vmul.f32 %v1863, 1.442695
    %v1867 = vpow.pop %v1866
    %v1869 = vsel %vm480, %v1865, 0
    %v1872 = vsel %vm480, %v1867, 0
    %1874 = vmatprep.subr.mxu0 0.0
    %1875 = vmatpush1.msra.mxu0 0.0
    %1876 = vmatprep.subr.mxu0 0.0
    %1877 = vmatpush1.msra.mxu0 0.0
    %1878 = vmatprep.subr.mxu0 0.0
    %1879 = vmatpush1.msra.mxu0 0.0
    %1880 = vmatprep.subr.mxu0 0.0
    %1881 = vmatpush1.msra.mxu0 0.0
    %1882 = vmatprep.subr.mxu0 0.0
    %1883 = vmatpush1.msra.mxu0 0.0
    %1884 = vmatprep.subr.mxu0 0.0
    %1885 = vmatpush1.msra.mxu0 0.0
    %1886 = vmatprep.subr.mxu0 0.0
    %1887 = vmatpush1.msra.mxu0 0.0
    %1888 = vmatprep.subr.mxu0 0.0
    %1889 = vmatpush1.msra.mxu0 0.0
    %1890 = vmatprep.subr.mxu0 0.0
    %1891 = vmatpush1.msra.mxu0 %v171
    %1892 = vmatprep.subr.mxu0 0.0
    %1893 = vmatpush1.msra.mxu0 %v170
    %1894 = vmatprep.subr.mxu0 0.0
    %1895 = vmatpush1.msra.mxu0 %v169
    %1896 = vmatprep.subr.mxu0 0.0
    %1897 = vmatpush1.msra.mxu0 %v168
    %1898 = vmatprep.subr.mxu0 0.0
    %1899 = vmatpush1.msra.mxu0 %v167
    %1900 = vmatprep.subr.mxu0 0.0
    %1901 = vmatpush1.msra.mxu0 %v166
    %1902 = vmatprep.subr.mxu0 0.0
    %1903 = vmatpush1.msra.mxu0 %v165
    %1904 = vmatprep.subr.mxu0 0.0
    %1905 = vmatpush1.msra.mxu0 %v164
    %1906 = vmatprep.subr.mxu0 0.0
    %1907 = vmatpush2.msra.mxu0 0.0
    %1908 = vmatprep.subr.mxu0 0.0
    %1909 = vmatpush2.msra.mxu0 0.0
    %1910 = vmatprep.subr.mxu0 0.0
    %1911 = vmatpush2.msra.mxu0 0.0
    %1912 = vmatprep.subr.mxu0 0.0
    %1913 = vmatpush2.msra.mxu0 0.0
    %1914 = vmatprep.subr.mxu0 0.0
    %1915 = vmatpush2.msra.mxu0 0.0
    %1916 = vmatprep.subr.mxu0 0.0
    %1917 = vmatpush2.msra.mxu0 0.0
    %1918 = vmatprep.subr.mxu0 0.0
    %1919 = vmatpush2.msra.mxu0 0.0
    %1920 = vmatprep.subr.mxu0 0.0
    %1921 = vmatpush2.msra.mxu0 0.0
    %1922 = vmatprep.subr.mxu0 0.0
    %1923 = vmatpush2.msra.mxu0 0.0
    %1924 = vmatprep.subr.mxu0 0.0
    %1925 = vmatpush2.msra.mxu0 0.0
    %1926 = vmatprep.subr.mxu0 0.0
    %1927 = vmatpush2.msra.mxu0 0.0
    %1928 = vmatprep.subr.mxu0 0.0
    %1929 = vmatpush2.msra.mxu0 0.0
    %1930 = vmatprep.subr.mxu0 0.0
    %1931 = vmatpush2.msra.mxu0 0.0
    %1932 = vmatprep.subr.mxu0 0.0
    %1933 = vmatpush2.msra.mxu0 0.0
    %1934 = vmatprep.subr.mxu0 0.0
    %1935 = vmatpush2.msra.mxu0 0.0
    %1936 = vmatprep.subr.mxu0 0.0
    %1937 = vmatpush2.msra.mxu0 0.0
    %1938 = vmatprep.mubr.f32.mxu0 0.0
    %1939 = vmatmul.mubr.f32.gmra.mxu0 %v1869
    %v1940 = vpop.f32.mrf.mxu0
    %v1941 = vadd.f32 1e-30, %v1940
    %v1942 = vpop.f32.mrf.mxu0
    %1943 = vmatprep.mubr.f32.mxu0 0.0
    %1944 = vmatmul.mubr.f32.gmra.mxu0 %v1872
    %v1945 = vpop.f32.mrf.mxu0
    %v1946 = vadd.f32 1e-30, %v1945
    %v1947 = vpop.f32.mrf.mxu0
    %1948 = vdwg.mxu0
    %v1949 = vrcp.pop %v1941
    %v1950 = vrcp.pop %v1946
    %v1951 = vmul.f32 %v1865, %v1949
    %v1952 = vmul.f32 %v1867, %v1950
    %v1953 = vmul.f32 %v1709, %v579
    %v1954 = vmul.f32 %v1714, %v581
    %v1955 = vmul.f32 %v1709, %v583
    %v1956 = vmul.f32 %v1714, %v585
    %v1957 = vmul.f32 %v1709, %v587
    %v1958 = vmul.f32 %v1714, %v589
    %v1959 = vmul.f32 %v1709, %v591
    %v1960 = vmul.f32 %v1714, %v593
    %1969 = vrot.lane.b32.xlu0 %v1953, 64
    %v1970 = vpop.permute.xlu0 %1969
    %1971 = vrot.lane.b32.xlu0 %v1954, 64
    %v1972 = vpop.permute.xlu0 %1971
    %1973 = vrot.lane.b32.xlu0 %v1955, 64
    %v1974 = vpop.permute.xlu0 %1973
    %1975 = vrot.lane.b32.xlu0 %v1956, 64
    %v1976 = vpop.permute.xlu0 %1975
    %1977 = vrot.lane.b32.xlu0 %v1957, 64
    %v1978 = vpop.permute.xlu0 %1977
    %1979 = vrot.lane.b32.xlu0 %v1958, 64
    %v1980 = vpop.permute.xlu0 %1979
    %1981 = vrot.lane.b32.xlu0 %v1959, 64
    %v1982 = vpop.permute.xlu0 %1981
    %1983 = vrot.lane.b32.xlu0 %v1960, 64
    %v1984 = vpop.permute.xlu0 %1983
    %v1994 = vsel %vm480, %v1951, 0
    %v1997 = vsel %vm480, %v1952, 0
    %1999 = vmatprep.subr.mxu0 0.0
    %2000 = vmatpush1.msra.mxu0 0.0
    %2001 = vmatprep.subr.mxu0 0.0
    %2002 = vmatpush1.msra.mxu0 0.0
    %2003 = vmatprep.subr.mxu0 0.0
    %2004 = vmatpush1.msra.mxu0 0.0
    %2005 = vmatprep.subr.mxu0 0.0
    %2006 = vmatpush1.msra.mxu0 0.0
    %2007 = vmatprep.subr.mxu0 0.0
    %2008 = vmatpush1.msra.mxu0 0.0
    %2009 = vmatprep.subr.mxu0 0.0
    %2010 = vmatpush1.msra.mxu0 0.0
    %2011 = vmatprep.subr.mxu0 0.0
    %2012 = vmatpush1.msra.mxu0 0.0
    %2013 = vmatprep.subr.mxu0 0.0
    %2014 = vmatpush1.msra.mxu0 0.0
    %2015 = vmatprep.subr.mxu0 0.0
    %2016 = vmatpush1.msra.mxu0 %v1984
    %2017 = vmatprep.subr.mxu0 0.0
    %2018 = vmatpush1.msra.mxu0 %v1982
    %2019 = vmatprep.subr.mxu0 0.0
    %2020 = vmatpush1.msra.mxu0 %v1980
    %2021 = vmatprep.subr.mxu0 0.0
    %2022 = vmatpush1.msra.mxu0 %v1978
    %2023 = vmatprep.subr.mxu0 0.0
    %2024 = vmatpush1.msra.mxu0 %v1976
    %2025 = vmatprep.subr.mxu0 0.0
    %2026 = vmatpush1.msra.mxu0 %v1974
    %2027 = vmatprep.subr.mxu0 0.0
    %2028 = vmatpush1.msra.mxu0 %v1972
    %2029 = vmatprep.subr.mxu0 0.0
    %2030 = vmatpush1.msra.mxu0 %v1970
    %2031 = vmatprep.subr.mxu0 0.0
    %2032 = vmatpush2.msra.mxu0 0.0
    %2033 = vmatprep.subr.mxu0 0.0
    %2034 = vmatpush2.msra.mxu0 0.0
    %2035 = vmatprep.subr.mxu0 0.0
    %2036 = vmatpush2.msra.mxu0 0.0
    %2037 = vmatprep.subr.mxu0 0.0
    %2038 = vmatpush2.msra.mxu0 0.0
    %2039 = vmatprep.subr.mxu0 0.0
    %2040 = vmatpush2.msra.mxu0 0.0
    %2041 = vmatprep.subr.mxu0 0.0
    %2042 = vmatpush2.msra.mxu0 0.0
    %2043 = vmatprep.subr.mxu0 0.0
    %2044 = vmatpush2.msra.mxu0 0.0
    %2045 = vmatprep.subr.mxu0 0.0
    %2046 = vmatpush2.msra.mxu0 0.0
    %2047 = vmatprep.subr.mxu0 0.0
    %2048 = vmatpush2.msra.mxu0 0.0
    %2049 = vmatprep.subr.mxu0 0.0
    %2050 = vmatpush2.msra.mxu0 0.0
    %2051 = vmatprep.subr.mxu0 0.0
    %2052 = vmatpush2.msra.mxu0 0.0
    %2053 = vmatprep.subr.mxu0 0.0
    %2054 = vmatpush2.msra.mxu0 0.0
    %2055 = vmatprep.subr.mxu0 0.0
    %2056 = vmatpush2.msra.mxu0 0.0
    %2057 = vmatprep.subr.mxu0 0.0
    %2058 = vmatpush2.msra.mxu0 0.0
    %2059 = vmatprep.subr.mxu0 0.0
    %2060 = vmatpush2.msra.mxu0 0.0
    %2061 = vmatprep.subr.mxu0 0.0
    %2062 = vmatpush2.msra.mxu0 0.0
    %2063 = vmatprep.mubr.f32.mxu0 0.0
    %2064 = vmatmul.mubr.f32.gmra.mxu0 %v1994
    %v2065 = vpop.f32.mrf.mxu0
    %v2066 = vadd.f32 0.0, %v2065
    %v2067 = vpop.f32.mrf.mxu0
    %2068 = vmatprep.mubr.f32.mxu0 0.0
    %2069 = vmatmul.mubr.f32.gmra.mxu0 %v1997
    %v2070 = vpop.f32.mrf.mxu0
    %v2071 = vadd.f32 0.0, %v2070
    %v2072 = vpop.f32.mrf.mxu0
    %2073 = vdwg.mxu0
    %v2074 = vmul.f32 %v1719, %v324
    %v2075 = vmul.f32 %v1724, %v326
    %v2076 = vmul.f32 %v1719, %v328
    %v2077 = vmul.f32 %v1724, %v330
    %v2078 = vmul.f32 %v1719, %v332
    %v2079 = vmul.f32 %v1724, %v334
    %v2080 = vmul.f32 %v1719, %v336
    %v2081 = vmul.f32 %v1724, %v338
    %2090 = vrot.lane.b32.xlu0 %v2074, 96
    %v2091 = vpop.permute.xlu0 %2090
    %2092 = vrot.lane.b32.xlu0 %v2075, 96
    %v2093 = vpop.permute.xlu0 %2092
    %2094 = vrot.lane.b32.xlu0 %v2076, 96
    %v2095 = vpop.permute.xlu0 %2094
    %2096 = vrot.lane.b32.xlu0 %v2077, 96
    %v2097 = vpop.permute.xlu0 %2096
    %2098 = vrot.lane.b32.xlu0 %v2078, 96
    %v2099 = vpop.permute.xlu0 %2098
    %2100 = vrot.lane.b32.xlu0 %v2079, 96
    %v2101 = vpop.permute.xlu0 %2100
    %2102 = vrot.lane.b32.xlu0 %v2080, 96
    %v2103 = vpop.permute.xlu0 %2102
    %2104 = vrot.lane.b32.xlu0 %v2081, 96
    %v2105 = vpop.permute.xlu0 %2104
    %v2107 = vsel %vm109, %v1719, 0
    %v2110 = vsel %vm109, %v1724, 0
    %v2112 = vsel %vm109, %v2091, 0
    %v2114 = vsel %vm109, %v2093, 0
    %v2116 = vsel %vm109, %v2095, 0
    %v2118 = vsel %vm109, %v2097, 0
    %v2120 = vsel %vm109, %v2099, 0
    %v2122 = vsel %vm109, %v2101, 0
    %v2124 = vsel %vm109, %v2103, 0
    %v2126 = vsel %vm109, %v2105, 0
    %2128 = vmatprep.subr.mxu0 0.0
    %2129 = vmatpush1.xpose.msra.mxu0 0.0
    %2130 = vmatprep.subr.mxu0 0.0
    %2131 = vmatpush1.xpose.msra.mxu0 0.0
    %2132 = vmatprep.subr.mxu0 0.0
    %2133 = vmatpush1.xpose.msra.mxu0 0.0
    %2134 = vmatprep.subr.mxu0 0.0
    %2135 = vmatpush1.xpose.msra.mxu0 0.0
    %2136 = vmatprep.subr.mxu0 0.0
    %2137 = vmatpush1.xpose.msra.mxu0 0.0
    %2138 = vmatprep.subr.mxu0 0.0
    %2139 = vmatpush1.xpose.msra.mxu0 0.0
    %2140 = vmatprep.subr.mxu0 0.0
    %2141 = vmatpush1.xpose.msra.mxu0 0.0
    %2142 = vmatprep.subr.mxu0 0.0
    %2143 = vmatpush1.xpose.msra.mxu0 0.0
    %2144 = vmatprep.subr.mxu0 0.0
    %2145 = vmatpush1.xpose.msra.mxu0 %v2126
    %2146 = vmatprep.subr.mxu0 0.0
    %2147 = vmatpush1.xpose.msra.mxu0 %v2124
    %2148 = vmatprep.subr.mxu0 0.0
    %2149 = vmatpush1.xpose.msra.mxu0 %v2122
    %2150 = vmatprep.subr.mxu0 0.0
    %2151 = vmatpush1.xpose.msra.mxu0 %v2120
    %2152 = vmatprep.subr.mxu0 0.0
    %2153 = vmatpush1.xpose.msra.mxu0 %v2118
    %2154 = vmatprep.subr.mxu0 0.0
    %2155 = vmatpush1.xpose.msra.mxu0 %v2116
    %2156 = vmatprep.subr.mxu0 0.0
    %2157 = vmatpush1.xpose.msra.mxu0 %v2114
    %2158 = vmatprep.subr.mxu0 0.0
    %2159 = vmatpush1.xpose.msra.mxu0 %v2112
    %2160 = vmatprep.subr.mxu0 0.0
    %2161 = vmatpush2.xpose.msra.mxu0 0.0
    %2162 = vmatprep.subr.mxu0 0.0
    %2163 = vmatpush2.xpose.msra.mxu0 0.0
    %2164 = vmatprep.subr.mxu0 0.0
    %2165 = vmatpush2.xpose.msra.mxu0 0.0
    %2166 = vmatprep.subr.mxu0 0.0
    %2167 = vmatpush2.xpose.msra.mxu0 0.0
    %2168 = vmatprep.subr.mxu0 0.0
    %2169 = vmatpush2.xpose.msra.mxu0 0.0
    %2170 = vmatprep.subr.mxu0 0.0
    %2171 = vmatpush2.xpose.msra.mxu0 0.0
    %2172 = vmatprep.subr.mxu0 0.0
    %2173 = vmatpush2.xpose.msra.mxu0 0.0
    %2174 = vmatprep.subr.mxu0 0.0
    %2175 = vmatpush2.xpose.msra.mxu0 0.0
    %2176 = vmatprep.subr.mxu0 0.0
    %2177 = vmatpush2.xpose.msra.mxu0 0.0
    %2178 = vmatprep.subr.mxu0 0.0
    %2179 = vmatpush2.xpose.msra.mxu0 0.0
    %2180 = vmatprep.subr.mxu0 0.0
    %2181 = vmatpush2.xpose.msra.mxu0 0.0
    %2182 = vmatprep.subr.mxu0 0.0
    %2183 = vmatpush2.xpose.msra.mxu0 0.0
    %2184 = vmatprep.subr.mxu0 0.0
    %2185 = vmatpush2.xpose.msra.mxu0 0.0
    %2186 = vmatprep.subr.mxu0 0.0
    %2187 = vmatpush2.xpose.msra.mxu0 0.0
    %2188 = vmatprep.subr.mxu0 0.0
    %2189 = vmatpush2.xpose.msra.mxu0 0.0
    %2190 = vmatprep.subr.mxu0 0.0
    %2191 = vmatpush2.xpose.msra.mxu0 0.0
    %2192 = vmatprep.mubr.f32.mxu0 0.0
    %2193 = vmatmul.mubr.f32.gmra.mxu0 %v2107
    %v2194 = vpop.f32.mrf.mxu0
    %v2195 = vadd.f32 %v358, %v2194
    %v2196 = vpop.f32.mrf.mxu0
    %2197 = vmatprep.mubr.f32.mxu0 0.0
    %2198 = vmatmul.mubr.f32.gmra.mxu0 %v2110
    %v2199 = vpop.f32.mrf.mxu0
    %v2200 = vadd.f32 %v358, %v2199
    %v2201 = vpop.f32.mrf.mxu0
    %2202 = vdwg.mxu0
    %v2203 = vsel %vm480, %v2195, -inf
    %2204 = vmax.xlane.f32.xlu0 %v2203
    %v2205 = vpop.xlane.xlu0 %2204
    %v2206 = vsel %vm480, %v2200, -inf
    %2207 = vmax.xlane.f32.xlu0 %v2206
    %v2208 = vpop.xlane.xlu0 %2207
    %v2209 = vsub.f32 %v2195, %v2205
    %v2210 = vsub.f32 %v2200, %v2208
    %v2211 = vmul.f32 %v2209, 1.442695
    %v2212 = vpow.pop %v2211
    %v2213 = vmul.f32 %v2210, 1.442695
    %v2214 = vpow.pop %v2213
    %v2216 = vsel %vm480, %v2212, 0
    %v2219 = vsel %vm480, %v2214, 0
    %2221 = vmatprep.subr.mxu0 0.0
    %2222 = vmatpush1.msra.mxu0 0.0
    %2223 = vmatprep.subr.mxu0 0.0
    %2224 = vmatpush1.msra.mxu0 0.0
    %2225 = vmatprep.subr.mxu0 0.0
    %2226 = vmatpush1.msra.mxu0 0.0
    %2227 = vmatprep.subr.mxu0 0.0
    %2228 = vmatpush1.msra.mxu0 0.0
    %2229 = vmatprep.subr.mxu0 0.0
    %2230 = vmatpush1.msra.mxu0 0.0
    %2231 = vmatprep.subr.mxu0 0.0
    %2232 = vmatpush1.msra.mxu0 0.0
    %2233 = vmatprep.subr.mxu0 0.0
    %2234 = vmatpush1.msra.mxu0 0.0
    %2235 = vmatprep.subr.mxu0 0.0
    %2236 = vmatpush1.msra.mxu0 0.0
    %2237 = vmatprep.subr.mxu0 0.0
    %2238 = vmatpush1.msra.mxu0 %v171
    %2239 = vmatprep.subr.mxu0 0.0
    %2240 = vmatpush1.msra.mxu0 %v170
    %2241 = vmatprep.subr.mxu0 0.0
    %2242 = vmatpush1.msra.mxu0 %v169
    %2243 = vmatprep.subr.mxu0 0.0
    %2244 = vmatpush1.msra.mxu0 %v168
    %2245 = vmatprep.subr.mxu0 0.0
    %2246 = vmatpush1.msra.mxu0 %v167
    %2247 = vmatprep.subr.mxu0 0.0
    %2248 = vmatpush1.msra.mxu0 %v166
    %2249 = vmatprep.subr.mxu0 0.0
    %2250 = vmatpush1.msra.mxu0 %v165
    %2251 = vmatprep.subr.mxu0 0.0
    %2252 = vmatpush1.msra.mxu0 %v164
    %2253 = vmatprep.subr.mxu0 0.0
    %2254 = vmatpush2.msra.mxu0 0.0
    %2255 = vmatprep.subr.mxu0 0.0
    %2256 = vmatpush2.msra.mxu0 0.0
    %2257 = vmatprep.subr.mxu0 0.0
    %2258 = vmatpush2.msra.mxu0 0.0
    %2259 = vmatprep.subr.mxu0 0.0
    %2260 = vmatpush2.msra.mxu0 0.0
    %2261 = vmatprep.subr.mxu0 0.0
    %2262 = vmatpush2.msra.mxu0 0.0
    %2263 = vmatprep.subr.mxu0 0.0
    %2264 = vmatpush2.msra.mxu0 0.0
    %2265 = vmatprep.subr.mxu0 0.0
    %2266 = vmatpush2.msra.mxu0 0.0
    %2267 = vmatprep.subr.mxu0 0.0
    %2268 = vmatpush2.msra.mxu0 0.0
    %2269 = vmatprep.subr.mxu0 0.0
    %2270 = vmatpush2.msra.mxu0 0.0
    %2271 = vmatprep.subr.mxu0 0.0
    %2272 = vmatpush2.msra.mxu0 0.0
    %2273 = vmatprep.subr.mxu0 0.0
    %2274 = vmatpush2.msra.mxu0 0.0
    %2275 = vmatprep.subr.mxu0 0.0
    %2276 = vmatpush2.msra.mxu0 0.0
    %2277 = vmatprep.subr.mxu0 0.0
    %2278 = vmatpush2.msra.mxu0 0.0
    %2279 = vmatprep.subr.mxu0 0.0
    %2280 = vmatpush2.msra.mxu0 0.0
    %2281 = vmatprep.subr.mxu0 0.0
    %2282 = vmatpush2.msra.mxu0 0.0
    %2283 = vmatprep.subr.mxu0 0.0
    %2284 = vmatpush2.msra.mxu0 0.0
    %2285 = vmatprep.mubr.f32.mxu0 0.0
    %2286 = vmatmul.mubr.f32.gmra.mxu0 %v2216
    %v2287 = vpop.f32.mrf.mxu0
    %v2288 = vadd.f32 1e-30, %v2287
    %v2289 = vpop.f32.mrf.mxu0
    %2290 = vmatprep.mubr.f32.mxu0 0.0
    %2291 = vmatmul.mubr.f32.gmra.mxu0 %v2219
    %v2292 = vpop.f32.mrf.mxu0
    %v2293 = vadd.f32 1e-30, %v2292
    %v2294 = vpop.f32.mrf.mxu0
    %2295 = vdwg.mxu0
    %v2296 = vrcp.pop %v2288
    %v2297 = vrcp.pop %v2293
    %v2298 = vmul.f32 %v2212, %v2296
    %v2299 = vmul.f32 %v2214, %v2297
    %v2300 = vmul.f32 %v1719, %v579
    %v2301 = vmul.f32 %v1724, %v581
    %v2302 = vmul.f32 %v1719, %v583
    %v2303 = vmul.f32 %v1724, %v585
    %v2304 = vmul.f32 %v1719, %v587
    %v2305 = vmul.f32 %v1724, %v589
    %v2306 = vmul.f32 %v1719, %v591
    %v2307 = vmul.f32 %v1724, %v593
    %2316 = vrot.lane.b32.xlu0 %v2300, 64
    %v2317 = vpop.permute.xlu0 %2316
    %2318 = vrot.lane.b32.xlu0 %v2301, 64
    %v2319 = vpop.permute.xlu0 %2318
    %2320 = vrot.lane.b32.xlu0 %v2302, 64
    %v2321 = vpop.permute.xlu0 %2320
    %2322 = vrot.lane.b32.xlu0 %v2303, 64
    %v2323 = vpop.permute.xlu0 %2322
    %2324 = vrot.lane.b32.xlu0 %v2304, 64
    %v2325 = vpop.permute.xlu0 %2324
    %2326 = vrot.lane.b32.xlu0 %v2305, 64
    %v2327 = vpop.permute.xlu0 %2326
    %2328 = vrot.lane.b32.xlu0 %v2306, 64
    %v2329 = vpop.permute.xlu0 %2328
    %2330 = vrot.lane.b32.xlu0 %v2307, 64
    %v2331 = vpop.permute.xlu0 %2330
    %v2341 = vsel %vm480, %v2298, 0
    %v2344 = vsel %vm480, %v2299, 0
    %2346 = vmatprep.subr.mxu0 0.0
    %2347 = vmatpush1.msra.mxu0 0.0
    %2348 = vmatprep.subr.mxu0 0.0
    %2349 = vmatpush1.msra.mxu0 0.0
    %2350 = vmatprep.subr.mxu0 0.0
    %2351 = vmatpush1.msra.mxu0 0.0
    %2352 = vmatprep.subr.mxu0 0.0
    %2353 = vmatpush1.msra.mxu0 0.0
    %2354 = vmatprep.subr.mxu0 0.0
    %2355 = vmatpush1.msra.mxu0 0.0
    %2356 = vmatprep.subr.mxu0 0.0
    %2357 = vmatpush1.msra.mxu0 0.0
    %2358 = vmatprep.subr.mxu0 0.0
    %2359 = vmatpush1.msra.mxu0 0.0
    %2360 = vmatprep.subr.mxu0 0.0
    %2361 = vmatpush1.msra.mxu0 0.0
    %2362 = vmatprep.subr.mxu0 0.0
    %2363 = vmatpush1.msra.mxu0 %v2331
    %2364 = vmatprep.subr.mxu0 0.0
    %2365 = vmatpush1.msra.mxu0 %v2329
    %2366 = vmatprep.subr.mxu0 0.0
    %2367 = vmatpush1.msra.mxu0 %v2327
    %2368 = vmatprep.subr.mxu0 0.0
    %2369 = vmatpush1.msra.mxu0 %v2325
    %2370 = vmatprep.subr.mxu0 0.0
    %2371 = vmatpush1.msra.mxu0 %v2323
    %2372 = vmatprep.subr.mxu0 0.0
    %2373 = vmatpush1.msra.mxu0 %v2321
    %2374 = vmatprep.subr.mxu0 0.0
    %2375 = vmatpush1.msra.mxu0 %v2319
    %2376 = vmatprep.subr.mxu0 0.0
    %2377 = vmatpush1.msra.mxu0 %v2317
    %2378 = vmatprep.subr.mxu0 0.0
    %2379 = vmatpush2.msra.mxu0 0.0
    %2380 = vmatprep.subr.mxu0 0.0
    %2381 = vmatpush2.msra.mxu0 0.0
    %2382 = vmatprep.subr.mxu0 0.0
    %2383 = vmatpush2.msra.mxu0 0.0
    %2384 = vmatprep.subr.mxu0 0.0
    %2385 = vmatpush2.msra.mxu0 0.0
    %2386 = vmatprep.subr.mxu0 0.0
    %2387 = vmatpush2.msra.mxu0 0.0
    %2388 = vmatprep.subr.mxu0 0.0
    %2389 = vmatpush2.msra.mxu0 0.0
    %2390 = vmatprep.subr.mxu0 0.0
    %2391 = vmatpush2.msra.mxu0 0.0
    %2392 = vmatprep.subr.mxu0 0.0
    %2393 = vmatpush2.msra.mxu0 0.0
    %2394 = vmatprep.subr.mxu0 0.0
    %2395 = vmatpush2.msra.mxu0 0.0
    %2396 = vmatprep.subr.mxu0 0.0
    %2397 = vmatpush2.msra.mxu0 0.0
    %2398 = vmatprep.subr.mxu0 0.0
    %2399 = vmatpush2.msra.mxu0 0.0
    %2400 = vmatprep.subr.mxu0 0.0
    %2401 = vmatpush2.msra.mxu0 0.0
    %2402 = vmatprep.subr.mxu0 0.0
    %2403 = vmatpush2.msra.mxu0 0.0
    %2404 = vmatprep.subr.mxu0 0.0
    %2405 = vmatpush2.msra.mxu0 0.0
    %2406 = vmatprep.subr.mxu0 0.0
    %2407 = vmatpush2.msra.mxu0 0.0
    %2408 = vmatprep.subr.mxu0 0.0
    %2409 = vmatpush2.msra.mxu0 0.0
    %2410 = vmatprep.mubr.f32.mxu0 0.0
    %2411 = vmatmul.mubr.f32.gmra.mxu0 %v2341
    %v2412 = vpop.f32.mrf.mxu0
    %v2413 = vadd.f32 0.0, %v2412
    %v2414 = vpop.f32.mrf.mxu0
    %2415 = vmatprep.mubr.f32.mxu0 0.0
    %2416 = vmatmul.mubr.f32.gmra.mxu0 %v2344
    %v2417 = vpop.f32.mrf.mxu0
    %v2418 = vadd.f32 0.0, %v2417
    %v2419 = vpop.f32.mrf.mxu0
    %2420 = vdwg.mxu0
    %v2421 = vld [vmem:[%s1620 + $0x28] sm:$0xff]
    %v2422 = vld [vmem:[%s1620 + $0x30] sm:$0xff]
    %v2423 = vld [vmem:[%s1620 + $0x38] sm:$0xff]
    %v2424 = vld [vmem:[%s1620 + $0x40] sm:$0xff]
    %v2426 = vsel %vm109, %v2066, 0
    %v2429 = vsel %vm109, %v2071, 0
    %v2432 = vsel %vm109, %v2413, 0
    %v2435 = vsel %vm109, %v2418, 0
    %2437 = vmatprep.subr.mxu0 0.0
    %2438 = vmatpush1.msra.mxu0 0.0
    %2439 = vmatprep.subr.mxu0 0.0
    %2440 = vmatpush1.msra.mxu0 0.0
    %2441 = vmatprep.subr.mxu0 0.0
    %2442 = vmatpush1.msra.mxu0 0.0
    %2443 = vmatprep.subr.mxu0 0.0
    %2444 = vmatpush1.msra.mxu0 0.0
    %2445 = vmatprep.subr.mxu0 0.0
    %2446 = vmatpush1.msra.mxu0 0.0
    %2447 = vmatprep.subr.mxu0 0.0
    %2448 = vmatpush1.msra.mxu0 0.0
    %2449 = vmatprep.subr.mxu0 0.0
    %2450 = vmatpush1.msra.mxu0 0.0
    %2451 = vmatprep.subr.mxu0 0.0
    %2452 = vmatpush1.msra.mxu0 0.0
    %2453 = vmatprep.subr.mxu0 0.0
    %2454 = vmatpush1.msra.mxu0 0.0
    %2455 = vmatprep.subr.mxu0 0.0
    %2456 = vmatpush1.msra.mxu0 0.0
    %2457 = vmatprep.subr.mxu0 0.0
    %2458 = vmatpush1.msra.mxu0 0.0
    %2459 = vmatprep.subr.mxu0 0.0
    %2460 = vmatpush1.msra.mxu0 0.0
    %2461 = vmatprep.subr.mxu0 0.0
    %2462 = vmatpush1.msra.mxu0 %v2424
    %2463 = vmatprep.subr.mxu0 0.0
    %2464 = vmatpush1.msra.mxu0 %v2423
    %2465 = vmatprep.subr.mxu0 0.0
    %2466 = vmatpush1.msra.mxu0 %v2422
    %2467 = vmatprep.subr.mxu0 0.0
    %2468 = vmatpush1.msra.mxu0 %v2421
    %2469 = vmatprep.subr.mxu0 0.0
    %2470 = vmatpush2.msra.mxu0 0.0
    %2471 = vmatprep.subr.mxu0 0.0
    %2472 = vmatpush2.msra.mxu0 0.0
    %2473 = vmatprep.subr.mxu0 0.0
    %2474 = vmatpush2.msra.mxu0 0.0
    %2475 = vmatprep.subr.mxu0 0.0
    %2476 = vmatpush2.msra.mxu0 0.0
    %2477 = vmatprep.subr.mxu0 0.0
    %2478 = vmatpush2.msra.mxu0 0.0
    %2479 = vmatprep.subr.mxu0 0.0
    %2480 = vmatpush2.msra.mxu0 0.0
    %2481 = vmatprep.subr.mxu0 0.0
    %2482 = vmatpush2.msra.mxu0 0.0
    %2483 = vmatprep.subr.mxu0 0.0
    %2484 = vmatpush2.msra.mxu0 0.0
    %2485 = vmatprep.subr.mxu0 0.0
    %2486 = vmatpush2.msra.mxu0 0.0
    %2487 = vmatprep.subr.mxu0 0.0
    %2488 = vmatpush2.msra.mxu0 0.0
    %2489 = vmatprep.subr.mxu0 0.0
    %2490 = vmatpush2.msra.mxu0 0.0
    %2491 = vmatprep.subr.mxu0 0.0
    %2492 = vmatpush2.msra.mxu0 0.0
    %2493 = vmatprep.subr.mxu0 0.0
    %2494 = vmatpush2.msra.mxu0 0.0
    %2495 = vmatprep.subr.mxu0 0.0
    %2496 = vmatpush2.msra.mxu0 0.0
    %2497 = vmatprep.subr.mxu0 0.0
    %2498 = vmatpush2.msra.mxu0 0.0
    %2499 = vmatprep.subr.mxu0 0.0
    %2500 = vmatpush2.msra.mxu0 0.0
    %2501 = vmatprep.mubr.f32.mxu0 0.0
    %2502 = vmatmul.mubr.f32.gmra.mxu0 %v2426
    %v2503 = vpop.f32.mrf.mxu0
    %v2504 = vadd.f32 0.0, %v2503
    %v2505 = vpop.f32.mrf.mxu0
    %2506 = vmatprep.mubr.f32.mxu0 0.0
    %2507 = vmatmul.mubr.f32.gmra.mxu0 %v2429
    %v2508 = vpop.f32.mrf.mxu0
    %v2509 = vadd.f32 0.0, %v2508
    %v2510 = vpop.f32.mrf.mxu0
    %2511 = vmatprep.mubr.f32.mxu0 0.0
    %2512 = vmatmul.mubr.f32.gmra.mxu0 %v2432
    %v2513 = vpop.f32.mrf.mxu0
    %v2514 = vadd.f32 0.0, %v2513
    %v2515 = vpop.f32.mrf.mxu0
    %2516 = vmatprep.mubr.f32.mxu0 0.0
    %2517 = vmatmul.mubr.f32.gmra.mxu0 %v2435
    %v2518 = vpop.f32.mrf.mxu0
    %v2519 = vadd.f32 0.0, %v2518
    %v2520 = vpop.f32.mrf.mxu0
    %2521 = vdwg.mxu0
    %v2522 = vadd.f32 %v1564, %v2504
    %v2523 = vadd.f32 %v1565, %v2509
    %v2524 = vadd.f32 %v1566, %v2514
    %v2525 = vadd.f32 %v1567, %v2519
    %v2526 = vld [vmem:[%s1620 + $0x48] sm:$0x1]
    %v2527 = vlaneseq
    %v2528 = vshrl.u32 %v2527, 7
    %v2529 = vsub.s32 0, %v2528
    %v2530 = vrot.slane %v2526, %v2529
    %v2531 = vadd.f32 %v2522, %v2530
    %v2532 = vadd.f32 %v2523, %v2530
    %v2533 = vadd.f32 %v2524, %v2530
    %v2534 = vadd.f32 %v2525, %v2530
    %v2535 = vsel %vm109, %v2531, 0.0
    %2536 = vadd.xlane.f32.xlu0 %v2535
    %v2537 = vpop.xlane.xlu0 %2536
    %v2538 = vsel %vm109, %v2532, 0.0
    %2539 = vadd.xlane.f32.xlu0 %v2538
    %v2540 = vpop.xlane.xlu0 %2539
    %v2541 = vsel %vm109, %v2533, 0.0
    %2542 = vadd.xlane.f32.xlu0 %v2541
    %v2543 = vpop.xlane.xlu0 %2542
    %v2544 = vsel %vm109, %v2534, 0.0
    %2545 = vadd.xlane.f32.xlu0 %v2544
    %v2546 = vpop.xlane.xlu0 %2545
    %v2547 = vmul.f32 %v2537, %v116
    %v2548 = vmul.f32 %v2540, %v116
    %v2549 = vmul.f32 %v2543, %v116
    %v2550 = vmul.f32 %v2546, %v116
    %v2551 = vsub.f32 %v2531, %v2547
    %v2552 = vsub.f32 %v2532, %v2548
    %v2553 = vsub.f32 %v2533, %v2549
    %v2554 = vsub.f32 %v2534, %v2550
    %v2555 = vmul.f32 %v2551, %v2551
    %v2556 = vmul.f32 %v2552, %v2552
    %v2557 = vmul.f32 %v2553, %v2553
    %v2558 = vmul.f32 %v2554, %v2554
    %v2559 = vsel %vm109, %v2555, 0.0
    %2560 = vadd.xlane.f32.xlu0 %v2559
    %v2561 = vpop.xlane.xlu0 %2560
    %v2562 = vsel %vm109, %v2556, 0.0
    %2563 = vadd.xlane.f32.xlu0 %v2562
    %v2564 = vpop.xlane.xlu0 %2563
    %v2565 = vsel %vm109, %v2557, 0.0
    %2566 = vadd.xlane.f32.xlu0 %v2565
    %v2567 = vpop.xlane.xlu0 %2566
    %v2568 = vsel %vm109, %v2558, 0.0
    %2569 = vadd.xlane.f32.xlu0 %v2568
    %v2570 = vpop.xlane.xlu0 %2569
    %v2571 = vmul.f32 %v2561, %v116
    %v2572 = vmul.f32 %v2564, %v116
    %v2573 = vmul.f32 %v2567, %v116
    %v2574 = vmul.f32 %v2570, %v116
    %v2575 = vadd.f32 %v2571, 1e-05
    %v2576 = vadd.f32 %v2572, 1e-05
    %v2577 = vadd.f32 %v2573, 1e-05
    %v2578 = vadd.f32 %v2574, 1e-05
    %v2579 = vrsqrt.pop %v2575
    %v2580 = vrsqrt.pop %v2576
    %v2581 = vrsqrt.pop %v2577
    %v2582 = vrsqrt.pop %v2578
    %v2583 = vmul.f32 %v2551, %v2579
    %v2584 = vmul.f32 %v2552, %v2580
    %v2585 = vmul.f32 %v2553, %v2581
    %v2586 = vmul.f32 %v2554, %v2582
    %v2587 = vld [vmem:[%s1620 + $0x50] sm:$0xff]
    %v2588 = vld [vmem:[%s1620 + $0x58] sm:$0xff]
    %v2589 = vld [vmem:[%s1620 + $0x60] sm:$0xff]
    %v2590 = vld [vmem:[%s1620 + $0x68] sm:$0xff]
    %v2591 = vld [vmem:[%s1620 + $0x70] sm:$0x1]
    %v2592 = vlaneseq
    %v2593 = vshrl.u32 %v2592, 7
    %v2594 = vsub.s32 0, %v2593
    %v2595 = vrot.slane %v2591, %v2594
    %v2597 = vsel %vm109, %v2583, 0
    %v2600 = vsel %vm109, %v2584, 0
    %v2603 = vsel %vm109, %v2585, 0
    %v2606 = vsel %vm109, %v2586, 0
    %2608 = vmatprep.subr.mxu0 0.0
    %2609 = vmatpush1.msra.mxu0 0.0
    %2610 = vmatprep.subr.mxu0 0.0
    %2611 = vmatpush1.msra.mxu0 0.0
    %2612 = vmatprep.subr.mxu0 0.0
    %2613 = vmatpush1.msra.mxu0 0.0
    %2614 = vmatprep.subr.mxu0 0.0
    %2615 = vmatpush1.msra.mxu0 0.0
    %2616 = vmatprep.subr.mxu0 0.0
    %2617 = vmatpush1.msra.mxu0 0.0
    %2618 = vmatprep.subr.mxu0 0.0
    %2619 = vmatpush1.msra.mxu0 0.0
    %2620 = vmatprep.subr.mxu0 0.0
    %2621 = vmatpush1.msra.mxu0 0.0
    %2622 = vmatprep.subr.mxu0 0.0
    %2623 = vmatpush1.msra.mxu0 0.0
    %2624 = vmatprep.subr.mxu0 0.0
    %2625 = vmatpush1.msra.mxu0 0.0
    %2626 = vmatprep.subr.mxu0 0.0
    %2627 = vmatpush1.msra.mxu0 0.0
    %2628 = vmatprep.subr.mxu0 0.0
    %2629 = vmatpush1.msra.mxu0 0.0
    %2630 = vmatprep.subr.mxu0 0.0
    %2631 = vmatpush1.msra.mxu0 0.0
    %2632 = vmatprep.subr.mxu0 0.0
    %2633 = vmatpush1.msra.mxu0 %v2590
    %2634 = vmatprep.subr.mxu0 0.0
    %2635 = vmatpush1.msra.mxu0 %v2589
    %2636 = vmatprep.subr.mxu0 0.0
    %2637 = vmatpush1.msra.mxu0 %v2588
    %2638 = vmatprep.subr.mxu0 0.0
    %2639 = vmatpush1.msra.mxu0 %v2587
    %2640 = vmatprep.subr.mxu0 0.0
    %2641 = vmatpush2.msra.mxu0 0.0
    %2642 = vmatprep.subr.mxu0 0.0
    %2643 = vmatpush2.msra.mxu0 0.0
    %2644 = vmatprep.subr.mxu0 0.0
    %2645 = vmatpush2.msra.mxu0 0.0
    %2646 = vmatprep.subr.mxu0 0.0
    %2647 = vmatpush2.msra.mxu0 0.0
    %2648 = vmatprep.subr.mxu0 0.0
    %2649 = vmatpush2.msra.mxu0 0.0
    %2650 = vmatprep.subr.mxu0 0.0
    %2651 = vmatpush2.msra.mxu0 0.0
    %2652 = vmatprep.subr.mxu0 0.0
    %2653 = vmatpush2.msra.mxu0 0.0
    %2654 = vmatprep.subr.mxu0 0.0
    %2655 = vmatpush2.msra.mxu0 0.0
    %2656 = vmatprep.subr.mxu0 0.0
    %2657 = vmatpush2.msra.mxu0 0.0
    %2658 = vmatprep.subr.mxu0 0.0
    %2659 = vmatpush2.msra.mxu0 0.0
    %2660 = vmatprep.subr.mxu0 0.0
    %2661 = vmatpush2.msra.mxu0 0.0
    %2662 = vmatprep.subr.mxu0 0.0
    %2663 = vmatpush2.msra.mxu0 0.0
    %2664 = vmatprep.subr.mxu0 0.0
    %2665 = vmatpush2.msra.mxu0 0.0
    %2666 = vmatprep.subr.mxu0 0.0
    %2667 = vmatpush2.msra.mxu0 0.0
    %2668 = vmatprep.subr.mxu0 0.0
    %2669 = vmatpush2.msra.mxu0 0.0
    %2670 = vmatprep.subr.mxu0 0.0
    %2671 = vmatpush2.msra.mxu0 0.0
    %2672 = vmatprep.mubr.f32.mxu0 0.0
    %2673 = vmatmul.mubr.f32.gmra.mxu0 %v2597
    %v2674 = vpop.f32.mrf.mxu0
    %v2675 = vadd.f32 %v2595, %v2674
    %v2676 = vpop.f32.mrf.mxu0
    %2677 = vmatprep.mubr.f32.mxu0 0.0
    %2678 = vmatmul.mubr.f32.gmra.mxu0 %v2600
    %v2679 = vpop.f32.mrf.mxu0
    %v2680 = vadd.f32 %v2595, %v2679
    %v2681 = vpop.f32.mrf.mxu0
    %2682 = vmatprep.mubr.f32.mxu0 0.0
    %2683 = vmatmul.mubr.f32.gmra.mxu0 %v2603
    %v2684 = vpop.f32.mrf.mxu0
    %v2685 = vadd.f32 %v2595, %v2684
    %v2686 = vpop.f32.mrf.mxu0
    %2687 = vmatprep.mubr.f32.mxu0 0.0
    %2688 = vmatmul.mubr.f32.gmra.mxu0 %v2606
    %v2689 = vpop.f32.mrf.mxu0
    %v2690 = vadd.f32 %v2595, %v2689
    %v2691 = vpop.f32.mrf.mxu0
    %2692 = vdwg.mxu0
    %v2693 = vmul.f32 %v2675, 0.5
    %v2694 = vmul.f32 %v2680, 0.5
    %v2695 = vmul.f32 %v2685, 0.5
    %v2696 = vmul.f32 %v2690, 0.5
    %v2697 = vmul.f32 %v2675, 0.70710677
    %v2698 = vmul.f32 %v2680, 0.70710677
    %v2699 = vmul.f32 %v2685, 0.70710677
    %v2700 = vmul.f32 %v2690, 0.70710677
    %vm2701 = vcmp.ge.f32.partialorder %v2697, 0.0
    %vm2702 = vcmp.ge.f32.partialorder %v2698, 0.0
    %vm2703 = vcmp.ge.f32.partialorder %v2699, 0.0
    %vm2704 = vcmp.ge.f32.partialorder %v2700, 0.0
    %v2705 = vsel %vm2701, 1.0, -1.0
    %v2706 = vsel %vm2702, 1.0, -1.0
    %v2707 = vsel %vm2703, 1.0, -1.0
    %v2708 = vsel %vm2704, 1.0, -1.0
    %v2709 = vand.u32 2147483647, %v2697
    %v2710 = vand.u32 2147483647, %v2698
    %v2711 = vand.u32 2147483647, %v2699
    %v2712 = vand.u32 2147483647, %v2700
    %v2713 = vmul.f32 %v2709, 0.3275911
    %v2714 = vmul.f32 %v2710, 0.3275911
    %v2715 = vmul.f32 %v2711, 0.3275911
    %v2716 = vmul.f32 %v2712, 0.3275911
    %v2717 = vadd.f32 %v2713, 1.0
    %v2718 = vadd.f32 %v2714, 1.0
    %v2719 = vadd.f32 %v2715, 1.0
    %v2720 = vadd.f32 %v2716, 1.0
    %v2721 = vrcp.pop %v2717
    %v2722 = vmul.f32 1.0, %v2721
    %v2723 = vrcp.pop %v2718
    %v2724 = vmul.f32 1.0, %v2723
    %v2725 = vrcp.pop %v2719
    %v2726 = vmul.f32 1.0, %v2725
    %v2727 = vrcp.pop %v2720
    %v2728 = vmul.f32 1.0, %v2727
    %v2729 = vmul.f32 %v2722, 1.0614054
    %v2730 = vmul.f32 %v2724, 1.0614054
    %v2731 = vmul.f32 %v2726, 1.0614054
    %v2732 = vmul.f32 %v2728, 1.0614054
    %v2733 = vadd.f32 %v2729, -1.4531521
    %v2734 = vadd.f32 %v2730, -1.4531521
    %v2735 = vadd.f32 %v2731, -1.4531521
    %v2736 = vadd.f32 %v2732, -1.4531521
    %v2737 = vmul.f32 %v2733, %v2722
    %v2738 = vmul.f32 %v2734, %v2724
    %v2739 = vmul.f32 %v2735, %v2726
    %v2740 = vmul.f32 %v2736, %v2728
    %v2741 = vadd.f32 %v2737, 1.4214138
    %v2742 = vadd.f32 %v2738, 1.4214138
    %v2743 = vadd.f32 %v2739, 1.4214138
    %v2744 = vadd.f32 %v2740, 1.4214138
    %v2745 = vmul.f32 %v2741, %v2722
    %v2746 = vmul.f32 %v2742, %v2724
    %v2747 = vmul.f32 %v2743, %v2726
    %v2748 = vmul.f32 %v2744, %v2728
    %v2749 = vadd.f32 %v2745, -0.28449672
    %v2750 = vadd.f32 %v2746, -0.28449672
    %v2751 = vadd.f32 %v2747, -0.28449672
    %v2752 = vadd.f32 %v2748, -0.28449672
    %v2753 = vmul.f32 %v2749, %v2722
    %v2754 = vmul.f32 %v2750, %v2724
    %v2755 = vmul.f32 %v2751, %v2726
    %v2756 = vmul.f32 %v2752, %v2728
    %v2757 = vadd.f32 %v2753, 0.2548296
    %v2758 = vadd.f32 %v2754, 0.2548296
    %v2759 = vadd.f32 %v2755, 0.2548296
    %v2760 = vadd.f32 %v2756, 0.2548296
    %v2761 = vmul.f32 %v2757, %v2722
    %v2762 = vmul.f32 %v2758, %v2724
    %v2763 = vmul.f32 %v2759, %v2726
    %v2764 = vmul.f32 %v2760, %v2728
    %v2765 = vsub.f32 0.0, %v2709
    %v2766 = vsub.f32 0.0, %v2710
    %v2767 = vsub.f32 0.0, %v2711
    %v2768 = vsub.f32 0.0, %v2712
    %v2769 = vmul.f32 %v2765, %v2709
    %v2770 = vmul.f32 %v2766, %v2710
    %v2771 = vmul.f32 %v2767, %v2711
    %v2772 = vmul.f32 %v2768, %v2712
    %v2773 = vmul.f32 %v2769, 1.442695
    %v2774 = vpow.pop %v2773
    %v2775 = vmul.f32 %v2770, 1.442695
    %v2776 = vpow.pop %v2775
    %v2777 = vmul.f32 %v2771, 1.442695
    %v2778 = vpow.pop %v2777
    %v2779 = vmul.f32 %v2772, 1.442695
    %v2780 = vpow.pop %v2779
    %v2781 = vmul.f32 %v2761, %v2774
    %v2782 = vmul.f32 %v2762, %v2776
    %v2783 = vmul.f32 %v2763, %v2778
    %v2784 = vmul.f32 %v2764, %v2780
    %v2785 = vsub.f32 1.0, %v2781
    %v2786 = vsub.f32 1.0, %v2782
    %v2787 = vsub.f32 1.0, %v2783
    %v2788 = vsub.f32 1.0, %v2784
    %v2789 = vmul.f32 %v2705, %v2785
    %v2790 = vmul.f32 %v2706, %v2786
    %v2791 = vmul.f32 %v2707, %v2787
    %v2792 = vmul.f32 %v2708, %v2788
    %v2793 = vadd.f32 %v2789, 1.0
    %v2794 = vadd.f32 %v2790, 1.0
    %v2795 = vadd.f32 %v2791, 1.0
    %v2796 = vadd.f32 %v2792, 1.0
    %v2797 = vmul.f32 %v2693, %v2793
    %v2798 = vmul.f32 %v2694, %v2794
    %v2799 = vmul.f32 %v2695, %v2795
    %v2800 = vmul.f32 %v2696, %v2796
    %v2801 = vld [vmem:[%s1620 + $0x78] sm:$0xff]
    %v2802 = vld [vmem:[%s1620 + $0x80] sm:$0xff]
    %v2803 = vld [vmem:[%s1620 + $0x88] sm:$0xff]
    %v2804 = vld [vmem:[%s1620 + $0x90] sm:$0xff]
    %v2805 = vld [vmem:[%s1620 + $0x98] sm:$0xff]
    %v2806 = vld [vmem:[%s1620 + $0xa0] sm:$0xff]
    %v2807 = vld [vmem:[%s1620 + $0xa8] sm:$0xff]
    %v2808 = vld [vmem:[%s1620 + $0xb0] sm:$0xff]
    %v2810 = vsel %vm480, %v2797, 0
    %v2813 = vsel %vm480, %v2798, 0
    %v2816 = vsel %vm480, %v2799, 0
    %v2819 = vsel %vm480, %v2800, 0
    %2821 = vmatprep.subr.mxu0 0.0
    %2822 = vmatpush1.msra.mxu0 0.0
    %2823 = vmatprep.subr.mxu0 0.0
    %2824 = vmatpush1.msra.mxu0 0.0
    %2825 = vmatprep.subr.mxu0 0.0
    %2826 = vmatpush1.msra.mxu0 0.0
    %2827 = vmatprep.subr.mxu0 0.0
    %2828 = vmatpush1.msra.mxu0 0.0
    %2829 = vmatprep.subr.mxu0 0.0
    %2830 = vmatpush1.msra.mxu0 0.0
    %2831 = vmatprep.subr.mxu0 0.0
    %2832 = vmatpush1.msra.mxu0 0.0
    %2833 = vmatprep.subr.mxu0 0.0
    %2834 = vmatpush1.msra.mxu0 0.0
    %2835 = vmatprep.subr.mxu0 0.0
    %2836 = vmatpush1.msra.mxu0 0.0
    %2837 = vmatprep.subr.mxu0 0.0
    %2838 = vmatpush1.msra.mxu0 %v2808
    %2839 = vmatprep.subr.mxu0 0.0
    %2840 = vmatpush1.msra.mxu0 %v2807
    %2841 = vmatprep.subr.mxu0 0.0
    %2842 = vmatpush1.msra.mxu0 %v2806
    %2843 = vmatprep.subr.mxu0 0.0
    %2844 = vmatpush1.msra.mxu0 %v2805
    %2845 = vmatprep.subr.mxu0 0.0
    %2846 = vmatpush1.msra.mxu0 %v2804
    %2847 = vmatprep.subr.mxu0 0.0
    %2848 = vmatpush1.msra.mxu0 %v2803
    %2849 = vmatprep.subr.mxu0 0.0
    %2850 = vmatpush1.msra.mxu0 %v2802
    %2851 = vmatprep.subr.mxu0 0.0
    %2852 = vmatpush1.msra.mxu0 %v2801
    %2853 = vmatprep.subr.mxu0 0.0
    %2854 = vmatpush2.msra.mxu0 0.0
    %2855 = vmatprep.subr.mxu0 0.0
    %2856 = vmatpush2.msra.mxu0 0.0
    %2857 = vmatprep.subr.mxu0 0.0
    %2858 = vmatpush2.msra.mxu0 0.0
    %2859 = vmatprep.subr.mxu0 0.0
    %2860 = vmatpush2.msra.mxu0 0.0
    %2861 = vmatprep.subr.mxu0 0.0
    %2862 = vmatpush2.msra.mxu0 0.0
    %2863 = vmatprep.subr.mxu0 0.0
    %2864 = vmatpush2.msra.mxu0 0.0
    %2865 = vmatprep.subr.mxu0 0.0
    %2866 = vmatpush2.msra.mxu0 0.0
    %2867 = vmatprep.subr.mxu0 0.0
    %2868 = vmatpush2.msra.mxu0 0.0
    %2869 = vmatprep.subr.mxu0 0.0
    %2870 = vmatpush2.msra.mxu0 0.0
    %2871 = vmatprep.subr.mxu0 0.0
    %2872 = vmatpush2.msra.mxu0 0.0
    %2873 = vmatprep.subr.mxu0 0.0
    %2874 = vmatpush2.msra.mxu0 0.0
    %2875 = vmatprep.subr.mxu0 0.0
    %2876 = vmatpush2.msra.mxu0 0.0
    %2877 = vmatprep.subr.mxu0 0.0
    %2878 = vmatpush2.msra.mxu0 0.0
    %2879 = vmatprep.subr.mxu0 0.0
    %2880 = vmatpush2.msra.mxu0 0.0
    %2881 = vmatprep.subr.mxu0 0.0
    %2882 = vmatpush2.msra.mxu0 0.0
    %2883 = vmatprep.subr.mxu0 0.0
    %2884 = vmatpush2.msra.mxu0 0.0
    %2885 = vmatprep.mubr.f32.mxu0 0.0
    %2886 = vmatmul.mubr.f32.gmra.mxu0 %v2810
    %v2887 = vpop.f32.mrf.mxu0
    %v2888 = vadd.f32 0.0, %v2887
    %v2889 = vpop.f32.mrf.mxu0
    %2890 = vmatprep.mubr.f32.mxu0 0.0
    %2891 = vmatmul.mubr.f32.gmra.mxu0 %v2813
    %v2892 = vpop.f32.mrf.mxu0
    %v2893 = vadd.f32 0.0, %v2892
    %v2894 = vpop.f32.mrf.mxu0
    %2895 = vmatprep.mubr.f32.mxu0 0.0
    %2896 = vmatmul.mubr.f32.gmra.mxu0 %v2816
    %v2897 = vpop.f32.mrf.mxu0
    %v2898 = vadd.f32 0.0, %v2897
    %v2899 = vpop.f32.mrf.mxu0
    %2900 = vmatprep.mubr.f32.mxu0 0.0
    %2901 = vmatmul.mubr.f32.gmra.mxu0 %v2819
    %v2902 = vpop.f32.mrf.mxu0
    %v2903 = vadd.f32 0.0, %v2902
    %v2904 = vpop.f32.mrf.mxu0
    %2905 = vdwg.mxu0
    %v2906 = vadd.f32 %v2531, %v2888
    %v2907 = vadd.f32 %v2532, %v2893
    %v2908 = vadd.f32 %v2533, %v2898
    %v2909 = vadd.f32 %v2534, %v2903
    %v2910 = vld [vmem:[%s1620 + $0xb8] sm:$0x1]
    %v2911 = vlaneseq
    %v2912 = vshrl.u32 %v2911, 7
    %v2913 = vsub.s32 0, %v2912
    %v2914 = vrot.slane %v2910, %v2913
    %v2915 = vadd.f32 %v2906, %v2914
    %v2916 = vadd.f32 %v2907, %v2914
    %v2917 = vadd.f32 %v2908, %v2914
    %v2918 = vadd.f32 %v2909, %v2914
    %v2919 = vld [vmem:[%s1 + $0xc0] sm:$0x3]
    %v2921 = vsel %vm109, %v2919, 0
    %2923 = vmatprep.subr.mxu0 0.0
    %2924 = vmatpush1.msra.mxu0 0.0
    %2925 = vmatprep.subr.mxu0 0.0
    %2926 = vmatpush1.msra.mxu0 0.0
    %2927 = vmatprep.subr.mxu0 0.0
    %2928 = vmatpush1.msra.mxu0 0.0
    %2929 = vmatprep.subr.mxu0 0.0
    %2930 = vmatpush1.msra.mxu0 0.0
    %2931 = vmatprep.subr.mxu0 0.0
    %2932 = vmatpush1.msra.mxu0 0.0
    %2933 = vmatprep.subr.mxu0 0.0
    %2934 = vmatpush1.msra.mxu0 0.0
    %2935 = vmatprep.subr.mxu0 0.0
    %2936 = vmatpush1.msra.mxu0 0.0
    %2937 = vmatprep.subr.mxu0 0.0
    %2938 = vmatpush1.msra.mxu0 0.0
    %2939 = vmatprep.subr.mxu0 0.0
    %2940 = vmatpush1.msra.mxu0 0.0
    %2941 = vmatprep.subr.mxu0 0.0
    %2942 = vmatpush1.msra.mxu0 0.0
    %2943 = vmatprep.subr.mxu0 0.0
    %2944 = vmatpush1.msra.mxu0 0.0
    %2945 = vmatprep.subr.mxu0 0.0
    %2946 = vmatpush1.msra.mxu0 0.0
    %2947 = vmatprep.subr.mxu0 0.0
    %2948 = vmatpush1.msra.mxu0 %v2918
    %2949 = vmatprep.subr.mxu0 0.0
    %2950 = vmatpush1.msra.mxu0 %v2917
    %2951 = vmatprep.subr.mxu0 0.0
    %2952 = vmatpush1.msra.mxu0 %v2916
    %2953 = vmatprep.subr.mxu0 0.0
    %2954 = vmatpush1.msra.mxu0 %v2915
    %2955 = vmatprep.subr.mxu0 0.0
    %2956 = vmatpush2.msra.mxu0 0.0
    %2957 = vmatprep.subr.mxu0 0.0
    %2958 = vmatpush2.msra.mxu0 0.0
    %2959 = vmatprep.subr.mxu0 0.0
    %2960 = vmatpush2.msra.mxu0 0.0
    %2961 = vmatprep.subr.mxu0 0.0
    %2962 = vmatpush2.msra.mxu0 0.0
    %2963 = vmatprep.subr.mxu0 0.0
    %2964 = vmatpush2.msra.mxu0 0.0
    %2965 = vmatprep.subr.mxu0 0.0
    %2966 = vmatpush2.msra.mxu0 0.0
    %2967 = vmatprep.subr.mxu0 0.0
    %2968 = vmatpush2.msra.mxu0 0.0
    %2969 = vmatprep.subr.mxu0 0.0
    %2970 = vmatpush2.msra.mxu0 0.0
    %2971 = vmatprep.subr.mxu0 0.0
    %2972 = vmatpush2.msra.mxu0 0.0
    %2973 = vmatprep.subr.mxu0 0.0
    %2974 = vmatpush2.msra.mxu0 0.0
    %2975 = vmatprep.subr.mxu0 0.0
    %2976 = vmatpush2.msra.mxu0 0.0
    %2977 = vmatprep.subr.mxu0 0.0
    %2978 = vmatpush2.msra.mxu0 0.0
    %2979 = vmatprep.subr.mxu0 0.0
    %2980 = vmatpush2.msra.mxu0 0.0
    %2981 = vmatprep.subr.mxu0 0.0
    %2982 = vmatpush2.msra.mxu0 0.0
    %2983 = vmatprep.subr.mxu0 0.0
    %2984 = vmatpush2.msra.mxu0 0.0
    %2985 = vmatprep.subr.mxu0 0.0
    %2986 = vmatpush2.msra.mxu0 0.0
    %2987 = vmatprep.mubr.f32.mxu0 0.0
    %2988 = vmatmul.mubr.f32.gmra.mxu0 %v2921
    %v2989 = vpop.f32.mrf.mxu0
    %v2990 = vadd.f32 0.0, %v2989
    %v2991 = vpop.f32.mrf.mxu0
    %2992 = vdwg.mxu0
    %vm2993 = vcmask 254976
    %v2994 = vsel %vm2993, %v2990, 0.0
    %2995 = vadd.xlane.f32.xlu0 %v2994
    %v2996 = vpop.xlane.xlu0 %2995
    %v2997 = vmul.f32 %v2996, %v116
    %v2998 = vsub.f32 %v2990, %v2997
    %v2999 = vmul.f32 %v2998, %v2998
    %v3000 = vsel %vm2993, %v2999, 0.0
    %3001 = vadd.xlane.f32.xlu0 %v3000
    %v3002 = vpop.xlane.xlu0 %3001
    %v3003 = vmul.f32 %v3002, %v116
    %v3004 = vadd.f32 %v3003, 1e-05
    %v3005 = vrsqrt.pop %v3004
    %v3006 = vmul.f32 %v2998, %v3005
    %v3007 = vld [vmem:[%s1 + $0xc8] sm:$0x1]
    %v3008 = vlaneseq
    %v3009 = vshrl.u32 %v3008, 7
    %v3010 = vsub.s32 0, %v3009
    %v3011 = vrot.slane %v3007, %v3010
    %v3012 = vmul.f32 %v3006, %v3011
    %v3013 = vld [vmem:[%s1 + $0xd0] sm:$0x1]
    %v3014 = vlaneseq
    %v3015 = vshrl.u32 %v3014, 7
    %v3016 = vsub.s32 0, %v3015
    %v3017 = vrot.slane %v3013, %v3016
    %v3018 = vadd.f32 %v3012, %v3017
    %v3019 = vld [vmem:[%s1 + $0xd8] sm:$0xff]
    %v3020 = vld [vmem:[%s1 + $0xe0] sm:$0xff]
    %v3021 = vld [vmem:[%s1 + $0xe8] sm:$0xff]
    %v3022 = vld [vmem:[%s1 + $0xf0] sm:$0xff]
    %v3023 = vld [vmem:[%s1 + $0xf8] sm:$0x1]
    %v3024 = vlaneseq
    %v3025 = vshrl.u32 %v3024, 7
    %v3026 = vsub.s32 0, %v3025
    %v3027 = vrot.slane %v3023, %v3026
    %v3029 = vsel %vm109, %v3018, 0
    %3031 = vmatprep.subr.mxu0 0.0
    %3032 = vmatpush1.msra.mxu0 0.0
    %3033 = vmatprep.subr.mxu0 0.0
    %3034 = vmatpush1.msra.mxu0 0.0
    %3035 = vmatprep.subr.mxu0 0.0
    %3036 = vmatpush1.msra.mxu0 0.0
    %3037 = vmatprep.subr.mxu0 0.0
    %3038 = vmatpush1.msra.mxu0 0.0
    %3039 = vmatprep.subr.mxu0 0.0
    %3040 = vmatpush1.msra.mxu0 0.0
    %3041 = vmatprep.subr.mxu0 0.0
    %3042 = vmatpush1.msra.mxu0 0.0
    %3043 = vmatprep.subr.mxu0 0.0
    %3044 = vmatpush1.msra.mxu0 0.0
    %3045 = vmatprep.subr.mxu0 0.0
    %3046 = vmatpush1.msra.mxu0 0.0
    %3047 = vmatprep.subr.mxu0 0.0
    %3048 = vmatpush1.msra.mxu0 0.0
    %3049 = vmatprep.subr.mxu0 0.0
    %3050 = vmatpush1.msra.mxu0 0.0
    %3051 = vmatprep.subr.mxu0 0.0
    %3052 = vmatpush1.msra.mxu0 0.0
    %3053 = vmatprep.subr.mxu0 0.0
    %3054 = vmatpush1.msra.mxu0 0.0
    %3055 = vmatprep.subr.mxu0 0.0
    %3056 = vmatpush1.msra.mxu0 %v3022
    %3057 = vmatprep.subr.mxu0 0.0
    %3058 = vmatpush1.msra.mxu0 %v3021
    %3059 = vmatprep.subr.mxu0 0.0
    %3060 = vmatpush1.msra.mxu0 %v3020
    %3061 = vmatprep.subr.mxu0 0.0
    %3062 = vmatpush1.msra.mxu0 %v3019
    %3063 = vmatprep.subr.mxu0 0.0
    %3064 = vmatpush2.msra.mxu0 0.0
    %3065 = vmatprep.subr.mxu0 0.0
    %3066 = vmatpush2.msra.mxu0 0.0
    %3067 = vmatprep.subr.mxu0 0.0
    %3068 = vmatpush2.msra.mxu0 0.0
    %3069 = vmatprep.subr.mxu0 0.0
    %3070 = vmatpush2.msra.mxu0 0.0
    %3071 = vmatprep.subr.mxu0 0.0
    %3072 = vmatpush2.msra.mxu0 0.0
    %3073 = vmatprep.subr.mxu0 0.0
    %3074 = vmatpush2.msra.mxu0 0.0
    %3075 = vmatprep.subr.mxu0 0.0
    %3076 = vmatpush2.msra.mxu0 0.0
    %3077 = vmatprep.subr.mxu0 0.0
    %3078 = vmatpush2.msra.mxu0 0.0
    %3079 = vmatprep.subr.mxu0 0.0
    %3080 = vmatpush2.msra.mxu0 0.0
    %3081 = vmatprep.subr.mxu0 0.0
    %3082 = vmatpush2.msra.mxu0 0.0
    %3083 = vmatprep.subr.mxu0 0.0
    %3084 = vmatpush2.msra.mxu0 0.0
    %3085 = vmatprep.subr.mxu0 0.0
    %3086 = vmatpush2.msra.mxu0 0.0
    %3087 = vmatprep.subr.mxu0 0.0
    %3088 = vmatpush2.msra.mxu0 0.0
    %3089 = vmatprep.subr.mxu0 0.0
    %3090 = vmatpush2.msra.mxu0 0.0
    %3091 = vmatprep.subr.mxu0 0.0
    %3092 = vmatpush2.msra.mxu0 0.0
    %3093 = vmatprep.subr.mxu0 0.0
    %3094 = vmatpush2.msra.mxu0 0.0
    %3095 = vmatprep.mubr.f32.mxu0 0.0
    %3096 = vmatmul.mubr.f32.gmra.mxu0 %v3029
    %v3097 = vpop.f32.mrf.mxu0
    %v3098 = vadd.f32 %v3027, %v3097
    %v3099 = vpop.f32.mrf.mxu0
    %3100 = vdwg.mxu0
    %vm3101 = vcmp.ge.f32.partialorder %v3098, 0.0
    %v3102 = vmul.f32 %v3098, 0.01
    %v3103 = vsel %vm3101, %v3098, %v3102
    %v3104 = vld [vmem:[%s1 + $0x100] sm:$0xff]
    %v3105 = vld [vmem:[%s1 + $0x108] sm:$0xff]
    %v3106 = vld [vmem:[%s1 + $0x110] sm:$0xff]
    %v3107 = vld [vmem:[%s1 + $0x118] sm:$0xff]
    %v3108 = vld [vmem:[%s1 + $0x120] sm:$0xff]
    %v3109 = vld [vmem:[%s1 + $0x128] sm:$0xff]
    %v3110 = vld [vmem:[%s1 + $0x130] sm:$0xff]
    %v3111 = vld [vmem:[%s1 + $0x138] sm:$0xff]
    %v3112 = vld [vmem:[%s1 + $0x140] sm:$0x1]
    %v3113 = vlaneseq
    %v3114 = vshrl.u32 %v3113, 7
    %v3115 = vsub.s32 0, %v3114
    %v3116 = vrot.slane %v3112, %v3115
    %v3118 = vsel %vm480, %v3103, 0
    %3120 = vmatprep.subr.mxu0 0.0
    %3121 = vmatpush1.msra.mxu0 0.0
    %3122 = vmatprep.subr.mxu0 0.0
    %3123 = vmatpush1.msra.mxu0 0.0
    %3124 = vmatprep.subr.mxu0 0.0
    %3125 = vmatpush1.msra.mxu0 0.0
    %3126 = vmatprep.subr.mxu0 0.0
    %3127 = vmatpush1.msra.mxu0 0.0
    %3128 = vmatprep.subr.mxu0 0.0
    %3129 = vmatpush1.msra.mxu0 0.0
    %3130 = vmatprep.subr.mxu0 0.0
    %3131 = vmatpush1.msra.mxu0 0.0
    %3132 = vmatprep.subr.mxu0 0.0
    %3133 = vmatpush1.msra.mxu0 0.0
    %3134 = vmatprep.subr.mxu0 0.0
    %3135 = vmatpush1.msra.mxu0 0.0
    %3136 = vmatprep.subr.mxu0 0.0
    %3137 = vmatpush1.msra.mxu0 %v3111
    %3138 = vmatprep.subr.mxu0 0.0
    %3139 = vmatpush1.msra.mxu0 %v3110
    %3140 = vmatprep.subr.mxu0 0.0
    %3141 = vmatpush1.msra.mxu0 %v3109
    %3142 = vmatprep.subr.mxu0 0.0
    %3143 = vmatpush1.msra.mxu0 %v3108
    %3144 = vmatprep.subr.mxu0 0.0
    %3145 = vmatpush1.msra.mxu0 %v3107
    %3146 = vmatprep.subr.mxu0 0.0
    %3147 = vmatpush1.msra.mxu0 %v3106
    %3148 = vmatprep.subr.mxu0 0.0
    %3149 = vmatpush1.msra.mxu0 %v3105
    %3150 = vmatprep.subr.mxu0 0.0
    %3151 = vmatpush1.msra.mxu0 %v3104
    %3152 = vmatprep.subr.mxu0 0.0
    %3153 = vmatpush2.msra.mxu0 0.0
    %3154 = vmatprep.subr.mxu0 0.0
    %3155 = vmatpush2.msra.mxu0 0.0
    %3156 = vmatprep.subr.mxu0 0.0
    %3157 = vmatpush2.msra.mxu0 0.0
    %3158 = vmatprep.subr.mxu0 0.0
    %3159 = vmatpush2.msra.mxu0 0.0
    %3160 = vmatprep.subr.mxu0 0.0
    %3161 = vmatpush2.msra.mxu0 0.0
    %3162 = vmatprep.subr.mxu0 0.0
    %3163 = vmatpush2.msra.mxu0 0.0
    %3164 = vmatprep.subr.mxu0 0.0
    %3165 = vmatpush2.msra.mxu0 0.0
    %3166 = vmatprep.subr.mxu0 0.0
    %3167 = vmatpush2.msra.mxu0 0.0
    %3168 = vmatprep.subr.mxu0 0.0
    %3169 = vmatpush2.msra.mxu0 0.0
    %3170 = vmatprep.subr.mxu0 0.0
    %3171 = vmatpush2.msra.mxu0 0.0
    %3172 = vmatprep.subr.mxu0 0.0
    %3173 = vmatpush2.msra.mxu0 0.0
    %3174 = vmatprep.subr.mxu0 0.0
    %3175 = vmatpush2.msra.mxu0 0.0
    %3176 = vmatprep.subr.mxu0 0.0
    %3177 = vmatpush2.msra.mxu0 0.0
    %3178 = vmatprep.subr.mxu0 0.0
    %3179 = vmatpush2.msra.mxu0 0.0
    %3180 = vmatprep.subr.mxu0 0.0
    %3181 = vmatpush2.msra.mxu0 0.0
    %3182 = vmatprep.subr.mxu0 0.0
    %3183 = vmatpush2.msra.mxu0 0.0
    %3184 = vmatprep.mubr.f32.mxu0 0.0
    %3185 = vmatmul.mubr.f32.gmra.mxu0 %v3118
    %v3186 = vpop.f32.mrf.mxu0
    %v3187 = vadd.f32 %v3116, %v3186
    %v3188 = vpop.f32.mrf.mxu0
    %3189 = vdwg.mxu0
    %v3190 = vld [vmem:[%s1 + $0x148] sm:$0xff]
    %v3191 = vld [vmem:[%s1 + $0x150] sm:$0xff]
    %v3192 = vld [vmem:[%s1 + $0x158] sm:$0xff]
    %v3193 = vld [vmem:[%s1 + $0x160] sm:$0xff]
    %v3194 = vmul.f32 %v3187, %v3187
    %v3195 = vld [vmem:[%s1 + $0x168] sm:$0xff]
    %v3196 = vld [vmem:[%s1 + $0x170] sm:$0xff]
    %v3197 = vld [vmem:[%s1 + $0x178] sm:$0xff]
    %v3198 = vld [vmem:[%s1 + $0x180] sm:$0xff]
    %v3200 = vsel %vm109, %v3194, 0
    %3202 = vmatprep.subr.mxu0 0.0
    %3203 = vmatpush1.msra.mxu0 0.0
    %3204 = vmatprep.subr.mxu0 0.0
    %3205 = vmatpush1.msra.mxu0 0.0
    %3206 = vmatprep.subr.mxu0 0.0
    %3207 = vmatpush1.msra.mxu0 0.0
    %3208 = vmatprep.subr.mxu0 0.0
    %3209 = vmatpush1.msra.mxu0 0.0
    %3210 = vmatprep.subr.mxu0 0.0
    %3211 = vmatpush1.msra.mxu0 0.0
    %3212 = vmatprep.subr.mxu0 0.0
    %3213 = vmatpush1.msra.mxu0 0.0
    %3214 = vmatprep.subr.mxu0 0.0
    %3215 = vmatpush1.msra.mxu0 0.0
    %3216 = vmatprep.subr.mxu0 0.0
    %3217 = vmatpush1.msra.mxu0 0.0
    %3218 = vmatprep.subr.mxu0 0.0
    %3219 = vmatpush1.msra.mxu0 0.0
    %3220 = vmatprep.subr.mxu0 0.0
    %3221 = vmatpush1.msra.mxu0 0.0
    %3222 = vmatprep.subr.mxu0 0.0
    %3223 = vmatpush1.msra.mxu0 0.0
    %3224 = vmatprep.subr.mxu0 0.0
    %3225 = vmatpush1.msra.mxu0 0.0
    %3226 = vmatprep.subr.mxu0 0.0
    %3227 = vmatpush1.msra.mxu0 %v3198
    %3228 = vmatprep.subr.mxu0 0.0
    %3229 = vmatpush1.msra.mxu0 %v3197
    %3230 = vmatprep.subr.mxu0 0.0
    %3231 = vmatpush1.msra.mxu0 %v3196
    %3232 = vmatprep.subr.mxu0 0.0
    %3233 = vmatpush1.msra.mxu0 %v3195
    %3234 = vmatprep.subr.mxu0 0.0
    %3235 = vmatpush2.msra.mxu0 0.0
    %3236 = vmatprep.subr.mxu0 0.0
    %3237 = vmatpush2.msra.mxu0 0.0
    %3238 = vmatprep.subr.mxu0 0.0
    %3239 = vmatpush2.msra.mxu0 0.0
    %3240 = vmatprep.subr.mxu0 0.0
    %3241 = vmatpush2.msra.mxu0 0.0
    %3242 = vmatprep.subr.mxu0 0.0
    %3243 = vmatpush2.msra.mxu0 0.0
    %3244 = vmatprep.subr.mxu0 0.0
    %3245 = vmatpush2.msra.mxu0 0.0
    %3246 = vmatprep.subr.mxu0 0.0
    %3247 = vmatpush2.msra.mxu0 0.0
    %3248 = vmatprep.subr.mxu0 0.0
    %3249 = vmatpush2.msra.mxu0 0.0
    %3250 = vmatprep.subr.mxu0 0.0
    %3251 = vmatpush2.msra.mxu0 0.0
    %3252 = vmatprep.subr.mxu0 0.0
    %3253 = vmatpush2.msra.mxu0 0.0
    %3254 = vmatprep.subr.mxu0 0.0
    %3255 = vmatpush2.msra.mxu0 0.0
    %3256 = vmatprep.subr.mxu0 0.0
    %3257 = vmatpush2.msra.mxu0 0.0
    %3258 = vmatprep.subr.mxu0 0.0
    %3259 = vmatpush2.msra.mxu0 0.0
    %3260 = vmatprep.subr.mxu0 0.0
    %3261 = vmatpush2.msra.mxu0 0.0
    %3262 = vmatprep.subr.mxu0 0.0
    %3263 = vmatpush2.msra.mxu0 0.0
    %3264 = vmatprep.subr.mxu0 0.0
    %3265 = vmatpush2.msra.mxu0 0.0
    %3266 = vmatprep.mubr.f32.mxu0 0.0
    %3267 = vmatmul.mubr.f32.gmra.mxu0 %v3200
    %v3268 = vpop.f32.mrf.mxu0
    %v3269 = vadd.f32 0.0, %v3268
    %v3270 = vpop.f32.mrf.mxu0
    %3271 = vdwg.mxu0
    %v3272 = vmax.f32 %v3269, 1e-30
    %v3273 = vrsqrt.pop %v3272
    %v3274 = vmin.f32 %v3273, 1e+12
    %v3275 = vld [vmem:[%s1 + $0x188] sm:$0x1]
    %v3276 = vlaneseq
    %v3277 = vshrl.u32 %v3276, 7
    %v3278 = vsub.s32 0, %v3277
    %v3279 = vrot.slane %v3275, %v3278
    %v3280 = vmul.f32 %v3187, %v3279
    %v3281 = vmul.f32 %v3280, %v3274
    %v3283 = vsel %vm109, %v3187, 0
    %3285 = vmatprep.subr.mxu0 0.0
    %3286 = vmatpush1.msra.mxu0 0.0
    %3287 = vmatprep.subr.mxu0 0.0
    %3288 = vmatpush1.msra.mxu0 0.0
    %3289 = vmatprep.subr.mxu0 0.0
    %3290 = vmatpush1.msra.mxu0 0.0
    %3291 = vmatprep.subr.mxu0 0.0
    %3292 = vmatpush1.msra.mxu0 0.0
    %3293 = vmatprep.subr.mxu0 0.0
    %3294 = vmatpush1.msra.mxu0 0.0
    %3295 = vmatprep.subr.mxu0 0.0
    %3296 = vmatpush1.msra.mxu0 0.0
    %3297 = vmatprep.subr.mxu0 0.0
    %3298 = vmatpush1.msra.mxu0 0.0
    %3299 = vmatprep.subr.mxu0 0.0
    %3300 = vmatpush1.msra.mxu0 0.0
    %3301 = vmatprep.subr.mxu0 0.0
    %3302 = vmatpush1.msra.mxu0 0.0
    %3303 = vmatprep.subr.mxu0 0.0
    %3304 = vmatpush1.msra.mxu0 0.0
    %3305 = vmatprep.subr.mxu0 0.0
    %3306 = vmatpush1.msra.mxu0 0.0
    %3307 = vmatprep.subr.mxu0 0.0
    %3308 = vmatpush1.msra.mxu0 0.0
    %3309 = vmatprep.subr.mxu0 0.0
    %3310 = vmatpush1.msra.mxu0 %v3193
    %3311 = vmatprep.subr.mxu0 0.0
    %3312 = vmatpush1.msra.mxu0 %v3192
    %3313 = vmatprep.subr.mxu0 0.0
    %3314 = vmatpush1.msra.mxu0 %v3191
    %3315 = vmatprep.subr.mxu0 0.0
    %3316 = vmatpush1.msra.mxu0 %v3190
    %3317 = vmatprep.subr.mxu0 0.0
    %3318 = vmatpush2.msra.mxu0 0.0
    %3319 = vmatprep.subr.mxu0 0.0
    %3320 = vmatpush2.msra.mxu0 0.0
    %3321 = vmatprep.subr.mxu0 0.0
    %3322 = vmatpush2.msra.mxu0 0.0
    %3323 = vmatprep.subr.mxu0 0.0
    %3324 = vmatpush2.msra.mxu0 0.0
    %3325 = vmatprep.subr.mxu0 0.0
    %3326 = vmatpush2.msra.mxu0 0.0
    %3327 = vmatprep.subr.mxu0 0.0
    %3328 = vmatpush2.msra.mxu0 0.0
    %3329 = vmatprep.subr.mxu0 0.0
    %3330 = vmatpush2.msra.mxu0 0.0
    %3331 = vmatprep.subr.mxu0 0.0
    %3332 = vmatpush2.msra.mxu0 0.0
    %3333 = vmatprep.subr.mxu0 0.0
    %3334 = vmatpush2.msra.mxu0 0.0
    %3335 = vmatprep.subr.mxu0 0.0
    %3336 = vmatpush2.msra.mxu0 0.0
    %3337 = vmatprep.subr.mxu0 0.0
    %3338 = vmatpush2.msra.mxu0 0.0
    %3339 = vmatprep.subr.mxu0 0.0
    %3340 = vmatpush2.msra.mxu0 0.0
    %3341 = vmatprep.subr.mxu0 0.0
    %3342 = vmatpush2.msra.mxu0 0.0
    %3343 = vmatprep.subr.mxu0 0.0
    %3344 = vmatpush2.msra.mxu0 0.0
    %3345 = vmatprep.subr.mxu0 0.0
    %3346 = vmatpush2.msra.mxu0 0.0
    %3347 = vmatprep.subr.mxu0 0.0
    %3348 = vmatpush2.msra.mxu0 0.0
    %3349 = vmatprep.mubr.f32.mxu0 0.0
    %3350 = vmatmul.mubr.f32.gmra.mxu0 %v3283
    %v3351 = vpop.f32.mrf.mxu0
    %v3352 = vadd.f32 %v3281, %v3351
    %v3353 = vpop.f32.mrf.mxu0
    %3354 = vdwg.mxu0
    %3356 = vrot.lane.b32.xlu0 %v3352, 32
    %v3357 = vpop.permute.xlu0 %3356
    %v3359 = vsel %vm109, %v3018, %v3357
    %vm3360 = vcmask 517120
    %3361 = vst.msk [vmem:[#allocation2] sm:$0x3] %vm3360, %v3359
    // Predicated region
    $region14: #{tpu_custom_call.1} parent=1 // pred_check
      _
    $region15: #{tpu_custom_call.1} parent=1 // pred_check_branch
      %3363 = sbr.rel (0) target = $region17
    $region16: #{tpu_custom_call.1} parent=1 // pred_region
      %s3365 = ssub.s32 32, 32
      %3366 = vsyncadd [#allocation3], %s3365
      %s3368 = sshll.u32 [#allocation2], 4
      %s3369 = int_to_ptr.vmem [resolvable:$true] %s3368
      %3371 = dma.vmem_to_hbm [thread:$0]  %s3369, 32, %s3, [#allocation3]
    $region17: #{tpu_custom_call.1} parent=1 // pred_fallthru
      _
    // Predicated region
    $region18: #{tpu_custom_call.1} parent=1 // pred_check
      _
    $region19: #{tpu_custom_call.1} parent=1 // pred_check_branch
      %3373 = sbr.rel (0) target = $region21
    $region20: #{tpu_custom_call.1} parent=1 // pred_region
      %3374 = dma.done [#allocation3], 32
    $region21: #{tpu_custom_call.1} parent=1 // pred_fallthru
      _
    %3375 = vsyncpa [#allocation3], 1

</llo_original>
